<compile_context>
chip_gen: v7x
topology: tpu7x:2x2x1
jax: 0.10.0
libtpu: 0.0.40
codegen_flags: <defaults>
</compile_context>

<pallas_src>
import functools

import jax
import jax.numpy as jnp
from jax.experimental import pallas as pl
from jax.experimental.pallas import tpu as pltpu

KSIZE = 4
STRIDE = 2
EPS = 1e-5            # nn.InstanceNorm2d default
NPHASE = 4

# 4-phase decomposition of ConvTranspose2d(k=4, s=2, p=1):
#   out[2a + parity] = sum_k  y1[ih(k)] * w[k]   with ih = a + (parity + 1 - k)/2
# Table: parity -> ((kernel tap k, slice start into the zero-padded (pad=1) y1), ...)
_PHASE_TAPS = {0: ((1, 1), (3, 0)), 1: ((0, 2), (2, 1))}


# ----------------------------------------------------------------------------
# Fused Pallas kernel: B_TILE batch elements fully resident in VMEM
# ----------------------------------------------------------------------------
def _fused_unet_inner_kernel(p1_ref, w1_ref, w2_ref, o_ref, ypad_ref, *,
                             bt, ho, wo, kc1, inner_nc, outer_nc):
    """down Conv2d(k4,s2,p1) -> ReLU -> 4-phase ConvTranspose2d(k4,s2,p1)
    -> InstanceNorm2d(affine=False); writes `ret` in (spatial, phase*outer) layout."""
    hw = ho * wo
    m = bt * hw

    # Zero the scratch (incl. the 1-px border) only once: the interior is fully
    # overwritten each grid step and scratch persists across the grid.
    @pl.when(pl.program_id(0) == 0)
    def _():
        ypad_ref[...] = jnp.zeros_like(ypad_ref)

    # ---- down: im2col matmul (bf16 x bf16 -> f32 accum), ReLU, ONE bf16 cast ---
    y1 = jnp.dot(p1_ref[...].reshape(m, kc1), w1_ref[...],
                 preferred_element_type=jnp.float32)
    y1 = jnp.maximum(y1, 0.0).astype(jnp.bfloat16)              # (m, inner)
    ypad_ref[:, 1:ho + 1, 1:wo + 1, :] = y1.reshape(bt, ho, wo, inner_nc)

    # ---- up: 4 output parities, ONE tap-stacked MXU dot each (K = 4*inner) ----
    s_sum = jnp.zeros((bt, outer_nc), jnp.float32)
    s_sq = jnp.zeros((bt, outer_nc), jnp.float32)
    for pi in (0, 1):
        for pj in (0, 1):
            taps = []
            for _, sh in _PHASE_TAPS[pi]:
                for _, sw in _PHASE_TAPS[pj]:
                    taps.append(ypad_ref[:, sh:sh + ho, sw:sw + wo, :])
            stacked = jnp.concatenate(taps, axis=-1)            # (bt,ho,wo,4*inner) bf16
            stacked = stacked.reshape(m, 4 * inner_nc)
            ph = jnp.dot(stacked, w2_ref[pi * 2 + pj],
                         preferred_element_type=jnp.float32)    # (m, outer)
            ph = ph.reshape(bt, hw, outer_nc)
            # streamed InstanceNorm stats (f32)
            s_sum = s_sum + jnp.sum(ph, axis=1)
            s_sq = s_sq + jnp.sum(ph * ph, axis=1)
            # park un-normalized phase in the VMEM-resident output block
            c0 = (pi * 2 + pj) * outer_nc
            o_ref[:, :, c0:c0 + outer_nc] = ph

    # ---- InstanceNorm2d: normalize the whole block in place (one pass) --------
    npix = jnp.float32(NPHASE * hw)
    mean = s_sum / npix
    var = s_sq / npix - mean * mean                              # biased variance
    inv = jax.lax.rsqrt(var + EPS)
    mean4 = jnp.concatenate([mean] * NPHASE, axis=-1)[:, None, :]
    inv4 = jnp.concatenate([inv] * NPHASE, axis=-1)[:, None, :]
    o_ref[...] = (o_ref[...] - mean4) * inv4                     # lane-dense final store


# ----------------------------------------------------------------------------
# JAX glue (layout work only; all compute is inside the kernel)
# ----------------------------------------------------------------------------
def _extract_patches(xp, out_h, out_w, k, stride):
    """xp: (N, Hp, Wp, C) padded NHWC -> (N, out_h, out_w, k*k*C), (kh,kw,ci) order."""
    taps = []
    for kh in range(k):
        for kw in range(k):
            taps.append(xp[:, kh:kh + stride * out_h:stride,
                           kw:kw + stride * out_w:stride, :])
    p = jnp.stack(taps, axis=3)
    return p.reshape(xp.shape[0], out_h, out_w, k * k * xp.shape[-1])


def _pick_b_tile(n, per_elem_bytes, budget=24 << 20):
    """Largest divisor of n whose per-step VMEM footprint fits the budget."""
    best = 1
    for bt in range(1, n + 1):
        if n % bt == 0 and bt * per_elem_bytes <= budget:
            best = bt
    return best


def unet_block_codec_innermost(x_nchw, mask, w_down, w_up):
    """x_nchw: (N, input_nc, H, W); w_down: Conv2d OIHW (inner_nc, input_nc, 4, 4);
    w_up: ConvTranspose2d IOHW (inner_nc, outer_nc, 4, 4).  Returns NCHW concat."""
    del mask  # unused: upnorm is InstanceNorm2d (not in norm_namebuffer)
    N, Cin, H, W = x_nchw.shape
    inner_nc = w_down.shape[0]
    outer_nc = w_up.shape[1]
    assert H % 2 == 0 and W % 2 == 0, "k4/s2/p1 codec assumes even H, W"
    Ho, Wo = H // 2, W // 2
    HWo = Ho * Wo
    KC1 = KSIZE * KSIZE * Cin

    x_f32 = x_nchw.astype(jnp.float32)
    x = jnp.transpose(x_f32, (0, 2, 3, 1))                        # NHWC
    # LeakyReLU(0.2) applied once, BEFORE the 4x-duplicating im2col.
    xa = jnp.where(x >= 0, x, 0.2 * x).astype(jnp.bfloat16)
    xpad = jnp.pad(xa, ((0, 0), (1, 1), (1, 1), (0, 0)))
    p1 = _extract_patches(xpad, Ho, Wo, KSIZE, STRIDE).reshape(N, HWo, KC1)

    # down weight -> matmul layout: row index (kh*4+kw)*Cin + ci, col = out ch
    w1m = jnp.transpose(w_down, (2, 3, 1, 0)).reshape(KC1, inner_nc)
    w1m = w1m.astype(jnp.bfloat16)
    # up weight: tap-stacked per phase -> (4, 4*inner_nc, outer_nc)
    w2t = jnp.transpose(w_up, (2, 3, 0, 1)).reshape(KSIZE * KSIZE, inner_nc, outer_nc)
    phase_mats = []
    for pi in (0, 1):
        for pj in (0, 1):
            blocks = [w2t[kh * KSIZE + kw]
                      for kh, _ in _PHASE_TAPS[pi] for kw, _ in _PHASE_TAPS[pj]]
            phase_mats.append(jnp.concatenate(blocks, axis=0))
    w2s = jnp.stack(phase_mats, axis=0).astype(jnp.bfloat16)

    # batch tiling + explicit VMEM budget
    per_elem = (2 * HWo * KC1 * 2                       # p1 block, double-buffered
                + 2 * HWo * 4 * outer_nc * 4            # out block, double-buffered
                + (Ho + 2) * (Wo + 2) * inner_nc * 2    # ypad scratch (bf16)
                + 4 * HWo * max(4 * inner_nc, outer_nc) * 4)   # live intermediates
    B_TILE = _pick_b_tile(N, per_elem)
    weight_bytes = 2 * (KC1 * inner_nc + KSIZE * KSIZE * inner_nc * outer_nc) * 2
    vmem_limit = int(min(max(32 << 20, 2 * (B_TILE * per_elem + weight_bytes)),
                         100 << 20))

    kern = functools.partial(_fused_unet_inner_kernel, bt=B_TILE, ho=Ho, wo=Wo,
                             kc1=KC1, inner_nc=inner_nc, outer_nc=outer_nc)

    ret_ph = pl.pallas_call(
        kern,
        out_shape=jax.ShapeDtypeStruct((N, HWo, 4 * outer_nc), jnp.float32),
        grid=(N // B_TILE,),
        in_specs=[
            pl.BlockSpec((B_TILE, HWo, KC1), lambda b: (b, 0, 0)),
            pl.BlockSpec((KC1, inner_nc), lambda b: (0, 0)),
            pl.BlockSpec((NPHASE, 4 * inner_nc, outer_nc), lambda b: (0, 0, 0)),
        ],
        out_specs=pl.BlockSpec((B_TILE, HWo, 4 * outer_nc), lambda b: (b, 0, 0)),
        scratch_shapes=[pltpu.VMEM((B_TILE, Ho + 2, Wo + 2, inner_nc), jnp.bfloat16)],
        compiler_params=pltpu.CompilerParams(
            dimension_semantics=("parallel",),
            vmem_limit_bytes=vmem_limit),
    )(p1, w1m, w2s)

    # Phase de-interleave straight to NCHW with ONE transpose, then concat.
    ret = ret_ph.reshape(N, Ho, Wo, 2, 2, outer_nc)       # (n, a, b, pi, pj, co)
    ret = jnp.transpose(ret, (0, 5, 1, 3, 2, 4)).reshape(N, outer_nc, H, W)
    return jnp.concatenate([x_f32, ret], axis=1)          # torch.cat([x, ret], 1)


# ----------------------------------------------------------------------------
# Pure-JAX reference (XLA convs) with the same bf16-operand / f32-accum contract
# ----------------------------------------------------------------------------
def reference(x_nchw, w_down, w_up):
    x = x_nchw.astype(jnp.float32)
    h = jnp.where(x >= 0, x, 0.2 * x)
    h = h.astype(jnp.bfloat16).astype(jnp.float32)
    wd = w_down.astype(jnp.bfloat16).astype(jnp.float32)
    wu = w_up.astype(jnp.bfloat16).astype(jnp.float32)
    h = jax.lax.conv_general_dilated(h, wd, (2, 2), ((1, 1), (1, 1)),
                                     dimension_numbers=('NCHW', 'OIHW', 'NCHW'))
    h = jnp.maximum(h, 0.0)
    h = h.astype(jnp.bfloat16).astype(jnp.float32)
    wr = jnp.transpose(wu, (1, 0, 2, 3))[:, :, ::-1, ::-1]
    u = jax.lax.conv_general_dilated(h, wr, (1, 1), ((2, 2), (2, 2)),
                                     lhs_dilation=(2, 2),
                                     dimension_numbers=('NCHW', 'OIHW', 'NCHW'))
    mean = jnp.mean(u, axis=(2, 3), keepdims=True)
    var = jnp.mean((u - mean) ** 2, axis=(2, 3), keepdims=True)
    un = (u - mean) / jnp.sqrt(var + EPS)
    return jnp.concatenate([x, un], axis=1)


if __name__ == "__main__":
    key = jax.random.PRNGKey(0)
    k1, k2, k3, k4 = jax.random.split(key, 4)

    N, input_nc, H, W = 2, 4, 16, 16
    inner_nc, outer_nc = 8, 4

    x = jax.random.normal(k1, (N, input_nc, H, W), jnp.float32)
    mask = jax.random.uniform(k2, (N, 1, H, W), jnp.float32)      # unused (non-RAIN norm)
    w_down = 0.1 * jax.random.normal(k3, (inner_nc, input_nc, KSIZE, KSIZE), jnp.float32)
    w_up = 0.1 * jax.random.normal(k4, (inner_nc, outer_nc, KSIZE, KSIZE), jnp.float32)

    fwd = jax.jit(unet_block_codec_innermost)
    out = jax.block_until_ready(fwd(x, mask, w_down, w_up))

    ref = reference(x, w_down, w_up)
    assert out.shape == (N, input_nc + outer_nc, H, W), out.shape
    max_err = float(jnp.max(jnp.abs(out - ref)))
    assert jnp.allclose(out, ref, atol=1e-2, rtol=1e-2), max_err
    print("KERNEL_OK")
</pallas_src>

<mosaic_0001>
module attributes {stable_mosaic.version = 11 : i64} {
  func.func @_fused_unet_inner_kernel(%arg0: i32, %arg1: memref<2x64x64xbf16, #tpu.memory_space<vmem>>, %arg2: memref<64x8xbf16, #tpu.memory_space<vmem>>, %arg3: memref<4x32x4xbf16, #tpu.memory_space<vmem>>, %arg4: memref<2x64x16xf32, #tpu.memory_space<vmem>>, %arg5: memref<2x10x10x8xbf16, #tpu.memory_space<vmem>>) attributes {dimension_semantics = [#tpu.dimension_semantics<parallel>], iteration_bounds = array<i64: 1>, scalar_prefetch = 0 : i64, scratch_operands = 1 : i64, tpu.core_type = #tpu.core_type<tc>, window_params = [{transform_indices = @transform_0, window_bounds = array<i64: 2, 64, 64>}, {pipeline_mode = #tpu.pipeline_mode<synchronous>, transform_indices = @transform_1, window_bounds = array<i64: 64, 8>}, {pipeline_mode = #tpu.pipeline_mode<synchronous>, transform_indices = @transform_2, window_bounds = array<i64: 4, 32, 4>}, {transform_indices = @transform_3, window_bounds = array<i64: 2, 64, 16>}]} {
    %c0_i32 = arith.constant 0 : i32
    %0 = arith.cmpi eq, %arg0, %c0_i32 : i32
    %1 = arith.extui %0 : i1 to i32
    %c0_i32_0 = arith.constant 0 : i32
    %2 = arith.cmpi ne, %1, %c0_i32_0 : i32
    scf.if %2 {
      %cst_115 = arith.constant 0.000000e+00 : bf16
      %97 = vector.broadcast %cst_115 : bf16 to vector<2x10x10x8xbf16>
      %c0_116 = arith.constant 0 : index
      %c0_117 = arith.constant 0 : index
      %c0_118 = arith.constant 0 : index
      %c0_119 = arith.constant 0 : index
      %98 = vector.load %arg5[%c0_116, %c0_117, %c0_118, %c0_119] : memref<2x10x10x8xbf16, #tpu.memory_space<vmem>>, vector<2x10x10x8xbf16>
      tpu.vector_store %arg5[%c0_116, %c0_117, %c0_118, %c0_119], %97 {strides = array<i32>} : memref<2x10x10x8xbf16, #tpu.memory_space<vmem>>, vector<2x10x10x8xbf16>,
    } else {
    }
    %c0 = arith.constant 0 : index
    %c0_1 = arith.constant 0 : index
    %c0_2 = arith.constant 0 : index
    %3 = vector.load %arg1[%c0, %c0_1, %c0_2] : memref<2x64x64xbf16, #tpu.memory_space<vmem>>, vector<2x64x64xbf16>
    %4 = vector.shape_cast %3 : vector<2x64x64xbf16> to vector<128x64xbf16>
    %c0_3 = arith.constant 0 : index
    %c0_4 = arith.constant 0 : index
    %5 = vector.load %arg2[%c0_3, %c0_4] : memref<64x8xbf16, #tpu.memory_space<vmem>>, vector<64x8xbf16>
    %cst = arith.constant dense<0.000000e+00> : vector<128x8xf32>
    %6 = tpu.matmul %4, %5, %cst {dimension_numbers = #tpu.dot_dimension_numbers<[1], [0], [0], [1], [0, 0, 1, 1], [], []>} : vector<128x64xbf16>, vector<64x8xbf16>, vector<128x8xf32> -> vector<128x8xf32>
    %cst_5 = arith.constant 0.000000e+00 : f32
    %7 = vector.broadcast %cst_5 : f32 to vector<128x8xf32>
    %8 = arith.maximumf %6, %7 : vector<128x8xf32>
    %9 = arith.truncf %8 : vector<128x8xf32> to vector<128x8xbf16>
    %10 = vector.shape_cast %9 : vector<128x8xbf16> to vector<2x8x8x8xbf16>
    %c0_6 = arith.constant 0 : index
    %c1 = arith.constant 1 : index
    %c1_7 = arith.constant 1 : index
    %c0_8 = arith.constant 0 : index
    %11 = vector.load %arg5[%c0_6, %c1, %c1_7, %c0_8] : memref<2x10x10x8xbf16, #tpu.memory_space<vmem>>, vector<2x8x8x8xbf16>
    tpu.vector_store %arg5[%c0_6, %c1, %c1_7, %c0_8], %10 {strides = array<i32>} : memref<2x10x10x8xbf16, #tpu.memory_space<vmem>>, vector<2x8x8x8xbf16>,
    %cst_9 = arith.constant 0.000000e+00 : f32
    %12 = vector.broadcast %cst_9 : f32 to vector<2x4xf32>
    %cst_10 = arith.constant 0.000000e+00 : f32
    %13 = vector.broadcast %cst_10 : f32 to vector<2x4xf32>
    %c0_11 = arith.constant 0 : index
    %c1_12 = arith.constant 1 : index
    %c1_13 = arith.constant 1 : index
    %c0_14 = arith.constant 0 : index
    %14 = vector.load %arg5[%c0_11, %c1_12, %c1_13, %c0_14] : memref<2x10x10x8xbf16, #tpu.memory_space<vmem>>, vector<2x8x8x8xbf16>
    %c0_15 = arith.constant 0 : index
    %c1_16 = arith.constant 1 : index
    %c0_17 = arith.constant 0 : index
    %c0_18 = arith.constant 0 : index
    %15 = vector.load %arg5[%c0_15, %c1_16, %c0_17, %c0_18] : memref<2x10x10x8xbf16, #tpu.memory_space<vmem>>, vector<2x8x8x8xbf16>
    %c0_19 = arith.constant 0 : index
    %c0_20 = arith.constant 0 : index
    %c1_21 = arith.constant 1 : index
    %c0_22 = arith.constant 0 : index
    %16 = vector.load %arg5[%c0_19, %c0_20, %c1_21, %c0_22] : memref<2x10x10x8xbf16, #tpu.memory_space<vmem>>, vector<2x8x8x8xbf16>
    %c0_23 = arith.constant 0 : index
    %c0_24 = arith.constant 0 : index
    %c0_25 = arith.constant 0 : index
    %c0_26 = arith.constant 0 : index
    %17 = vector.load %arg5[%c0_23, %c0_24, %c0_25, %c0_26] : memref<2x10x10x8xbf16, #tpu.memory_space<vmem>>, vector<2x8x8x8xbf16>
    %18 = tpu.concatenate %14, %15, %16, %17 in 3 : vector<2x8x8x8xbf16>, vector<2x8x8x8xbf16>, vector<2x8x8x8xbf16>, vector<2x8x8x8xbf16> -> vector<2x8x8x32xbf16>
    %19 = vector.shape_cast %18 : vector<2x8x8x32xbf16> to vector<128x32xbf16>
    %c0_27 = arith.constant 0 : index
    %c0_28 = arith.constant 0 : index
    %c0_29 = arith.constant 0 : index
    %20 = vector.load %arg3[%c0_27, %c0_28, %c0_29] : memref<4x32x4xbf16, #tpu.memory_space<vmem>>, vector<1x32x4xbf16>
    %21 = vector.shape_cast %20 : vector<1x32x4xbf16> to vector<32x4xbf16>
    %cst_30 = arith.constant dense<0.000000e+00> : vector<128x4xf32>
    %22 = tpu.matmul %19, %21, %cst_30 {dimension_numbers = #tpu.dot_dimension_numbers<[1], [0], [0], [1], [0, 0, 1, 1], [], []>} : vector<128x32xbf16>, vector<32x4xbf16>, vector<128x4xf32> -> vector<128x4xf32>
    %23 = vector.shape_cast %22 : vector<128x4xf32> to vector<2x64x4xf32>
    %cst_31 = arith.constant dense<0.000000e+00> : vector<2x4xf32>
    %24 = vector.multi_reduction <add>, %23, %cst_31 [1] : vector<2x64x4xf32> to vector<2x4xf32>
    %25 = arith.addf %12, %24 : vector<2x4xf32>
    %26 = arith.mulf %23, %23 : vector<2x64x4xf32>
    %cst_32 = arith.constant dense<0.000000e+00> : vector<2x4xf32>
    %27 = vector.multi_reduction <add>, %26, %cst_32 [1] : vector<2x64x4xf32> to vector<2x4xf32>
    %28 = arith.addf %13, %27 : vector<2x4xf32>
    %c0_33 = arith.constant 0 : index
    %c0_34 = arith.constant 0 : index
    %c0_35 = arith.constant 0 : index
    %29 = vector.load %arg4[%c0_33, %c0_34, %c0_35] : memref<2x64x16xf32, #tpu.memory_space<vmem>>, vector<2x64x4xf32>
    tpu.vector_store %arg4[%c0_33, %c0_34, %c0_35], %23 {strides = array<i32>} : memref<2x64x16xf32, #tpu.memory_space<vmem>>, vector<2x64x4xf32>,
    %c0_36 = arith.constant 0 : index
    %c1_37 = arith.constant 1 : index
    %c2 = arith.constant 2 : index
    %c0_38 = arith.constant 0 : index
    %30 = vector.load %arg5[%c0_36, %c1_37, %c2, %c0_38] : memref<2x10x10x8xbf16, #tpu.memory_space<vmem>>, vector<2x8x8x8xbf16>
    %c0_39 = arith.constant 0 : index
    %c1_40 = arith.constant 1 : index
    %c1_41 = arith.constant 1 : index
    %c0_42 = arith.constant 0 : index
    %31 = vector.load %arg5[%c0_39, %c1_40, %c1_41, %c0_42] : memref<2x10x10x8xbf16, #tpu.memory_space<vmem>>, vector<2x8x8x8xbf16>
    %c0_43 = arith.constant 0 : index
    %c0_44 = arith.constant 0 : index
    %c2_45 = arith.constant 2 : index
    %c0_46 = arith.constant 0 : index
    %32 = vector.load %arg5[%c0_43, %c0_44, %c2_45, %c0_46] : memref<2x10x10x8xbf16, #tpu.memory_space<vmem>>, vector<2x8x8x8xbf16>
    %c0_47 = arith.constant 0 : index
    %c0_48 = arith.constant 0 : index
    %c1_49 = arith.constant 1 : index
    %c0_50 = arith.constant 0 : index
    %33 = vector.load %arg5[%c0_47, %c0_48, %c1_49, %c0_50] : memref<2x10x10x8xbf16, #tpu.memory_space<vmem>>, vector<2x8x8x8xbf16>
    %34 = tpu.concatenate %30, %31, %32, %33 in 3 : vector<2x8x8x8xbf16>, vector<2x8x8x8xbf16>, vector<2x8x8x8xbf16>, vector<2x8x8x8xbf16> -> vector<2x8x8x32xbf16>
    %35 = vector.shape_cast %34 : vector<2x8x8x32xbf16> to vector<128x32xbf16>
    %c1_51 = arith.constant 1 : index
    %c0_52 = arith.constant 0 : index
    %c0_53 = arith.constant 0 : index
    %36 = vector.load %arg3[%c1_51, %c0_52, %c0_53] : memref<4x32x4xbf16, #tpu.memory_space<vmem>>, vector<1x32x4xbf16>
    %37 = vector.shape_cast %36 : vector<1x32x4xbf16> to vector<32x4xbf16>
    %cst_54 = arith.constant dense<0.000000e+00> : vector<128x4xf32>
    %38 = tpu.matmul %35, %37, %cst_54 {dimension_numbers = #tpu.dot_dimension_numbers<[1], [0], [0], [1], [0, 0, 1, 1], [], []>} : vector<128x32xbf16>, vector<32x4xbf16>, vector<128x4xf32> -> vector<128x4xf32>
    %39 = vector.shape_cast %38 : vector<128x4xf32> to vector<2x64x4xf32>
    %cst_55 = arith.constant dense<0.000000e+00> : vector<2x4xf32>
    %40 = vector.multi_reduction <add>, %39, %cst_55 [1] : vector<2x64x4xf32> to vector<2x4xf32>
    %41 = arith.addf %25, %40 : vector<2x4xf32>
    %42 = arith.mulf %39, %39 : vector<2x64x4xf32>
    %cst_56 = arith.constant dense<0.000000e+00> : vector<2x4xf32>
    %43 = vector.multi_reduction <add>, %42, %cst_56 [1] : vector<2x64x4xf32> to vector<2x4xf32>
    %44 = arith.addf %28, %43 : vector<2x4xf32>
    %c0_57 = arith.constant 0 : index
    %c0_58 = arith.constant 0 : index
    %c4 = arith.constant 4 : index
    %45 = vector.load %arg4[%c0_57, %c0_58, %c4] : memref<2x64x16xf32, #tpu.memory_space<vmem>>, vector<2x64x4xf32>
    tpu.vector_store %arg4[%c0_57, %c0_58, %c4], %39 {strides = array<i32>} : memref<2x64x16xf32, #tpu.memory_space<vmem>>, vector<2x64x4xf32>,
    %c0_59 = arith.constant 0 : index
    %c2_60 = arith.constant 2 : index
    %c1_61 = arith.constant 1 : index
    %c0_62 = arith.constant 0 : index
    %46 = vector.load %arg5[%c0_59, %c2_60, %c1_61, %c0_62] : memref<2x10x10x8xbf16, #tpu.memory_space<vmem>>, vector<2x8x8x8xbf16>
    %c0_63 = arith.constant 0 : index
    %c2_64 = arith.constant 2 : index
    %c0_65 = arith.constant 0 : index
    %c0_66 = arith.constant 0 : index
    %47 = vector.load %arg5[%c0_63, %c2_64, %c0_65, %c0_66] : memref<2x10x10x8xbf16, #tpu.memory_space<vmem>>, vector<2x8x8x8xbf16>
    %c0_67 = arith.constant 0 : index
    %c1_68 = arith.constant 1 : index
    %c1_69 = arith.constant 1 : index
    %c0_70 = arith.constant 0 : index
    %48 = vector.load %arg5[%c0_67, %c1_68, %c1_69, %c0_70] : memref<2x10x10x8xbf16, #tpu.memory_space<vmem>>, vector<2x8x8x8xbf16>
    %c0_71 = arith.constant 0 : index
    %c1_72 = arith.constant 1 : index
    %c0_73 = arith.constant 0 : index
    %c0_74 = arith.constant 0 : index
    %49 = vector.load %arg5[%c0_71, %c1_72, %c0_73, %c0_74] : memref<2x10x10x8xbf16, #tpu.memory_space<vmem>>, vector<2x8x8x8xbf16>
    %50 = tpu.concatenate %46, %47, %48, %49 in 3 : vector<2x8x8x8xbf16>, vector<2x8x8x8xbf16>, vector<2x8x8x8xbf16>, vector<2x8x8x8xbf16> -> vector<2x8x8x32xbf16>
    %51 = vector.shape_cast %50 : vector<2x8x8x32xbf16> to vector<128x32xbf16>
    %c2_75 = arith.constant 2 : index
    %c0_76 = arith.constant 0 : index
    %c0_77 = arith.constant 0 : index
    %52 = vector.load %arg3[%c2_75, %c0_76, %c0_77] : memref<4x32x4xbf16, #tpu.memory_space<vmem>>, vector<1x32x4xbf16>
    %53 = vector.shape_cast %52 : vector<1x32x4xbf16> to vector<32x4xbf16>
    %cst_78 = arith.constant dense<0.000000e+00> : vector<128x4xf32>
    %54 = tpu.matmul %51, %53, %cst_78 {dimension_numbers = #tpu.dot_dimension_numbers<[1], [0], [0], [1], [0, 0, 1, 1], [], []>} : vector<128x32xbf16>, vector<32x4xbf16>, vector<128x4xf32> -> vector<128x4xf32>
    %55 = vector.shape_cast %54 : vector<128x4xf32> to vector<2x64x4xf32>
    %cst_79 = arith.constant dense<0.000000e+00> : vector<2x4xf32>
    %56 = vector.multi_reduction <add>, %55, %cst_79 [1] : vector<2x64x4xf32> to vector<2x4xf32>
    %57 = arith.addf %41, %56 : vector<2x4xf32>
    %58 = arith.mulf %55, %55 : vector<2x64x4xf32>
    %cst_80 = arith.constant dense<0.000000e+00> : vector<2x4xf32>
    %59 = vector.multi_reduction <add>, %58, %cst_80 [1] : vector<2x64x4xf32> to vector<2x4xf32>
    %60 = arith.addf %44, %59 : vector<2x4xf32>
    %c0_81 = arith.constant 0 : index
    %c0_82 = arith.constant 0 : index
    %c8 = arith.constant 8 : index
    %61 = vector.load %arg4[%c0_81, %c0_82, %c8] : memref<2x64x16xf32, #tpu.memory_space<vmem>>, vector<2x64x4xf32>
    tpu.vector_store %arg4[%c0_81, %c0_82, %c8], %55 {strides = array<i32>} : memref<2x64x16xf32, #tpu.memory_space<vmem>>, vector<2x64x4xf32>,
    %c0_83 = arith.constant 0 : index
    %c2_84 = arith.constant 2 : index
    %c2_85 = arith.constant 2 : index
    %c0_86 = arith.constant 0 : index
    %62 = vector.load %arg5[%c0_83, %c2_84, %c2_85, %c0_86] : memref<2x10x10x8xbf16, #tpu.memory_space<vmem>>, vector<2x8x8x8xbf16>
    %c0_87 = arith.constant 0 : index
    %c2_88 = arith.constant 2 : index
    %c1_89 = arith.constant 1 : index
    %c0_90 = arith.constant 0 : index
    %63 = vector.load %arg5[%c0_87, %c2_88, %c1_89, %c0_90] : memref<2x10x10x8xbf16, #tpu.memory_space<vmem>>, vector<2x8x8x8xbf16>
    %c0_91 = arith.constant 0 : index
    %c1_92 = arith.constant 1 : index
    %c2_93 = arith.constant 2 : index
    %c0_94 = arith.constant 0 : index
    %64 = vector.load %arg5[%c0_91, %c1_92, %c2_93, %c0_94] : memref<2x10x10x8xbf16, #tpu.memory_space<vmem>>, vector<2x8x8x8xbf16>
    %c0_95 = arith.constant 0 : index
    %c1_96 = arith.constant 1 : index
    %c1_97 = arith.constant 1 : index
    %c0_98 = arith.constant 0 : index
    %65 = vector.load %arg5[%c0_95, %c1_96, %c1_97, %c0_98] : memref<2x10x10x8xbf16, #tpu.memory_space<vmem>>, vector<2x8x8x8xbf16>
    %66 = tpu.concatenate %62, %63, %64, %65 in 3 : vector<2x8x8x8xbf16>, vector<2x8x8x8xbf16>, vector<2x8x8x8xbf16>, vector<2x8x8x8xbf16> -> vector<2x8x8x32xbf16>
    %67 = vector.shape_cast %66 : vector<2x8x8x32xbf16> to vector<128x32xbf16>
    %c3 = arith.constant 3 : index
    %c0_99 = arith.constant 0 : index
    %c0_100 = arith.constant 0 : index
    %68 = vector.load %arg3[%c3, %c0_99, %c0_100] : memref<4x32x4xbf16, #tpu.memory_space<vmem>>, vector<1x32x4xbf16>
    %69 = vector.shape_cast %68 : vector<1x32x4xbf16> to vector<32x4xbf16>
    %cst_101 = arith.constant dense<0.000000e+00> : vector<128x4xf32>
    %70 = tpu.matmul %67, %69, %cst_101 {dimension_numbers = #tpu.dot_dimension_numbers<[1], [0], [0], [1], [0, 0, 1, 1], [], []>} : vector<128x32xbf16>, vector<32x4xbf16>, vector<128x4xf32> -> vector<128x4xf32>
    %71 = vector.shape_cast %70 : vector<128x4xf32> to vector<2x64x4xf32>
    %cst_102 = arith.constant dense<0.000000e+00> : vector<2x4xf32>
    %72 = vector.multi_reduction <add>, %71, %cst_102 [1] : vector<2x64x4xf32> to vector<2x4xf32>
    %73 = arith.addf %57, %72 : vector<2x4xf32>
    %74 = arith.mulf %71, %71 : vector<2x64x4xf32>
    %cst_103 = arith.constant dense<0.000000e+00> : vector<2x4xf32>
    %75 = vector.multi_reduction <add>, %74, %cst_103 [1] : vector<2x64x4xf32> to vector<2x4xf32>
    %76 = arith.addf %60, %75 : vector<2x4xf32>
    %c0_104 = arith.constant 0 : index
    %c0_105 = arith.constant 0 : index
    %c12 = arith.constant 12 : index
    %77 = vector.load %arg4[%c0_104, %c0_105, %c12] : memref<2x64x16xf32, #tpu.memory_space<vmem>>, vector<2x64x4xf32>
    tpu.vector_store %arg4[%c0_104, %c0_105, %c12], %71 {strides = array<i32>} : memref<2x64x16xf32, #tpu.memory_space<vmem>>, vector<2x64x4xf32>,
    %cst_106 = arith.constant 2.560000e+02 : f32
    %78 = vector.broadcast %cst_106 : f32 to vector<2x4xf32>
    %79 = arith.divf %73, %78 : vector<2x4xf32>
    %cst_107 = arith.constant 2.560000e+02 : f32
    %80 = vector.broadcast %cst_107 : f32 to vector<2x4xf32>
    %81 = arith.divf %76, %80 : vector<2x4xf32>
    %82 = arith.mulf %79, %79 : vector<2x4xf32>
    %83 = arith.subf %81, %82 : vector<2x4xf32>
    %cst_108 = arith.constant 9.99999974E-6 : f32
    %84 = vector.broadcast %cst_108 : f32 to vector<2x4xf32>
    %85 = arith.addf %83, %84 : vector<2x4xf32>
    %86 = math.rsqrt %85 : vector<2x4xf32>
    %87 = tpu.concatenate %79, %79, %79, %79 in 1 : vector<2x4xf32>, vector<2x4xf32>, vector<2x4xf32>, vector<2x4xf32> -> vector<2x16xf32>
    %88 = vector.shape_cast %87 : vector<2x16xf32> to vector<2x1x16xf32>
    %89 = tpu.concatenate %86, %86, %86, %86 in 1 : vector<2x4xf32>, vector<2x4xf32>, vector<2x4xf32>, vector<2x4xf32> -> vector<2x16xf32>
    %90 = vector.shape_cast %89 : vector<2x16xf32> to vector<2x1x16xf32>
    %c0_109 = arith.constant 0 : index
    %c0_110 = arith.constant 0 : index
    %c0_111 = arith.constant 0 : index
    %91 = vector.load %arg4[%c0_109, %c0_110, %c0_111] : memref<2x64x16xf32, #tpu.memory_space<vmem>>, vector<2x64x16xf32>
    %92 = vector.broadcast %88 : vector<2x1x16xf32> to vector<2x64x16xf32>
    %93 = arith.subf %91, %92 : vector<2x64x16xf32>
    %94 = vector.broadcast %90 : vector<2x1x16xf32> to vector<2x64x16xf32>
    %95 = arith.mulf %93, %94 : vector<2x64x16xf32>
    %c0_112 = arith.constant 0 : index
    %c0_113 = arith.constant 0 : index
    %c0_114 = arith.constant 0 : index
    %96 = vector.load %arg4[%c0_112, %c0_113, %c0_114] : memref<2x64x16xf32, #tpu.memory_space<vmem>>, vector<2x64x16xf32>
    tpu.vector_store %arg4[%c0_112, %c0_113, %c0_114], %95 {strides = array<i32>} : memref<2x64x16xf32, #tpu.memory_space<vmem>>, vector<2x64x16xf32>,
    return
  }
  func.func @transform_0(%arg0: i32) -> (i32, i32, i32) {
    %c0_i32 = arith.constant 0 : i32
    %c0_i32_0 = arith.constant 0 : i32
    %c0_i32_1 = arith.constant 0 : i32
    return %arg0, %c0_i32, %c0_i32_0 : i32, i32, i32
  }
  func.func @transform_1(%arg0: i32) -> (i32, i32) {
    %c0_i32 = arith.constant 0 : i32
    %c0_i32_0 = arith.constant 0 : i32
    %c0_i32_1 = arith.constant 0 : i32
    return %c0_i32, %c0_i32_0 : i32, i32
  }
  func.func @transform_2(%arg0: i32) -> (i32, i32, i32) {
    %c0_i32 = arith.constant 0 : i32
    %c0_i32_0 = arith.constant 0 : i32
    %c0_i32_1 = arith.constant 0 : i32
    %c0_i32_2 = arith.constant 0 : i32
    return %c0_i32, %c0_i32_0, %c0_i32_1 : i32, i32, i32
  }
  func.func @transform_3(%arg0: i32) -> (i32, i32, i32) {
    %c0_i32 = arith.constant 0 : i32
    %c0_i32_0 = arith.constant 0 : i32
    %c0_i32_1 = arith.constant 0 : i32
    return %arg0, %c0_i32, %c0_i32_0 : i32, i32, i32
  }
}

</mosaic_0001>

<llo_original>
// kernel: unet_block_codec_innermost.1
$region0: #{unet_block_codec_innermost.1}
  #allocation0 [shape = 'u32[]', space=smem, size = 0x4, offset = 0x4, fixed_abs, tag = 'smem constant byte address 0x4 - core index']
  #allocation1 [shape = 'u32[144,128]{1,0:T(1,128)}', space=vmem, size = 0x12000, scoped, tag = 'internal scratch']
  #allocation2 [shape = 'bf16[2,10,10,8]{3,2,1,0:T(8,128)(2,1)}', space=vmem, size = 0x14000, scoped, tag = 'scratch operand']
  %s0 = inlined_call_operand.vmem [shape: bf16[2,64,64], index: 0, kind: input, shape index: {}]
  %s1 = inlined_call_operand.vmem [shape: bf16[64,8], index: 1, kind: input, shape index: {}]
  %s2 = inlined_call_operand.vmem [shape: bf16[4,32,4], index: 2, kind: input, shape index: {}]
  %s3 = inlined_call_operand.vmem [shape: f32[2,64,16], index: 3, kind: output, shape index: {}]
  %s4 = sld [smem:[#allocation0]]
  $region26: #{unet_block_codec_innermost.1} parent=0
    _
  %s6 = ssub.s32 1, %s4
  %s7 = scalar_select 0, %s6, %s4
  // Predicated region
  $region2: #{unet_block_codec_innermost.1} parent=0 // pred_check
    _
  $region3: #{unet_block_codec_innermost.1} parent=0 // pred_check_branch
    %9 = sbr.rel (0) target = $region5
  $region4: #{unet_block_codec_innermost.1} parent=0 // pred_region
    _
  $region5: #{unet_block_codec_innermost.1} parent=0 // pred_fallthru
    _
  // Predicated region
  $region6: #{unet_block_codec_innermost.1} parent=0 // pred_check
    _
  $region7: #{unet_block_codec_innermost.1} parent=0 // pred_check_branch
    %11 = sbr.rel (0) target = $region9
  $region8: #{unet_block_codec_innermost.1} parent=0 // pred_region
    _
  $region9: #{unet_block_codec_innermost.1} parent=0 // pred_fallthru
    _
  // Predicated region
  $region10: #{unet_block_codec_innermost.1} parent=0 // pred_check
    _
  $region11: #{unet_block_codec_innermost.1} parent=0 // pred_check_branch
    %13 = sbr.rel (0) target = $region13
  $region12: #{unet_block_codec_innermost.1} parent=0 // pred_region
    _
  $region13: #{unet_block_codec_innermost.1} parent=0 // pred_fallthru
    _
  %p15 = scmp.eq.s32.totalorder 0, 0
  // Predicated region
  $region14: #{unet_block_codec_innermost.1} parent=0 // pred_check
    %p16 = pneg %p15
  $region15: #{unet_block_codec_innermost.1} parent=0 // pred_check_branch
    %18 = sbr.rel (%p16) target = $region17
  $region16: #{unet_block_codec_innermost.1} parent=0 // pred_region
    %vm19 = vcmask 60416
    %20 = vst.msk [vmem:[#allocation2] sm:$0xf] %vm19, 0
    %vm21 = vcmask 57344
    %22 = vst.msk [vmem:[#allocation2 + $0x4] sm:$0x1] %vm21, 0
    %23 = vst.msk [vmem:[#allocation2 + $0x8] sm:$0xf] %vm19, 0
    %24 = vst.msk [vmem:[#allocation2 + $0xc] sm:$0x1] %vm21, 0
    %25 = vst.msk [vmem:[#allocation2 + $0x10] sm:$0xf] %vm19, 0
    %26 = vst.msk [vmem:[#allocation2 + $0x14] sm:$0x1] %vm21, 0
    %27 = vst.msk [vmem:[#allocation2 + $0x18] sm:$0xf] %vm19, 0
    %28 = vst.msk [vmem:[#allocation2 + $0x1c] sm:$0x1] %vm21, 0
    %29 = vst.msk [vmem:[#allocation2 + $0x20] sm:$0xf] %vm19, 0
    %30 = vst.msk [vmem:[#allocation2 + $0x24] sm:$0x1] %vm21, 0
    %31 = vst.msk [vmem:[#allocation2 + $0x28] sm:$0xf] %vm19, 0
    %32 = vst.msk [vmem:[#allocation2 + $0x2c] sm:$0x1] %vm21, 0
    %33 = vst.msk [vmem:[#allocation2 + $0x30] sm:$0xf] %vm19, 0
    %34 = vst.msk [vmem:[#allocation2 + $0x34] sm:$0x1] %vm21, 0
    %35 = vst.msk [vmem:[#allocation2 + $0x38] sm:$0xf] %vm19, 0
    %36 = vst.msk [vmem:[#allocation2 + $0x3c] sm:$0x1] %vm21, 0
    %37 = vst.msk [vmem:[#allocation2 + $0x40] sm:$0xf] %vm19, 0
    %38 = vst.msk [vmem:[#allocation2 + $0x44] sm:$0x1] %vm21, 0
    %39 = vst.msk [vmem:[#allocation2 + $0x48] sm:$0xf] %vm19, 0
    %40 = vst.msk [vmem:[#allocation2 + $0x4c] sm:$0x1] %vm21, 0
    %41 = vst.msk [vmem:[#allocation2 + $0x50] sm:$0xf] %vm19, 0
    %42 = vst.msk [vmem:[#allocation2 + $0x54] sm:$0x1] %vm21, 0
    %43 = vst.msk [vmem:[#allocation2 + $0x58] sm:$0xf] %vm19, 0
    %44 = vst.msk [vmem:[#allocation2 + $0x5c] sm:$0x1] %vm21, 0
    %45 = vst.msk [vmem:[#allocation2 + $0x60] sm:$0xf] %vm19, 0
    %46 = vst.msk [vmem:[#allocation2 + $0x64] sm:$0x1] %vm21, 0
    %47 = vst.msk [vmem:[#allocation2 + $0x68] sm:$0xf] %vm19, 0
    %48 = vst.msk [vmem:[#allocation2 + $0x6c] sm:$0x1] %vm21, 0
    %49 = vst.msk [vmem:[#allocation2 + $0x70] sm:$0xf] %vm19, 0
    %50 = vst.msk [vmem:[#allocation2 + $0x74] sm:$0x1] %vm21, 0
    %51 = vst.msk [vmem:[#allocation2 + $0x78] sm:$0xf] %vm19, 0
    %52 = vst.msk [vmem:[#allocation2 + $0x7c] sm:$0x1] %vm21, 0
    %53 = vst.msk [vmem:[#allocation2 + $0x80] sm:$0xf] %vm19, 0
    %54 = vst.msk [vmem:[#allocation2 + $0x84] sm:$0x1] %vm21, 0
    %55 = vst.msk [vmem:[#allocation2 + $0x88] sm:$0xf] %vm19, 0
    %56 = vst.msk [vmem:[#allocation2 + $0x8c] sm:$0x1] %vm21, 0
    %57 = vst.msk [vmem:[#allocation2 + $0x90] sm:$0xf] %vm19, 0
    %58 = vst.msk [vmem:[#allocation2 + $0x94] sm:$0x1] %vm21, 0
    %59 = vst.msk [vmem:[#allocation2 + $0x98] sm:$0xf] %vm19, 0
    %60 = vst.msk [vmem:[#allocation2 + $0x9c] sm:$0x1] %vm21, 0
  $region17: #{unet_block_codec_innermost.1} parent=0 // pred_fallthru
    _
  %v61 = vld [vmem:[%s0] sm:$0xf]
  %v62 = vld [vmem:[%s0 + $0x4] sm:$0xf]
  %v63 = vld [vmem:[%s0 + $0x8] sm:$0xf]
  %v64 = vld [vmem:[%s0 + $0xc] sm:$0xf]
  %v65 = vld [vmem:[%s0 + $0x10] sm:$0xf]
  %v66 = vld [vmem:[%s0 + $0x14] sm:$0xf]
  %v67 = vld [vmem:[%s0 + $0x18] sm:$0xf]
  %v68 = vld [vmem:[%s0 + $0x1c] sm:$0xf]
  %v69 = vld [vmem:[%s0 + $0x20] sm:$0xf]
  %v70 = vld [vmem:[%s0 + $0x24] sm:$0xf]
  %v71 = vld [vmem:[%s0 + $0x28] sm:$0xf]
  %v72 = vld [vmem:[%s0 + $0x2c] sm:$0xf]
  %v73 = vld [vmem:[%s0 + $0x30] sm:$0xf]
  %v74 = vld [vmem:[%s0 + $0x34] sm:$0xf]
  %v75 = vld [vmem:[%s0 + $0x38] sm:$0xf]
  %v76 = vld [vmem:[%s0 + $0x3c] sm:$0xf]
  %v77 = vld [vmem:[%s1] sm:$0xf]
  %v78 = vld [vmem:[%s1 + $0x4] sm:$0xf]
  %v79 = vld [vmem:[%s1 + $0x8] sm:$0xf]
  %v80 = vld [vmem:[%s1 + $0xc] sm:$0xf]
  %v81 = vld [vmem:[%s1 + $0x10] sm:$0xf]
  %v82 = vld [vmem:[%s1 + $0x14] sm:$0xf]
  %v83 = vld [vmem:[%s1 + $0x18] sm:$0xf]
  %v84 = vld [vmem:[%s1 + $0x1c] sm:$0xf]
  %v101 = vunpack.c.l.b16 %v61
  %v102 = vunpack.c.l.b16 %v62
  %v103 = vunpack.c.l.b16 %v63
  %v104 = vunpack.c.l.b16 %v64
  %v105 = vunpack.c.l.b16 %v65
  %v106 = vunpack.c.l.b16 %v66
  %v107 = vunpack.c.l.b16 %v67
  %v108 = vunpack.c.l.b16 %v68
  %v109 = vunpack.c.l.b16 %v69
  %v110 = vunpack.c.l.b16 %v70
  %v111 = vunpack.c.l.b16 %v71
  %v112 = vunpack.c.l.b16 %v72
  %v113 = vunpack.c.l.b16 %v73
  %v114 = vunpack.c.l.b16 %v74
  %v115 = vunpack.c.l.b16 %v75
  %v116 = vunpack.c.l.b16 %v76
  %v117 = vpack.c.b16 %v102, %v101
  %v118 = vpack.c.b16 %v104, %v103
  %v119 = vpack.c.b16 %v106, %v105
  %v120 = vpack.c.b16 %v108, %v107
  %v121 = vpack.c.b16 %v110, %v109
  %v122 = vpack.c.b16 %v112, %v111
  %v123 = vpack.c.b16 %v114, %v113
  %v124 = vpack.c.b16 %v116, %v115
  %v133 = vunpack.c.l.b16 %v77
  %v134 = vunpack.c.l.b16 %v78
  %v135 = vunpack.c.l.b16 %v79
  %v136 = vunpack.c.l.b16 %v80
  %v137 = vunpack.c.l.b16 %v81
  %v138 = vunpack.c.l.b16 %v82
  %v139 = vunpack.c.l.b16 %v83
  %v140 = vunpack.c.l.b16 %v84
  %v141 = vpack.c.b16 %v134, %v133
  %v142 = vpack.c.b16 %v136, %v135
  %v143 = vpack.c.b16 %v138, %v137
  %v144 = vpack.c.b16 %v140, %v139
  %vm149 = vcmask 523264
  %v151 = vsel %vm149, %v117, 0
  %v154 = vsel %vm149, %v118, 0
  %v157 = vsel %vm149, %v119, 0
  %v160 = vsel %vm149, %v120, 0
  %v163 = vsel %vm149, %v121, 0
  %v166 = vsel %vm149, %v122, 0
  %v169 = vsel %vm149, %v123, 0
  %v172 = vsel %vm149, %v124, 0
  %174 = vmatprep.subr.bf16.mxu0 0
  %175 = vmatpush1.bf16.msra.mxu0 %v141
  %176 = vmatprep.subr.bf16.mxu0 0
  %177 = vmatpush1.bf16.msra.mxu0 %v142
  %178 = vmatprep.subr.bf16.mxu0 0
  %179 = vmatpush1.bf16.msra.mxu0 %v143
  %180 = vmatprep.subr.bf16.mxu0 0
  %181 = vmatpush1.bf16.msra.mxu0 %v144
  %182 = vmatprep.subr.bf16.mxu0 0
  %183 = vmatpush1.bf16.msra.mxu0 0
  %184 = vmatprep.subr.bf16.mxu0 0
  %185 = vmatpush1.bf16.msra.mxu0 0
  %186 = vmatprep.subr.bf16.mxu0 0
  %187 = vmatpush1.bf16.msra.mxu0 0
  %188 = vmatprep.subr.bf16.mxu0 0
  %189 = vmatpush1.bf16.msra.mxu0 0
  %190 = vmatprep.subr.bf16.mxu0 0
  %191 = vmatpush1.bf16.msra.mxu0 0
  %192 = vmatprep.subr.bf16.mxu0 0
  %193 = vmatpush1.bf16.msra.mxu0 0
  %194 = vmatprep.subr.bf16.mxu0 0
  %195 = vmatpush1.bf16.msra.mxu0 0
  %196 = vmatprep.subr.bf16.mxu0 0
  %197 = vmatpush1.bf16.msra.mxu0 0
  %198 = vmatprep.subr.bf16.mxu0 0
  %199 = vmatpush1.bf16.msra.mxu0 0
  %200 = vmatprep.subr.bf16.mxu0 0
  %201 = vmatpush1.bf16.msra.mxu0 0
  %202 = vmatprep.subr.bf16.mxu0 0
  %203 = vmatpush1.bf16.msra.mxu0 0
  %204 = vmatprep.subr.bf16.mxu0 0
  %205 = vmatpush1.bf16.msra.mxu0 0
  %206 = vmatprep.mubr.bf16.mxu0 0
  %207 = vmatmul.mubr.bf16.gmra.mrb[0].mxu0 %v151
  %v208 = vpop.f32.mrb[0].mxu0
  %v209 = vadd.f32 0.0, %v208
  %v210 = vpop.f32.mrb[0].mxu0
  %v211 = vpop.f32.mrb[0].mxu0
  %v212 = vadd.f32 0.0, %v211
  %v213 = vpop.f32.mrb[0].mxu0
  %214 = vmatprep.mubr.bf16.mxu0 0
  %215 = vmatmul.mubr.bf16.gmra.mrb[0].mxu0 %v154
  %v216 = vpop.f32.mrb[0].mxu0
  %v217 = vadd.f32 0.0, %v216
  %v218 = vpop.f32.mrb[0].mxu0
  %v219 = vpop.f32.mrb[0].mxu0
  %v220 = vadd.f32 0.0, %v219
  %v221 = vpop.f32.mrb[0].mxu0
  %222 = vmatprep.mubr.bf16.mxu0 0
  %223 = vmatmul.mubr.bf16.gmra.mrb[0].mxu0 %v157
  %v224 = vpop.f32.mrb[0].mxu0
  %v225 = vadd.f32 0.0, %v224
  %v226 = vpop.f32.mrb[0].mxu0
  %v227 = vpop.f32.mrb[0].mxu0
  %v228 = vadd.f32 0.0, %v227
  %v229 = vpop.f32.mrb[0].mxu0
  %230 = vmatprep.mubr.bf16.mxu0 0
  %231 = vmatmul.mubr.bf16.gmra.mrb[0].mxu0 %v160
  %v232 = vpop.f32.mrb[0].mxu0
  %v233 = vadd.f32 0.0, %v232
  %v234 = vpop.f32.mrb[0].mxu0
  %v235 = vpop.f32.mrb[0].mxu0
  %v236 = vadd.f32 0.0, %v235
  %v237 = vpop.f32.mrb[0].mxu0
  %238 = vmatprep.mubr.bf16.mxu0 0
  %239 = vmatmul.mubr.bf16.gmra.mrb[0].mxu0 %v163
  %v240 = vpop.f32.mrb[0].mxu0
  %v241 = vadd.f32 0.0, %v240
  %v242 = vpop.f32.mrb[0].mxu0
  %v243 = vpop.f32.mrb[0].mxu0
  %v244 = vadd.f32 0.0, %v243
  %v245 = vpop.f32.mrb[0].mxu0
  %246 = vmatprep.mubr.bf16.mxu0 0
  %247 = vmatmul.mubr.bf16.gmra.mrb[0].mxu0 %v166
  %v248 = vpop.f32.mrb[0].mxu0
  %v249 = vadd.f32 0.0, %v248
  %v250 = vpop.f32.mrb[0].mxu0
  %v251 = vpop.f32.mrb[0].mxu0
  %v252 = vadd.f32 0.0, %v251
  %v253 = vpop.f32.mrb[0].mxu0
  %254 = vmatprep.mubr.bf16.mxu0 0
  %255 = vmatmul.mubr.bf16.gmra.mrb[0].mxu0 %v169
  %v256 = vpop.f32.mrb[0].mxu0
  %v257 = vadd.f32 0.0, %v256
  %v258 = vpop.f32.mrb[0].mxu0
  %v259 = vpop.f32.mrb[0].mxu0
  %v260 = vadd.f32 0.0, %v259
  %v261 = vpop.f32.mrb[0].mxu0
  %262 = vmatprep.mubr.bf16.mxu0 0
  %263 = vmatmul.mubr.bf16.gmra.mrb[0].mxu0 %v172
  %v264 = vpop.f32.mrb[0].mxu0
  %v265 = vadd.f32 0.0, %v264
  %v266 = vpop.f32.mrb[0].mxu0
  %v267 = vpop.f32.mrb[0].mxu0
  %v268 = vadd.f32 0.0, %v267
  %v269 = vpop.f32.mrb[0].mxu0
  %270 = vdwg.mxu0
  %v271 = vmax.f32 %v209, 0.0
  %v272 = vmax.f32 %v212, 0.0
  %v273 = vmax.f32 %v217, 0.0
  %v274 = vmax.f32 %v220, 0.0
  %v275 = vmax.f32 %v225, 0.0
  %v276 = vmax.f32 %v228, 0.0
  %v277 = vmax.f32 %v233, 0.0
  %v278 = vmax.f32 %v236, 0.0
  %v279 = vmax.f32 %v241, 0.0
  %v280 = vmax.f32 %v244, 0.0
  %v281 = vmax.f32 %v249, 0.0
  %v282 = vmax.f32 %v252, 0.0
  %v283 = vmax.f32 %v257, 0.0
  %v284 = vmax.f32 %v260, 0.0
  %v285 = vmax.f32 %v265, 0.0
  %v286 = vmax.f32 %v268, 0.0
  %v287 = vpack.c.bf16 %v272, %v271
  %v288 = vpack.c.bf16 %v274, %v273
  %v289 = vpack.c.bf16 %v276, %v275
  %v290 = vpack.c.bf16 %v278, %v277
  %v291 = vpack.c.bf16 %v280, %v279
  %v292 = vpack.c.bf16 %v282, %v281
  %v293 = vpack.c.bf16 %v284, %v283
  %v294 = vpack.c.bf16 %v286, %v285
  %v303 = vunpack.c.l.b16 %v287
  %v304 = vunpack.c.h.b16 %v287
  %v305 = vunpack.c.l.b16 %v288
  %v306 = vunpack.c.h.b16 %v288
  %v307 = vunpack.c.l.b16 %v289
  %v308 = vunpack.c.h.b16 %v289
  %v309 = vunpack.c.l.b16 %v290
  %v310 = vunpack.c.h.b16 %v290
  %v311 = vunpack.c.l.b16 %v291
  %v312 = vunpack.c.h.b16 %v291
  %v313 = vunpack.c.l.b16 %v292
  %v314 = vunpack.c.h.b16 %v292
  %v315 = vunpack.c.l.b16 %v293
  %v316 = vunpack.c.h.b16 %v293
  %v317 = vunpack.c.l.b16 %v294
  %v318 = vunpack.c.h.b16 %v294
  %v319 = vpack.c.b16 %v303, %v303
  %v320 = vpack.c.b16 %v304, %v304
  %v321 = vpack.c.b16 %v305, %v305
  %v322 = vpack.c.b16 %v306, %v306
  %v323 = vpack.c.b16 %v307, %v307
  %v324 = vpack.c.b16 %v308, %v308
  %v325 = vpack.c.b16 %v309, %v309
  %v326 = vpack.c.b16 %v310, %v310
  %v327 = vpack.c.b16 %v311, %v311
  %v328 = vpack.c.b16 %v312, %v312
  %v329 = vpack.c.b16 %v313, %v313
  %v330 = vpack.c.b16 %v314, %v314
  %v331 = vpack.c.b16 %v315, %v315
  %v332 = vpack.c.b16 %v316, %v316
  %v333 = vpack.c.b16 %v317, %v317
  %v334 = vpack.c.b16 %v318, %v318
  %v336 = vshrl.u32 %v319, 16
  %v338 = vrot.slane %v336, 7
  %v339 = vshll.u32 %v319, 16
  %v341 = vor.u32 %v338, %v339
  %v342 = vrot.slane %v338, 4
  %v344 = vshrl.u32 %v320, 16
  %v346 = vrot.slane %v344, 7
  %v347 = vshll.u32 %v320, 16
  %v349 = vor.u32 %v346, %v347
  %v350 = vrot.slane %v346, 4
  %v352 = vshrl.u32 %v321, 16
  %v354 = vrot.slane %v352, 7
  %v355 = vshll.u32 %v321, 16
  %v357 = vor.u32 %v354, %v355
  %v358 = vrot.slane %v354, 4
  %v360 = vshrl.u32 %v322, 16
  %v362 = vrot.slane %v360, 7
  %v363 = vshll.u32 %v322, 16
  %v365 = vor.u32 %v362, %v363
  %v366 = vrot.slane %v362, 4
  %v368 = vshrl.u32 %v323, 16
  %v370 = vrot.slane %v368, 7
  %v371 = vshll.u32 %v323, 16
  %v373 = vor.u32 %v370, %v371
  %v374 = vrot.slane %v370, 4
  %v376 = vshrl.u32 %v324, 16
  %v378 = vrot.slane %v376, 7
  %v379 = vshll.u32 %v324, 16
  %v381 = vor.u32 %v378, %v379
  %v382 = vrot.slane %v378, 4
  %v384 = vshrl.u32 %v325, 16
  %v386 = vrot.slane %v384, 7
  %v387 = vshll.u32 %v325, 16
  %v389 = vor.u32 %v386, %v387
  %v390 = vrot.slane %v386, 4
  %v392 = vshrl.u32 %v326, 16
  %v394 = vrot.slane %v392, 7
  %v395 = vshll.u32 %v326, 16
  %v397 = vor.u32 %v394, %v395
  %v398 = vrot.slane %v394, 4
  %v400 = vshrl.u32 %v327, 16
  %v402 = vrot.slane %v400, 7
  %v403 = vshll.u32 %v327, 16
  %v405 = vor.u32 %v402, %v403
  %v406 = vrot.slane %v402, 4
  %v408 = vshrl.u32 %v328, 16
  %v410 = vrot.slane %v408, 7
  %v411 = vshll.u32 %v328, 16
  %v413 = vor.u32 %v410, %v411
  %v414 = vrot.slane %v410, 4
  %v416 = vshrl.u32 %v329, 16
  %v418 = vrot.slane %v416, 7
  %v419 = vshll.u32 %v329, 16
  %v421 = vor.u32 %v418, %v419
  %v422 = vrot.slane %v418, 4
  %v424 = vshrl.u32 %v330, 16
  %v426 = vrot.slane %v424, 7
  %v427 = vshll.u32 %v330, 16
  %v429 = vor.u32 %v426, %v427
  %v430 = vrot.slane %v426, 4
  %v432 = vshrl.u32 %v331, 16
  %v434 = vrot.slane %v432, 7
  %v435 = vshll.u32 %v331, 16
  %v437 = vor.u32 %v434, %v435
  %v438 = vrot.slane %v434, 4
  %v440 = vshrl.u32 %v332, 16
  %v442 = vrot.slane %v440, 7
  %v443 = vshll.u32 %v332, 16
  %v445 = vor.u32 %v442, %v443
  %v446 = vrot.slane %v442, 4
  %v448 = vshrl.u32 %v333, 16
  %v450 = vrot.slane %v448, 7
  %v451 = vshll.u32 %v333, 16
  %v453 = vor.u32 %v450, %v451
  %v454 = vrot.slane %v450, 4
  %v456 = vshrl.u32 %v334, 16
  %v458 = vrot.slane %v456, 7
  %v459 = vshll.u32 %v334, 16
  %v461 = vor.u32 %v458, %v459
  %v462 = vrot.slane %v458, 4
  %s495 = scalar_lea.vmem [#allocation2], 8
  %vm496 = vcmask 60416
  %vm497 = vsmask.f32 7938
  %vm498 = vmand %vm496, %vm497
  %v499 = vld [vmem:[%s495] sm:$0xf]
  %v500 = vsel %vm498, %v341, %v499
  %501 = vst [vmem:[%s495] sm:$0xf] %v500
  %vm502 = vcmask 57344
  %vm503 = vsmask.f32 256
  %vm504 = vmand %vm502, %vm503
  %v505 = vld [vmem:[%s495 + $0x4] sm:$0x1]
  %v506 = vsel %vm504, %v342, %v505
  %507 = vst [vmem:[%s495 + $0x4] sm:$0x1] %v506
  %v508 = vld [vmem:[%s495 + $0x8] sm:$0xf]
  %v509 = vsel %vm498, %v349, %v508
  %510 = vst [vmem:[%s495 + $0x8] sm:$0xf] %v509
  %v511 = vld [vmem:[%s495 + $0xc] sm:$0x1]
  %v512 = vsel %vm504, %v350, %v511
  %513 = vst [vmem:[%s495 + $0xc] sm:$0x1] %v512
  %v514 = vld [vmem:[%s495 + $0x10] sm:$0xf]
  %v515 = vsel %vm498, %v357, %v514
  %516 = vst [vmem:[%s495 + $0x10] sm:$0xf] %v515
  %v517 = vld [vmem:[%s495 + $0x14] sm:$0x1]
  %v518 = vsel %vm504, %v358, %v517
  %519 = vst [vmem:[%s495 + $0x14] sm:$0x1] %v518
  %v520 = vld [vmem:[%s495 + $0x18] sm:$0xf]
  %v521 = vsel %vm498, %v365, %v520
  %522 = vst [vmem:[%s495 + $0x18] sm:$0xf] %v521
  %v523 = vld [vmem:[%s495 + $0x1c] sm:$0x1]
  %v524 = vsel %vm504, %v366, %v523
  %525 = vst [vmem:[%s495 + $0x1c] sm:$0x1] %v524
  %v526 = vld [vmem:[%s495 + $0x20] sm:$0xf]
  %v527 = vsel %vm498, %v373, %v526
  %528 = vst [vmem:[%s495 + $0x20] sm:$0xf] %v527
  %v529 = vld [vmem:[%s495 + $0x24] sm:$0x1]
  %v530 = vsel %vm504, %v374, %v529
  %531 = vst [vmem:[%s495 + $0x24] sm:$0x1] %v530
  %v532 = vld [vmem:[%s495 + $0x28] sm:$0xf]
  %v533 = vsel %vm498, %v381, %v532
  %534 = vst [vmem:[%s495 + $0x28] sm:$0xf] %v533
  %v535 = vld [vmem:[%s495 + $0x2c] sm:$0x1]
  %v536 = vsel %vm504, %v382, %v535
  %537 = vst [vmem:[%s495 + $0x2c] sm:$0x1] %v536
  %v538 = vld [vmem:[%s495 + $0x30] sm:$0xf]
  %v539 = vsel %vm498, %v389, %v538
  %540 = vst [vmem:[%s495 + $0x30] sm:$0xf] %v539
  %v541 = vld [vmem:[%s495 + $0x34] sm:$0x1]
  %v542 = vsel %vm504, %v390, %v541
  %543 = vst [vmem:[%s495 + $0x34] sm:$0x1] %v542
  %v544 = vld [vmem:[%s495 + $0x38] sm:$0xf]
  %v545 = vsel %vm498, %v397, %v544
  %546 = vst [vmem:[%s495 + $0x38] sm:$0xf] %v545
  %v547 = vld [vmem:[%s495 + $0x3c] sm:$0x1]
  %v548 = vsel %vm504, %v398, %v547
  %549 = vst [vmem:[%s495 + $0x3c] sm:$0x1] %v548
  %v550 = vld [vmem:[%s495 + $0x50] sm:$0xf]
  %v551 = vsel %vm498, %v405, %v550
  %552 = vst [vmem:[%s495 + $0x50] sm:$0xf] %v551
  %v553 = vld [vmem:[%s495 + $0x54] sm:$0x1]
  %v554 = vsel %vm504, %v406, %v553
  %555 = vst [vmem:[%s495 + $0x54] sm:$0x1] %v554
  %v556 = vld [vmem:[%s495 + $0x58] sm:$0xf]
  %v557 = vsel %vm498, %v413, %v556
  %558 = vst [vmem:[%s495 + $0x58] sm:$0xf] %v557
  %v559 = vld [vmem:[%s495 + $0x5c] sm:$0x1]
  %v560 = vsel %vm504, %v414, %v559
  %561 = vst [vmem:[%s495 + $0x5c] sm:$0x1] %v560
  %v562 = vld [vmem:[%s495 + $0x60] sm:$0xf]
  %v563 = vsel %vm498, %v421, %v562
  %564 = vst [vmem:[%s495 + $0x60] sm:$0xf] %v563
  %v565 = vld [vmem:[%s495 + $0x64] sm:$0x1]
  %v566 = vsel %vm504, %v422, %v565
  %567 = vst [vmem:[%s495 + $0x64] sm:$0x1] %v566
  %v568 = vld [vmem:[%s495 + $0x68] sm:$0xf]
  %v569 = vsel %vm498, %v429, %v568
  %570 = vst [vmem:[%s495 + $0x68] sm:$0xf] %v569
  %v571 = vld [vmem:[%s495 + $0x6c] sm:$0x1]
  %v572 = vsel %vm504, %v430, %v571
  %573 = vst [vmem:[%s495 + $0x6c] sm:$0x1] %v572
  %v574 = vld [vmem:[%s495 + $0x70] sm:$0xf]
  %v575 = vsel %vm498, %v437, %v574
  %576 = vst [vmem:[%s495 + $0x70] sm:$0xf] %v575
  %v577 = vld [vmem:[%s495 + $0x74] sm:$0x1]
  %v578 = vsel %vm504, %v438, %v577
  %579 = vst [vmem:[%s495 + $0x74] sm:$0x1] %v578
  %v580 = vld [vmem:[%s495 + $0x78] sm:$0xf]
  %v581 = vsel %vm498, %v445, %v580
  %582 = vst [vmem:[%s495 + $0x78] sm:$0xf] %v581
  %v583 = vld [vmem:[%s495 + $0x7c] sm:$0x1]
  %v584 = vsel %vm504, %v446, %v583
  %585 = vst [vmem:[%s495 + $0x7c] sm:$0x1] %v584
  %v586 = vld [vmem:[%s495 + $0x80] sm:$0xf]
  %v587 = vsel %vm498, %v453, %v586
  %588 = vst [vmem:[%s495 + $0x80] sm:$0xf] %v587
  %v589 = vld [vmem:[%s495 + $0x84] sm:$0x1]
  %v590 = vsel %vm504, %v454, %v589
  %591 = vst [vmem:[%s495 + $0x84] sm:$0x1] %v590
  %v592 = vld [vmem:[%s495 + $0x88] sm:$0xf]
  %v593 = vsel %vm498, %v461, %v592
  %594 = vst [vmem:[%s495 + $0x88] sm:$0xf] %v593
  %v595 = vld [vmem:[%s495 + $0x8c] sm:$0x1]
  %v596 = vsel %vm504, %v462, %v595
  %597 = vst [vmem:[%s495 + $0x8c] sm:$0x1] %v596
  %v598 = vld [vmem:[%s495] sm:$0xf]
  %v599 = vld [vmem:[%s495 + $0x4] sm:$0x1]
  %v600 = vld [vmem:[%s495 + $0x8] sm:$0xf]
  %v601 = vld [vmem:[%s495 + $0xc] sm:$0x1]
  %v602 = vld [vmem:[%s495 + $0x10] sm:$0xf]
  %v603 = vld [vmem:[%s495 + $0x14] sm:$0x1]
  %v604 = vld [vmem:[%s495 + $0x18] sm:$0xf]
  %v605 = vld [vmem:[%s495 + $0x1c] sm:$0x1]
  %v606 = vld [vmem:[%s495 + $0x20] sm:$0xf]
  %v607 = vld [vmem:[%s495 + $0x24] sm:$0x1]
  %v608 = vld [vmem:[%s495 + $0x28] sm:$0xf]
  %v609 = vld [vmem:[%s495 + $0x2c] sm:$0x1]
  %v610 = vld [vmem:[%s495 + $0x30] sm:$0xf]
  %v611 = vld [vmem:[%s495 + $0x34] sm:$0x1]
  %v612 = vld [vmem:[%s495 + $0x38] sm:$0xf]
  %v613 = vld [vmem:[%s495 + $0x3c] sm:$0x1]
  %v614 = vld [vmem:[%s495 + $0x50] sm:$0xf]
  %v615 = vld [vmem:[%s495 + $0x54] sm:$0x1]
  %v616 = vld [vmem:[%s495 + $0x58] sm:$0xf]
  %v617 = vld [vmem:[%s495 + $0x5c] sm:$0x1]
  %v618 = vld [vmem:[%s495 + $0x60] sm:$0xf]
  %v619 = vld [vmem:[%s495 + $0x64] sm:$0x1]
  %v620 = vld [vmem:[%s495 + $0x68] sm:$0xf]
  %v621 = vld [vmem:[%s495 + $0x6c] sm:$0x1]
  %v622 = vld [vmem:[%s495 + $0x70] sm:$0xf]
  %v623 = vld [vmem:[%s495 + $0x74] sm:$0x1]
  %v624 = vld [vmem:[%s495 + $0x78] sm:$0xf]
  %v625 = vld [vmem:[%s495 + $0x7c] sm:$0x1]
  %v626 = vld [vmem:[%s495 + $0x80] sm:$0xf]
  %v627 = vld [vmem:[%s495 + $0x84] sm:$0x1]
  %v628 = vld [vmem:[%s495 + $0x88] sm:$0xf]
  %v629 = vld [vmem:[%s495 + $0x8c] sm:$0x1]
  %v630 = vld [vmem:[#allocation2] sm:$0xf]
  %v631 = vld [vmem:[#allocation2 + $0x4] sm:$0x1]
  %v632 = vld [vmem:[#allocation2 + $0x8] sm:$0xf]
  %v633 = vld [vmem:[#allocation2 + $0xc] sm:$0x1]
  %v634 = vld [vmem:[#allocation2 + $0x10] sm:$0xf]
  %v635 = vld [vmem:[#allocation2 + $0x14] sm:$0x1]
  %v636 = vld [vmem:[#allocation2 + $0x18] sm:$0xf]
  %v637 = vld [vmem:[#allocation2 + $0x1c] sm:$0x1]
  %v638 = vld [vmem:[#allocation2 + $0x20] sm:$0xf]
  %v639 = vld [vmem:[#allocation2 + $0x24] sm:$0x1]
  %v640 = vld [vmem:[#allocation2 + $0x28] sm:$0xf]
  %v641 = vld [vmem:[#allocation2 + $0x2c] sm:$0x1]
  %v642 = vld [vmem:[#allocation2 + $0x30] sm:$0xf]
  %v643 = vld [vmem:[#allocation2 + $0x34] sm:$0x1]
  %v644 = vld [vmem:[#allocation2 + $0x38] sm:$0xf]
  %v645 = vld [vmem:[#allocation2 + $0x3c] sm:$0x1]
  %v646 = vld [vmem:[#allocation2 + $0x50] sm:$0xf]
  %v647 = vld [vmem:[#allocation2 + $0x54] sm:$0x1]
  %v648 = vld [vmem:[#allocation2 + $0x58] sm:$0xf]
  %v649 = vld [vmem:[#allocation2 + $0x5c] sm:$0x1]
  %v650 = vld [vmem:[#allocation2 + $0x60] sm:$0xf]
  %v651 = vld [vmem:[#allocation2 + $0x64] sm:$0x1]
  %v652 = vld [vmem:[#allocation2 + $0x68] sm:$0xf]
  %v653 = vld [vmem:[#allocation2 + $0x6c] sm:$0x1]
  %v654 = vld [vmem:[#allocation2 + $0x70] sm:$0xf]
  %v655 = vld [vmem:[#allocation2 + $0x74] sm:$0x1]
  %v656 = vld [vmem:[#allocation2 + $0x78] sm:$0xf]
  %v657 = vld [vmem:[#allocation2 + $0x7c] sm:$0x1]
  %v658 = vld [vmem:[#allocation2 + $0x80] sm:$0xf]
  %v659 = vld [vmem:[#allocation2 + $0x84] sm:$0x1]
  %v660 = vld [vmem:[#allocation2 + $0x88] sm:$0xf]
  %v661 = vld [vmem:[#allocation2 + $0x8c] sm:$0x1]
  %v694 = vunpack.c.l.b16 %v598
  %v695 = vunpack.c.l.b16 %v599
  %v696 = vunpack.c.l.b16 %v600
  %v697 = vunpack.c.l.b16 %v601
  %v698 = vunpack.c.l.b16 %v602
  %v699 = vunpack.c.l.b16 %v603
  %v700 = vunpack.c.l.b16 %v604
  %v701 = vunpack.c.l.b16 %v605
  %v702 = vunpack.c.l.b16 %v606
  %v703 = vunpack.c.l.b16 %v607
  %v704 = vunpack.c.l.b16 %v608
  %v705 = vunpack.c.l.b16 %v609
  %v706 = vunpack.c.l.b16 %v610
  %v707 = vunpack.c.l.b16 %v611
  %v708 = vunpack.c.l.b16 %v612
  %v709 = vunpack.c.l.b16 %v613
  %v710 = vunpack.c.l.b16 %v614
  %v711 = vunpack.c.l.b16 %v615
  %v712 = vunpack.c.l.b16 %v616
  %v713 = vunpack.c.l.b16 %v617
  %v714 = vunpack.c.l.b16 %v618
  %v715 = vunpack.c.l.b16 %v619
  %v716 = vunpack.c.l.b16 %v620
  %v717 = vunpack.c.l.b16 %v621
  %v718 = vunpack.c.l.b16 %v622
  %v719 = vunpack.c.l.b16 %v623
  %v720 = vunpack.c.l.b16 %v624
  %v721 = vunpack.c.l.b16 %v625
  %v722 = vunpack.c.l.b16 %v626
  %v723 = vunpack.c.l.b16 %v627
  %v724 = vunpack.c.l.b16 %v628
  %v725 = vunpack.c.l.b16 %v629
  %v726 = vpack.c.b16 %v695, %v694
  %v727 = vpack.c.b16 %v697, %v696
  %v728 = vpack.c.b16 %v699, %v698
  %v729 = vpack.c.b16 %v701, %v700
  %v730 = vpack.c.b16 %v703, %v702
  %v731 = vpack.c.b16 %v705, %v704
  %v732 = vpack.c.b16 %v707, %v706
  %v733 = vpack.c.b16 %v709, %v708
  %v734 = vpack.c.b16 %v711, %v710
  %v735 = vpack.c.b16 %v713, %v712
  %v736 = vpack.c.b16 %v715, %v714
  %v737 = vpack.c.b16 %v717, %v716
  %v738 = vpack.c.b16 %v719, %v718
  %v739 = vpack.c.b16 %v721, %v720
  %v740 = vpack.c.b16 %v723, %v722
  %v741 = vpack.c.b16 %v725, %v724
  %v742 = vpack.c.b16 %v694, %v694
  %v743 = vpack.c.b16 %v696, %v696
  %v744 = vpack.c.b16 %v698, %v698
  %v745 = vpack.c.b16 %v700, %v700
  %v746 = vpack.c.b16 %v702, %v702
  %v747 = vpack.c.b16 %v704, %v704
  %v748 = vpack.c.b16 %v706, %v706
  %v749 = vpack.c.b16 %v708, %v708
  %v750 = vpack.c.b16 %v710, %v710
  %v751 = vpack.c.b16 %v712, %v712
  %v752 = vpack.c.b16 %v714, %v714
  %v753 = vpack.c.b16 %v716, %v716
  %v754 = vpack.c.b16 %v718, %v718
  %v755 = vpack.c.b16 %v720, %v720
  %v756 = vpack.c.b16 %v722, %v722
  %v757 = vpack.c.b16 %v724, %v724
  %v759 = vshrl.u32 %v742, 16
  %v761 = vrot.slane %v759, 7
  %v762 = vshll.u32 %v742, 16
  %v764 = vor.u32 %v761, %v762
  %v766 = vshrl.u32 %v743, 16
  %v768 = vrot.slane %v766, 7
  %v769 = vshll.u32 %v743, 16
  %v771 = vor.u32 %v768, %v769
  %v773 = vshrl.u32 %v744, 16
  %v775 = vrot.slane %v773, 7
  %v776 = vshll.u32 %v744, 16
  %v778 = vor.u32 %v775, %v776
  %v780 = vshrl.u32 %v745, 16
  %v782 = vrot.slane %v780, 7
  %v783 = vshll.u32 %v745, 16
  %v785 = vor.u32 %v782, %v783
  %v787 = vshrl.u32 %v746, 16
  %v789 = vrot.slane %v787, 7
  %v790 = vshll.u32 %v746, 16
  %v792 = vor.u32 %v789, %v790
  %v794 = vshrl.u32 %v747, 16
  %v796 = vrot.slane %v794, 7
  %v797 = vshll.u32 %v747, 16
  %v799 = vor.u32 %v796, %v797
  %v801 = vshrl.u32 %v748, 16
  %v803 = vrot.slane %v801, 7
  %v804 = vshll.u32 %v748, 16
  %v806 = vor.u32 %v803, %v804
  %v808 = vshrl.u32 %v749, 16
  %v810 = vrot.slane %v808, 7
  %v811 = vshll.u32 %v749, 16
  %v813 = vor.u32 %v810, %v811
  %v815 = vshrl.u32 %v750, 16
  %v817 = vrot.slane %v815, 7
  %v818 = vshll.u32 %v750, 16
  %v820 = vor.u32 %v817, %v818
  %v822 = vshrl.u32 %v751, 16
  %v824 = vrot.slane %v822, 7
  %v825 = vshll.u32 %v751, 16
  %v827 = vor.u32 %v824, %v825
  %v829 = vshrl.u32 %v752, 16
  %v831 = vrot.slane %v829, 7
  %v832 = vshll.u32 %v752, 16
  %v834 = vor.u32 %v831, %v832
  %v836 = vshrl.u32 %v753, 16
  %v838 = vrot.slane %v836, 7
  %v839 = vshll.u32 %v753, 16
  %v841 = vor.u32 %v838, %v839
  %v843 = vshrl.u32 %v754, 16
  %v845 = vrot.slane %v843, 7
  %v846 = vshll.u32 %v754, 16
  %v848 = vor.u32 %v845, %v846
  %v850 = vshrl.u32 %v755, 16
  %v852 = vrot.slane %v850, 7
  %v853 = vshll.u32 %v755, 16
  %v855 = vor.u32 %v852, %v853
  %v857 = vshrl.u32 %v756, 16
  %v859 = vrot.slane %v857, 7
  %v860 = vshll.u32 %v756, 16
  %v862 = vor.u32 %v859, %v860
  %v864 = vshrl.u32 %v757, 16
  %v866 = vrot.slane %v864, 7
  %v867 = vshll.u32 %v757, 16
  %v869 = vor.u32 %v866, %v867
  %870 = vrot.lane.b32.xlu0 %v764, 8
  %v871 = vpop.permute.xlu0 %870
  %872 = vrot.lane.b32.xlu0 %v771, 8
  %v873 = vpop.permute.xlu0 %872
  %874 = vrot.lane.b32.xlu0 %v778, 8
  %v875 = vpop.permute.xlu0 %874
  %876 = vrot.lane.b32.xlu0 %v785, 8
  %v877 = vpop.permute.xlu0 %876
  %878 = vrot.lane.b32.xlu0 %v792, 8
  %v879 = vpop.permute.xlu0 %878
  %880 = vrot.lane.b32.xlu0 %v799, 8
  %v881 = vpop.permute.xlu0 %880
  %882 = vrot.lane.b32.xlu0 %v806, 8
  %v883 = vpop.permute.xlu0 %882
  %884 = vrot.lane.b32.xlu0 %v813, 8
  %v885 = vpop.permute.xlu0 %884
  %886 = vrot.lane.b32.xlu0 %v820, 8
  %v887 = vpop.permute.xlu0 %886
  %888 = vrot.lane.b32.xlu0 %v827, 8
  %v889 = vpop.permute.xlu0 %888
  %890 = vrot.lane.b32.xlu0 %v834, 8
  %v891 = vpop.permute.xlu0 %890
  %892 = vrot.lane.b32.xlu0 %v841, 8
  %v893 = vpop.permute.xlu0 %892
  %894 = vrot.lane.b32.xlu0 %v848, 8
  %v895 = vpop.permute.xlu0 %894
  %896 = vrot.lane.b32.xlu0 %v855, 8
  %v897 = vpop.permute.xlu0 %896
  %898 = vrot.lane.b32.xlu0 %v862, 8
  %v899 = vpop.permute.xlu0 %898
  %900 = vrot.lane.b32.xlu0 %v869, 8
  %v901 = vpop.permute.xlu0 %900
  %v934 = vunpack.c.l.b16 %v630
  %v935 = vunpack.c.l.b16 %v631
  %v936 = vunpack.c.l.b16 %v632
  %v937 = vunpack.c.l.b16 %v633
  %v938 = vunpack.c.l.b16 %v634
  %v939 = vunpack.c.l.b16 %v635
  %v940 = vunpack.c.l.b16 %v636
  %v941 = vunpack.c.l.b16 %v637
  %v942 = vunpack.c.l.b16 %v638
  %v943 = vunpack.c.l.b16 %v639
  %v944 = vunpack.c.l.b16 %v640
  %v945 = vunpack.c.l.b16 %v641
  %v946 = vunpack.c.l.b16 %v642
  %v947 = vunpack.c.l.b16 %v643
  %v948 = vunpack.c.l.b16 %v644
  %v949 = vunpack.c.l.b16 %v645
  %v950 = vunpack.c.l.b16 %v646
  %v951 = vunpack.c.l.b16 %v647
  %v952 = vunpack.c.l.b16 %v648
  %v953 = vunpack.c.l.b16 %v649
  %v954 = vunpack.c.l.b16 %v650
  %v955 = vunpack.c.l.b16 %v651
  %v956 = vunpack.c.l.b16 %v652
  %v957 = vunpack.c.l.b16 %v653
  %v958 = vunpack.c.l.b16 %v654
  %v959 = vunpack.c.l.b16 %v655
  %v960 = vunpack.c.l.b16 %v656
  %v961 = vunpack.c.l.b16 %v657
  %v962 = vunpack.c.l.b16 %v658
  %v963 = vunpack.c.l.b16 %v659
  %v964 = vunpack.c.l.b16 %v660
  %v965 = vunpack.c.l.b16 %v661
  %v966 = vpack.c.b16 %v935, %v934
  %v967 = vpack.c.b16 %v937, %v936
  %v968 = vpack.c.b16 %v939, %v938
  %v969 = vpack.c.b16 %v941, %v940
  %v970 = vpack.c.b16 %v943, %v942
  %v971 = vpack.c.b16 %v945, %v944
  %v972 = vpack.c.b16 %v947, %v946
  %v973 = vpack.c.b16 %v949, %v948
  %v974 = vpack.c.b16 %v951, %v950
  %v975 = vpack.c.b16 %v953, %v952
  %v976 = vpack.c.b16 %v955, %v954
  %v977 = vpack.c.b16 %v957, %v956
  %v978 = vpack.c.b16 %v959, %v958
  %v979 = vpack.c.b16 %v961, %v960
  %v980 = vpack.c.b16 %v963, %v962
  %v981 = vpack.c.b16 %v965, %v964
  %982 = vrot.lane.b32.xlu0 %v966, 16
  %v983 = vpop.permute.xlu0 %982
  %984 = vrot.lane.b32.xlu0 %v967, 16
  %v985 = vpop.permute.xlu0 %984
  %986 = vrot.lane.b32.xlu0 %v968, 16
  %v987 = vpop.permute.xlu0 %986
  %988 = vrot.lane.b32.xlu0 %v969, 16
  %v989 = vpop.permute.xlu0 %988
  %990 = vrot.lane.b32.xlu0 %v970, 16
  %v991 = vpop.permute.xlu0 %990
  %992 = vrot.lane.b32.xlu0 %v971, 16
  %v993 = vpop.permute.xlu0 %992
  %994 = vrot.lane.b32.xlu0 %v972, 16
  %v995 = vpop.permute.xlu0 %994
  %996 = vrot.lane.b32.xlu0 %v973, 16
  %v997 = vpop.permute.xlu0 %996
  %998 = vrot.lane.b32.xlu0 %v974, 16
  %v999 = vpop.permute.xlu0 %998
  %1000 = vrot.lane.b32.xlu0 %v975, 16
  %v1001 = vpop.permute.xlu0 %1000
  %1002 = vrot.lane.b32.xlu0 %v976, 16
  %v1003 = vpop.permute.xlu0 %1002
  %1004 = vrot.lane.b32.xlu0 %v977, 16
  %v1005 = vpop.permute.xlu0 %1004
  %1006 = vrot.lane.b32.xlu0 %v978, 16
  %v1007 = vpop.permute.xlu0 %1006
  %1008 = vrot.lane.b32.xlu0 %v979, 16
  %v1009 = vpop.permute.xlu0 %1008
  %1010 = vrot.lane.b32.xlu0 %v980, 16
  %v1011 = vpop.permute.xlu0 %1010
  %1012 = vrot.lane.b32.xlu0 %v981, 16
  %v1013 = vpop.permute.xlu0 %1012
  %v1014 = vpack.c.b16 %v934, %v934
  %v1015 = vpack.c.b16 %v936, %v936
  %v1016 = vpack.c.b16 %v938, %v938
  %v1017 = vpack.c.b16 %v940, %v940
  %v1018 = vpack.c.b16 %v942, %v942
  %v1019 = vpack.c.b16 %v944, %v944
  %v1020 = vpack.c.b16 %v946, %v946
  %v1021 = vpack.c.b16 %v948, %v948
  %v1022 = vpack.c.b16 %v950, %v950
  %v1023 = vpack.c.b16 %v952, %v952
  %v1024 = vpack.c.b16 %v954, %v954
  %v1025 = vpack.c.b16 %v956, %v956
  %v1026 = vpack.c.b16 %v958, %v958
  %v1027 = vpack.c.b16 %v960, %v960
  %v1028 = vpack.c.b16 %v962, %v962
  %v1029 = vpack.c.b16 %v964, %v964
  %v1031 = vshrl.u32 %v1014, 16
  %v1033 = vrot.slane %v1031, 7
  %v1034 = vshll.u32 %v1014, 16
  %v1036 = vor.u32 %v1033, %v1034
  %v1038 = vshrl.u32 %v1015, 16
  %v1040 = vrot.slane %v1038, 7
  %v1041 = vshll.u32 %v1015, 16
  %v1043 = vor.u32 %v1040, %v1041
  %v1045 = vshrl.u32 %v1016, 16
  %v1047 = vrot.slane %v1045, 7
  %v1048 = vshll.u32 %v1016, 16
  %v1050 = vor.u32 %v1047, %v1048
  %v1052 = vshrl.u32 %v1017, 16
  %v1054 = vrot.slane %v1052, 7
  %v1055 = vshll.u32 %v1017, 16
  %v1057 = vor.u32 %v1054, %v1055
  %v1059 = vshrl.u32 %v1018, 16
  %v1061 = vrot.slane %v1059, 7
  %v1062 = vshll.u32 %v1018, 16
  %v1064 = vor.u32 %v1061, %v1062
  %v1066 = vshrl.u32 %v1019, 16
  %v1068 = vrot.slane %v1066, 7
  %v1069 = vshll.u32 %v1019, 16
  %v1071 = vor.u32 %v1068, %v1069
  %v1073 = vshrl.u32 %v1020, 16
  %v1075 = vrot.slane %v1073, 7
  %v1076 = vshll.u32 %v1020, 16
  %v1078 = vor.u32 %v1075, %v1076
  %v1080 = vshrl.u32 %v1021, 16
  %v1082 = vrot.slane %v1080, 7
  %v1083 = vshll.u32 %v1021, 16
  %v1085 = vor.u32 %v1082, %v1083
  %v1087 = vshrl.u32 %v1022, 16
  %v1089 = vrot.slane %v1087, 7
  %v1090 = vshll.u32 %v1022, 16
  %v1092 = vor.u32 %v1089, %v1090
  %v1094 = vshrl.u32 %v1023, 16
  %v1096 = vrot.slane %v1094, 7
  %v1097 = vshll.u32 %v1023, 16
  %v1099 = vor.u32 %v1096, %v1097
  %v1101 = vshrl.u32 %v1024, 16
  %v1103 = vrot.slane %v1101, 7
  %v1104 = vshll.u32 %v1024, 16
  %v1106 = vor.u32 %v1103, %v1104
  %v1108 = vshrl.u32 %v1025, 16
  %v1110 = vrot.slane %v1108, 7
  %v1111 = vshll.u32 %v1025, 16
  %v1113 = vor.u32 %v1110, %v1111
  %v1115 = vshrl.u32 %v1026, 16
  %v1117 = vrot.slane %v1115, 7
  %v1118 = vshll.u32 %v1026, 16
  %v1120 = vor.u32 %v1117, %v1118
  %v1122 = vshrl.u32 %v1027, 16
  %v1124 = vrot.slane %v1122, 7
  %v1125 = vshll.u32 %v1027, 16
  %v1127 = vor.u32 %v1124, %v1125
  %v1129 = vshrl.u32 %v1028, 16
  %v1131 = vrot.slane %v1129, 7
  %v1132 = vshll.u32 %v1028, 16
  %v1134 = vor.u32 %v1131, %v1132
  %v1136 = vshrl.u32 %v1029, 16
  %v1138 = vrot.slane %v1136, 7
  %v1139 = vshll.u32 %v1029, 16
  %v1141 = vor.u32 %v1138, %v1139
  %1142 = vrot.lane.b32.xlu0 %v1036, 24
  %v1143 = vpop.permute.xlu0 %1142
  %1144 = vrot.lane.b32.xlu0 %v1043, 24
  %v1145 = vpop.permute.xlu0 %1144
  %1146 = vrot.lane.b32.xlu0 %v1050, 24
  %v1147 = vpop.permute.xlu0 %1146
  %1148 = vrot.lane.b32.xlu0 %v1057, 24
  %v1149 = vpop.permute.xlu0 %1148
  %1150 = vrot.lane.b32.xlu0 %v1064, 24
  %v1151 = vpop.permute.xlu0 %1150
  %1152 = vrot.lane.b32.xlu0 %v1071, 24
  %v1153 = vpop.permute.xlu0 %1152
  %1154 = vrot.lane.b32.xlu0 %v1078, 24
  %v1155 = vpop.permute.xlu0 %1154
  %1156 = vrot.lane.b32.xlu0 %v1085, 24
  %v1157 = vpop.permute.xlu0 %1156
  %1158 = vrot.lane.b32.xlu0 %v1092, 24
  %v1159 = vpop.permute.xlu0 %1158
  %1160 = vrot.lane.b32.xlu0 %v1099, 24
  %v1161 = vpop.permute.xlu0 %1160
  %1162 = vrot.lane.b32.xlu0 %v1106, 24
  %v1163 = vpop.permute.xlu0 %1162
  %1164 = vrot.lane.b32.xlu0 %v1113, 24
  %v1165 = vpop.permute.xlu0 %1164
  %1166 = vrot.lane.b32.xlu0 %v1120, 24
  %v1167 = vpop.permute.xlu0 %1166
  %1168 = vrot.lane.b32.xlu0 %v1127, 24
  %v1169 = vpop.permute.xlu0 %1168
  %1170 = vrot.lane.b32.xlu0 %v1134, 24
  %v1171 = vpop.permute.xlu0 %1170
  %1172 = vrot.lane.b32.xlu0 %v1141, 24
  %v1173 = vpop.permute.xlu0 %1172
  %vm1174 = vcmask 64512
  %v1177 = vsel %vm1174, %v726, %v871
  %v1180 = vsel %vm1174, %v727, %v873
  %v1183 = vsel %vm1174, %v728, %v875
  %v1186 = vsel %vm1174, %v729, %v877
  %v1189 = vsel %vm1174, %v730, %v879
  %v1192 = vsel %vm1174, %v731, %v881
  %v1195 = vsel %vm1174, %v732, %v883
  %v1198 = vsel %vm1174, %v733, %v885
  %v1201 = vsel %vm1174, %v734, %v887
  %v1204 = vsel %vm1174, %v735, %v889
  %v1207 = vsel %vm1174, %v736, %v891
  %v1210 = vsel %vm1174, %v737, %v893
  %v1213 = vsel %vm1174, %v738, %v895
  %v1216 = vsel %vm1174, %v739, %v897
  %v1219 = vsel %vm1174, %v740, %v899
  %v1222 = vsel %vm1174, %v741, %v901
  %vm1223 = vcmask 130048
  %v1225 = vsel %vm1223, %v1177, %v983
  %v1227 = vsel %vm1223, %v1180, %v985
  %v1229 = vsel %vm1223, %v1183, %v987
  %v1231 = vsel %vm1223, %v1186, %v989
  %v1233 = vsel %vm1223, %v1189, %v991
  %v1235 = vsel %vm1223, %v1192, %v993
  %v1237 = vsel %vm1223, %v1195, %v995
  %v1239 = vsel %vm1223, %v1198, %v997
  %v1241 = vsel %vm1223, %v1201, %v999
  %v1243 = vsel %vm1223, %v1204, %v1001
  %v1245 = vsel %vm1223, %v1207, %v1003
  %v1247 = vsel %vm1223, %v1210, %v1005
  %v1249 = vsel %vm1223, %v1213, %v1007
  %v1251 = vsel %vm1223, %v1216, %v1009
  %v1253 = vsel %vm1223, %v1219, %v1011
  %v1255 = vsel %vm1223, %v1222, %v1013
  %vm1256 = vcmask 195584
  %v1258 = vsel %vm1256, %v1225, %v1143
  %v1260 = vsel %vm1256, %v1227, %v1145
  %v1262 = vsel %vm1256, %v1229, %v1147
  %v1264 = vsel %vm1256, %v1231, %v1149
  %v1266 = vsel %vm1256, %v1233, %v1151
  %v1268 = vsel %vm1256, %v1235, %v1153
  %v1270 = vsel %vm1256, %v1237, %v1155
  %v1272 = vsel %vm1256, %v1239, %v1157
  %v1274 = vsel %vm1256, %v1241, %v1159
  %v1276 = vsel %vm1256, %v1243, %v1161
  %v1278 = vsel %vm1256, %v1245, %v1163
  %v1280 = vsel %vm1256, %v1247, %v1165
  %v1282 = vsel %vm1256, %v1249, %v1167
  %v1284 = vsel %vm1256, %v1251, %v1169
  %v1286 = vsel %vm1256, %v1253, %v1171
  %v1288 = vsel %vm1256, %v1255, %v1173
  %v1305 = vunpack.c.l.b16 %v1258
  %v1306 = vunpack.c.h.b16 %v1258
  %v1307 = vunpack.c.l.b16 %v1260
  %v1308 = vunpack.c.h.b16 %v1260
  %v1309 = vunpack.c.l.b16 %v1262
  %v1310 = vunpack.c.h.b16 %v1262
  %v1311 = vunpack.c.l.b16 %v1264
  %v1312 = vunpack.c.h.b16 %v1264
  %v1313 = vunpack.c.l.b16 %v1266
  %v1314 = vunpack.c.h.b16 %v1266
  %v1315 = vunpack.c.l.b16 %v1268
  %v1316 = vunpack.c.h.b16 %v1268
  %v1317 = vunpack.c.l.b16 %v1270
  %v1318 = vunpack.c.h.b16 %v1270
  %v1319 = vunpack.c.l.b16 %v1272
  %v1320 = vunpack.c.h.b16 %v1272
  %v1321 = vunpack.c.l.b16 %v1274
  %v1322 = vunpack.c.h.b16 %v1274
  %v1323 = vunpack.c.l.b16 %v1276
  %v1324 = vunpack.c.h.b16 %v1276
  %v1325 = vunpack.c.l.b16 %v1278
  %v1326 = vunpack.c.h.b16 %v1278
  %v1327 = vunpack.c.l.b16 %v1280
  %v1328 = vunpack.c.h.b16 %v1280
  %v1329 = vunpack.c.l.b16 %v1282
  %v1330 = vunpack.c.h.b16 %v1282
  %v1331 = vunpack.c.l.b16 %v1284
  %v1332 = vunpack.c.h.b16 %v1284
  %v1333 = vunpack.c.l.b16 %v1286
  %v1334 = vunpack.c.h.b16 %v1286
  %v1335 = vunpack.c.l.b16 %v1288
  %v1336 = vunpack.c.h.b16 %v1288
  %v1337 = vpack.c.b16 %v1305, %v1305
  %v1338 = vpack.c.b16 %v1306, %v1306
  %v1339 = vpack.c.b16 %v1307, %v1307
  %v1340 = vpack.c.b16 %v1308, %v1308
  %v1341 = vpack.c.b16 %v1309, %v1309
  %v1342 = vpack.c.b16 %v1310, %v1310
  %v1343 = vpack.c.b16 %v1311, %v1311
  %v1344 = vpack.c.b16 %v1312, %v1312
  %v1345 = vpack.c.b16 %v1313, %v1313
  %v1346 = vpack.c.b16 %v1314, %v1314
  %v1347 = vpack.c.b16 %v1315, %v1315
  %v1348 = vpack.c.b16 %v1316, %v1316
  %v1349 = vpack.c.b16 %v1317, %v1317
  %v1350 = vpack.c.b16 %v1318, %v1318
  %v1351 = vpack.c.b16 %v1319, %v1319
  %v1352 = vpack.c.b16 %v1320, %v1320
  %v1353 = vpack.c.b16 %v1321, %v1321
  %v1354 = vpack.c.b16 %v1322, %v1322
  %v1355 = vpack.c.b16 %v1323, %v1323
  %v1356 = vpack.c.b16 %v1324, %v1324
  %v1357 = vpack.c.b16 %v1325, %v1325
  %v1358 = vpack.c.b16 %v1326, %v1326
  %v1359 = vpack.c.b16 %v1327, %v1327
  %v1360 = vpack.c.b16 %v1328, %v1328
  %v1361 = vpack.c.b16 %v1329, %v1329
  %v1362 = vpack.c.b16 %v1330, %v1330
  %v1363 = vpack.c.b16 %v1331, %v1331
  %v1364 = vpack.c.b16 %v1332, %v1332
  %v1365 = vpack.c.b16 %v1333, %v1333
  %v1366 = vpack.c.b16 %v1334, %v1334
  %v1367 = vpack.c.b16 %v1335, %v1335
  %v1368 = vpack.c.b16 %v1336, %v1336
  %vm1369 = vsmask.f32 3328
  %vm1370 = vsmask.f32 7440
  %vm1371 = vmor %vm1369, %vm1370
  %v1373 = vshrl.u32 %v1337, 16
  %v1375 = vrot.slane %v1373, 4
  %v1376 = vshll.u32 %v1337, 16
  %v1378 = vrot.slane %v1376, 5
  %v1379 = vor.u32 %v1375, %v1378
  %v1380 = vrot.slane %v1379, 4
  %v1382 = vshll.u32 %v1338, 16
  %v1384 = vrot.slane %v1382, 5
  %v1385 = vsel %vm1371, %v1380, %v1384
  %v1387 = vshrl.u32 %v1339, 16
  %v1389 = vrot.slane %v1387, 4
  %v1390 = vshll.u32 %v1339, 16
  %v1392 = vrot.slane %v1390, 5
  %v1393 = vor.u32 %v1389, %v1392
  %v1394 = vrot.slane %v1393, 4
  %v1396 = vshll.u32 %v1340, 16
  %v1398 = vrot.slane %v1396, 5
  %v1399 = vsel %vm1371, %v1394, %v1398
  %v1401 = vshrl.u32 %v1341, 16
  %v1403 = vrot.slane %v1401, 4
  %v1404 = vshll.u32 %v1341, 16
  %v1406 = vrot.slane %v1404, 5
  %v1407 = vor.u32 %v1403, %v1406
  %v1408 = vrot.slane %v1407, 4
  %v1410 = vshll.u32 %v1342, 16
  %v1412 = vrot.slane %v1410, 5
  %v1413 = vsel %vm1371, %v1408, %v1412
  %v1415 = vshrl.u32 %v1343, 16
  %v1417 = vrot.slane %v1415, 4
  %v1418 = vshll.u32 %v1343, 16
  %v1420 = vrot.slane %v1418, 5
  %v1421 = vor.u32 %v1417, %v1420
  %v1422 = vrot.slane %v1421, 4
  %v1424 = vshll.u32 %v1344, 16
  %v1426 = vrot.slane %v1424, 5
  %v1427 = vsel %vm1371, %v1422, %v1426
  %v1429 = vshrl.u32 %v1345, 16
  %v1431 = vrot.slane %v1429, 4
  %v1432 = vshll.u32 %v1345, 16
  %v1434 = vrot.slane %v1432, 5
  %v1435 = vor.u32 %v1431, %v1434
  %v1436 = vrot.slane %v1435, 4
  %v1438 = vshll.u32 %v1346, 16
  %v1440 = vrot.slane %v1438, 5
  %v1441 = vsel %vm1371, %v1436, %v1440
  %v1443 = vshrl.u32 %v1347, 16
  %v1445 = vrot.slane %v1443, 4
  %v1446 = vshll.u32 %v1347, 16
  %v1448 = vrot.slane %v1446, 5
  %v1449 = vor.u32 %v1445, %v1448
  %v1450 = vrot.slane %v1449, 4
  %v1452 = vshll.u32 %v1348, 16
  %v1454 = vrot.slane %v1452, 5
  %v1455 = vsel %vm1371, %v1450, %v1454
  %v1457 = vshrl.u32 %v1349, 16
  %v1459 = vrot.slane %v1457, 4
  %v1460 = vshll.u32 %v1349, 16
  %v1462 = vrot.slane %v1460, 5
  %v1463 = vor.u32 %v1459, %v1462
  %v1464 = vrot.slane %v1463, 4
  %v1466 = vshll.u32 %v1350, 16
  %v1468 = vrot.slane %v1466, 5
  %v1469 = vsel %vm1371, %v1464, %v1468
  %v1471 = vshrl.u32 %v1351, 16
  %v1473 = vrot.slane %v1471, 4
  %v1474 = vshll.u32 %v1351, 16
  %v1476 = vrot.slane %v1474, 5
  %v1477 = vor.u32 %v1473, %v1476
  %v1478 = vrot.slane %v1477, 4
  %v1480 = vshll.u32 %v1352, 16
  %v1482 = vrot.slane %v1480, 5
  %v1483 = vsel %vm1371, %v1478, %v1482
  %v1485 = vshrl.u32 %v1353, 16
  %v1487 = vrot.slane %v1485, 4
  %v1488 = vshll.u32 %v1353, 16
  %v1490 = vrot.slane %v1488, 5
  %v1491 = vor.u32 %v1487, %v1490
  %v1492 = vrot.slane %v1491, 4
  %v1494 = vshll.u32 %v1354, 16
  %v1496 = vrot.slane %v1494, 5
  %v1497 = vsel %vm1371, %v1492, %v1496
  %v1499 = vshrl.u32 %v1355, 16
  %v1501 = vrot.slane %v1499, 4
  %v1502 = vshll.u32 %v1355, 16
  %v1504 = vrot.slane %v1502, 5
  %v1505 = vor.u32 %v1501, %v1504
  %v1506 = vrot.slane %v1505, 4
  %v1508 = vshll.u32 %v1356, 16
  %v1510 = vrot.slane %v1508, 5
  %v1511 = vsel %vm1371, %v1506, %v1510
  %v1513 = vshrl.u32 %v1357, 16
  %v1515 = vrot.slane %v1513, 4
  %v1516 = vshll.u32 %v1357, 16
  %v1518 = vrot.slane %v1516, 5
  %v1519 = vor.u32 %v1515, %v1518
  %v1520 = vrot.slane %v1519, 4
  %v1522 = vshll.u32 %v1358, 16
  %v1524 = vrot.slane %v1522, 5
  %v1525 = vsel %vm1371, %v1520, %v1524
  %v1527 = vshrl.u32 %v1359, 16
  %v1529 = vrot.slane %v1527, 4
  %v1530 = vshll.u32 %v1359, 16
  %v1532 = vrot.slane %v1530, 5
  %v1533 = vor.u32 %v1529, %v1532
  %v1534 = vrot.slane %v1533, 4
  %v1536 = vshll.u32 %v1360, 16
  %v1538 = vrot.slane %v1536, 5
  %v1539 = vsel %vm1371, %v1534, %v1538
  %v1541 = vshrl.u32 %v1361, 16
  %v1543 = vrot.slane %v1541, 4
  %v1544 = vshll.u32 %v1361, 16
  %v1546 = vrot.slane %v1544, 5
  %v1547 = vor.u32 %v1543, %v1546
  %v1548 = vrot.slane %v1547, 4
  %v1550 = vshll.u32 %v1362, 16
  %v1552 = vrot.slane %v1550, 5
  %v1553 = vsel %vm1371, %v1548, %v1552
  %v1555 = vshrl.u32 %v1363, 16
  %v1557 = vrot.slane %v1555, 4
  %v1558 = vshll.u32 %v1363, 16
  %v1560 = vrot.slane %v1558, 5
  %v1561 = vor.u32 %v1557, %v1560
  %v1562 = vrot.slane %v1561, 4
  %v1564 = vshll.u32 %v1364, 16
  %v1566 = vrot.slane %v1564, 5
  %v1567 = vsel %vm1371, %v1562, %v1566
  %v1569 = vshrl.u32 %v1365, 16
  %v1571 = vrot.slane %v1569, 4
  %v1572 = vshll.u32 %v1365, 16
  %v1574 = vrot.slane %v1572, 5
  %v1575 = vor.u32 %v1571, %v1574
  %v1576 = vrot.slane %v1575, 4
  %v1578 = vshll.u32 %v1366, 16
  %v1580 = vrot.slane %v1578, 5
  %v1581 = vsel %vm1371, %v1576, %v1580
  %v1583 = vshrl.u32 %v1367, 16
  %v1585 = vrot.slane %v1583, 4
  %v1586 = vshll.u32 %v1367, 16
  %v1588 = vrot.slane %v1586, 5
  %v1589 = vor.u32 %v1585, %v1588
  %v1590 = vrot.slane %v1589, 4
  %v1592 = vshll.u32 %v1368, 16
  %v1594 = vrot.slane %v1592, 5
  %v1595 = vsel %vm1371, %v1590, %v1594
  %v1596 = vld [vmem:[%s2] sm:$0xf]
  %v1597 = vld [vmem:[%s2 + $0x4] sm:$0xf]
  %v1598 = vld [vmem:[%s2 + $0x8] sm:$0xf]
  %v1599 = vld [vmem:[%s2 + $0xc] sm:$0xf]
  %v1600 = vunpack.c.l.b16 %v1385
  %v1601 = vunpack.c.l.b16 %v1399
  %v1602 = vunpack.c.l.b16 %v1413
  %v1603 = vunpack.c.l.b16 %v1427
  %v1604 = vunpack.c.l.b16 %v1441
  %v1605 = vunpack.c.l.b16 %v1455
  %v1606 = vunpack.c.l.b16 %v1469
  %v1607 = vunpack.c.l.b16 %v1483
  %v1608 = vunpack.c.l.b16 %v1497
  %v1609 = vunpack.c.l.b16 %v1511
  %v1610 = vunpack.c.l.b16 %v1525
  %v1611 = vunpack.c.l.b16 %v1539
  %v1612 = vunpack.c.l.b16 %v1553
  %v1613 = vunpack.c.l.b16 %v1567
  %v1614 = vunpack.c.l.b16 %v1581
  %v1615 = vunpack.c.l.b16 %v1595
  %v1616 = vpack.c.b16 %v1601, %v1600
  %v1617 = vpack.c.b16 %v1603, %v1602
  %v1618 = vpack.c.b16 %v1605, %v1604
  %v1619 = vpack.c.b16 %v1607, %v1606
  %v1620 = vpack.c.b16 %v1609, %v1608
  %v1621 = vpack.c.b16 %v1611, %v1610
  %v1622 = vpack.c.b16 %v1613, %v1612
  %v1623 = vpack.c.b16 %v1615, %v1614
  %v1628 = vunpack.c.l.b16 %v1596
  %v1629 = vunpack.c.l.b16 %v1597
  %v1630 = vunpack.c.l.b16 %v1598
  %v1631 = vunpack.c.l.b16 %v1599
  %v1632 = vpack.c.b16 %v1629, %v1628
  %v1633 = vpack.c.b16 %v1631, %v1630
  %vm1636 = vcmask 261120
  %v1638 = vsel %vm1636, %v1616, 0
  %v1641 = vsel %vm1636, %v1617, 0
  %v1644 = vsel %vm1636, %v1618, 0
  %v1647 = vsel %vm1636, %v1619, 0
  %v1650 = vsel %vm1636, %v1620, 0
  %v1653 = vsel %vm1636, %v1621, 0
  %v1656 = vsel %vm1636, %v1622, 0
  %v1659 = vsel %vm1636, %v1623, 0
  %1661 = vmatprep.subr.bf16.mxu0 0
  %1662 = vmatpush1.bf16.msra.mxu0 %v1632
  %1663 = vmatprep.subr.bf16.mxu0 0
  %1664 = vmatpush1.bf16.msra.mxu0 %v1633
  %1665 = vmatprep.subr.bf16.mxu0 0
  %1666 = vmatpush1.bf16.msra.mxu0 0
  %1667 = vmatprep.subr.bf16.mxu0 0
  %1668 = vmatpush1.bf16.msra.mxu0 0
  %1669 = vmatprep.subr.bf16.mxu0 0
  %1670 = vmatpush1.bf16.msra.mxu0 0
  %1671 = vmatprep.subr.bf16.mxu0 0
  %1672 = vmatpush1.bf16.msra.mxu0 0
  %1673 = vmatprep.subr.bf16.mxu0 0
  %1674 = vmatpush1.bf16.msra.mxu0 0
  %1675 = vmatprep.subr.bf16.mxu0 0
  %1676 = vmatpush1.bf16.msra.mxu0 0
  %1677 = vmatprep.subr.bf16.mxu0 0
  %1678 = vmatpush1.bf16.msra.mxu0 0
  %1679 = vmatprep.subr.bf16.mxu0 0
  %1680 = vmatpush1.bf16.msra.mxu0 0
  %1681 = vmatprep.subr.bf16.mxu0 0
  %1682 = vmatpush1.bf16.msra.mxu0 0
  %1683 = vmatprep.subr.bf16.mxu0 0
  %1684 = vmatpush1.bf16.msra.mxu0 0
  %1685 = vmatprep.subr.bf16.mxu0 0
  %1686 = vmatpush1.bf16.msra.mxu0 0
  %1687 = vmatprep.subr.bf16.mxu0 0
  %1688 = vmatpush1.bf16.msra.mxu0 0
  %1689 = vmatprep.subr.bf16.mxu0 0
  %1690 = vmatpush1.bf16.msra.mxu0 0
  %1691 = vmatprep.subr.bf16.mxu0 0
  %1692 = vmatpush1.bf16.msra.mxu0 0
  %1693 = vmatprep.mubr.bf16.mxu0 0
  %1694 = vmatmul.mubr.bf16.gmra.mrb[0].mxu0 %v1638
  %v1695 = vpop.f32.mrb[0].mxu0
  %v1696 = vadd.f32 0.0, %v1695
  %v1697 = vpop.f32.mrb[0].mxu0
  %v1698 = vpop.f32.mrb[0].mxu0
  %v1699 = vadd.f32 0.0, %v1698
  %v1700 = vpop.f32.mrb[0].mxu0
  %1701 = vmatprep.mubr.bf16.mxu0 0
  %1702 = vmatmul.mubr.bf16.gmra.mrb[0].mxu0 %v1641
  %v1703 = vpop.f32.mrb[0].mxu0
  %v1704 = vadd.f32 0.0, %v1703
  %v1705 = vpop.f32.mrb[0].mxu0
  %v1706 = vpop.f32.mrb[0].mxu0
  %v1707 = vadd.f32 0.0, %v1706
  %v1708 = vpop.f32.mrb[0].mxu0
  %1709 = vmatprep.mubr.bf16.mxu0 0
  %1710 = vmatmul.mubr.bf16.gmra.mrb[0].mxu0 %v1644
  %v1711 = vpop.f32.mrb[0].mxu0
  %v1712 = vadd.f32 0.0, %v1711
  %v1713 = vpop.f32.mrb[0].mxu0
  %v1714 = vpop.f32.mrb[0].mxu0
  %v1715 = vadd.f32 0.0, %v1714
  %v1716 = vpop.f32.mrb[0].mxu0
  %1717 = vmatprep.mubr.bf16.mxu0 0
  %1718 = vmatmul.mubr.bf16.gmra.mrb[0].mxu0 %v1647
  %v1719 = vpop.f32.mrb[0].mxu0
  %v1720 = vadd.f32 0.0, %v1719
  %v1721 = vpop.f32.mrb[0].mxu0
  %v1722 = vpop.f32.mrb[0].mxu0
  %v1723 = vadd.f32 0.0, %v1722
  %v1724 = vpop.f32.mrb[0].mxu0
  %1725 = vmatprep.mubr.bf16.mxu0 0
  %1726 = vmatmul.mubr.bf16.gmra.mrb[0].mxu0 %v1650
  %v1727 = vpop.f32.mrb[0].mxu0
  %v1728 = vadd.f32 0.0, %v1727
  %v1729 = vpop.f32.mrb[0].mxu0
  %v1730 = vpop.f32.mrb[0].mxu0
  %v1731 = vadd.f32 0.0, %v1730
  %v1732 = vpop.f32.mrb[0].mxu0
  %1733 = vmatprep.mubr.bf16.mxu0 0
  %1734 = vmatmul.mubr.bf16.gmra.mrb[0].mxu0 %v1653
  %v1735 = vpop.f32.mrb[0].mxu0
  %v1736 = vadd.f32 0.0, %v1735
  %v1737 = vpop.f32.mrb[0].mxu0
  %v1738 = vpop.f32.mrb[0].mxu0
  %v1739 = vadd.f32 0.0, %v1738
  %v1740 = vpop.f32.mrb[0].mxu0
  %1741 = vmatprep.mubr.bf16.mxu0 0
  %1742 = vmatmul.mubr.bf16.gmra.mrb[0].mxu0 %v1656
  %v1743 = vpop.f32.mrb[0].mxu0
  %v1744 = vadd.f32 0.0, %v1743
  %v1745 = vpop.f32.mrb[0].mxu0
  %v1746 = vpop.f32.mrb[0].mxu0
  %v1747 = vadd.f32 0.0, %v1746
  %v1748 = vpop.f32.mrb[0].mxu0
  %1749 = vmatprep.mubr.bf16.mxu0 0
  %1750 = vmatmul.mubr.bf16.gmra.mrb[0].mxu0 %v1659
  %v1751 = vpop.f32.mrb[0].mxu0
  %v1752 = vadd.f32 0.0, %v1751
  %v1753 = vpop.f32.mrb[0].mxu0
  %v1754 = vpop.f32.mrb[0].mxu0
  %v1755 = vadd.f32 0.0, %v1754
  %v1756 = vpop.f32.mrb[0].mxu0
  %1757 = vdwg.mxu0
  %vm1758 = vcmask 31744
  %v1759 = vsel %vm1758, %v1696, 0.0
  %v1760 = vsel %vm1758, %v1699, 0.0
  %v1761 = vadd.f32 %v1759, %v1760
  %v1762 = vsel %vm1758, %v1704, 0.0
  %v1763 = vadd.f32 %v1761, %v1762
  %v1764 = vsel %vm1758, %v1707, 0.0
  %v1765 = vadd.f32 %v1763, %v1764
  %v1766 = vsel %vm1758, %v1712, 0.0
  %v1767 = vadd.f32 %v1765, %v1766
  %v1768 = vsel %vm1758, %v1715, 0.0
  %v1769 = vadd.f32 %v1767, %v1768
  %v1770 = vsel %vm1758, %v1720, 0.0
  %v1771 = vadd.f32 %v1769, %v1770
  %v1772 = vsel %vm1758, %v1723, 0.0
  %v1773 = vadd.f32 %v1771, %v1772
  %v1774 = vrot.slane %v1773, 4
  %v1775 = vadd.f32 %v1773, %v1774
  %v1776 = vrot.slane %v1775, 2
  %v1777 = vadd.f32 %v1775, %v1776
  %v1778 = vrot.slane %v1777, 1
  %v1779 = vadd.f32 %v1777, %v1778
  %v1780 = vsel %vm1758, %v1728, 0.0
  %v1781 = vsel %vm1758, %v1731, 0.0
  %v1782 = vadd.f32 %v1780, %v1781
  %v1783 = vsel %vm1758, %v1736, 0.0
  %v1784 = vadd.f32 %v1782, %v1783
  %v1785 = vsel %vm1758, %v1739, 0.0
  %v1786 = vadd.f32 %v1784, %v1785
  %v1787 = vsel %vm1758, %v1744, 0.0
  %v1788 = vadd.f32 %v1786, %v1787
  %v1789 = vsel %vm1758, %v1747, 0.0
  %v1790 = vadd.f32 %v1788, %v1789
  %v1791 = vsel %vm1758, %v1752, 0.0
  %v1792 = vadd.f32 %v1790, %v1791
  %v1793 = vsel %vm1758, %v1755, 0.0
  %v1794 = vadd.f32 %v1792, %v1793
  %v1795 = vrot.slane %v1794, 4
  %v1796 = vadd.f32 %v1794, %v1795
  %v1797 = vrot.slane %v1796, 2
  %v1798 = vadd.f32 %v1796, %v1797
  %v1799 = vrot.slane %v1798, 1
  %v1800 = vadd.f32 %v1798, %v1799
  %v1801 = vadd.f32 %v1779, 0.0
  %v1802 = vadd.f32 %v1800, 0.0
  %v1803 = vmul.f32 %v1696, %v1696
  %v1804 = vmul.f32 %v1699, %v1699
  %v1805 = vmul.f32 %v1704, %v1704
  %v1806 = vmul.f32 %v1707, %v1707
  %v1807 = vmul.f32 %v1712, %v1712
  %v1808 = vmul.f32 %v1715, %v1715
  %v1809 = vmul.f32 %v1720, %v1720
  %v1810 = vmul.f32 %v1723, %v1723
  %v1811 = vmul.f32 %v1728, %v1728
  %v1812 = vmul.f32 %v1731, %v1731
  %v1813 = vmul.f32 %v1736, %v1736
  %v1814 = vmul.f32 %v1739, %v1739
  %v1815 = vmul.f32 %v1744, %v1744
  %v1816 = vmul.f32 %v1747, %v1747
  %v1817 = vmul.f32 %v1752, %v1752
  %v1818 = vmul.f32 %v1755, %v1755
  %v1819 = vsel %vm1758, %v1803, 0.0
  %v1820 = vsel %vm1758, %v1804, 0.0
  %v1821 = vadd.f32 %v1819, %v1820
  %v1822 = vsel %vm1758, %v1805, 0.0
  %v1823 = vadd.f32 %v1821, %v1822
  %v1824 = vsel %vm1758, %v1806, 0.0
  %v1825 = vadd.f32 %v1823, %v1824
  %v1826 = vsel %vm1758, %v1807, 0.0
  %v1827 = vadd.f32 %v1825, %v1826
  %v1828 = vsel %vm1758, %v1808, 0.0
  %v1829 = vadd.f32 %v1827, %v1828
  %v1830 = vsel %vm1758, %v1809, 0.0
  %v1831 = vadd.f32 %v1829, %v1830
  %v1832 = vsel %vm1758, %v1810, 0.0
  %v1833 = vadd.f32 %v1831, %v1832
  %v1834 = vrot.slane %v1833, 4
  %v1835 = vadd.f32 %v1833, %v1834
  %v1836 = vrot.slane %v1835, 2
  %v1837 = vadd.f32 %v1835, %v1836
  %v1838 = vrot.slane %v1837, 1
  %v1839 = vadd.f32 %v1837, %v1838
  %v1840 = vsel %vm1758, %v1811, 0.0
  %v1841 = vsel %vm1758, %v1812, 0.0
  %v1842 = vadd.f32 %v1840, %v1841
  %v1843 = vsel %vm1758, %v1813, 0.0
  %v1844 = vadd.f32 %v1842, %v1843
  %v1845 = vsel %vm1758, %v1814, 0.0
  %v1846 = vadd.f32 %v1844, %v1845
  %v1847 = vsel %vm1758, %v1815, 0.0
  %v1848 = vadd.f32 %v1846, %v1847
  %v1849 = vsel %vm1758, %v1816, 0.0
  %v1850 = vadd.f32 %v1848, %v1849
  %v1851 = vsel %vm1758, %v1817, 0.0
  %v1852 = vadd.f32 %v1850, %v1851
  %v1853 = vsel %vm1758, %v1818, 0.0
  %v1854 = vadd.f32 %v1852, %v1853
  %v1855 = vrot.slane %v1854, 4
  %v1856 = vadd.f32 %v1854, %v1855
  %v1857 = vrot.slane %v1856, 2
  %v1858 = vadd.f32 %v1856, %v1857
  %v1859 = vrot.slane %v1858, 1
  %v1860 = vadd.f32 %v1858, %v1859
  %v1861 = vadd.f32 %v1839, 0.0
  %v1862 = vadd.f32 %v1860, 0.0
  %1863 = vst.msk [vmem:[%s3] sm:$0xff] %vm1758, %v1696
  %1864 = vst.msk [vmem:[%s3 + $0x8] sm:$0xff] %vm1758, %v1699
  %1865 = vst.msk [vmem:[%s3 + $0x10] sm:$0xff] %vm1758, %v1704
  %1866 = vst.msk [vmem:[%s3 + $0x18] sm:$0xff] %vm1758, %v1707
  %1867 = vst.msk [vmem:[%s3 + $0x20] sm:$0xff] %vm1758, %v1712
  %1868 = vst.msk [vmem:[%s3 + $0x28] sm:$0xff] %vm1758, %v1715
  %1869 = vst.msk [vmem:[%s3 + $0x30] sm:$0xff] %vm1758, %v1720
  %1870 = vst.msk [vmem:[%s3 + $0x38] sm:$0xff] %vm1758, %v1723
  %1871 = vst.msk [vmem:[%s3 + $0x40] sm:$0xff] %vm1758, %v1728
  %1872 = vst.msk [vmem:[%s3 + $0x48] sm:$0xff] %vm1758, %v1731
  %1873 = vst.msk [vmem:[%s3 + $0x50] sm:$0xff] %vm1758, %v1736
  %1874 = vst.msk [vmem:[%s3 + $0x58] sm:$0xff] %vm1758, %v1739
  %1875 = vst.msk [vmem:[%s3 + $0x60] sm:$0xff] %vm1758, %v1744
  %1876 = vst.msk [vmem:[%s3 + $0x68] sm:$0xff] %vm1758, %v1747
  %1877 = vst.msk [vmem:[%s3 + $0x70] sm:$0xff] %vm1758, %v1752
  %1878 = vst.msk [vmem:[%s3 + $0x78] sm:$0xff] %vm1758, %v1755
  %v1879 = vld [vmem:[%s495] sm:$0xe]
  %v1880 = vld [vmem:[%s495 + $0x4] sm:$0x1]
  %v1881 = vld [vmem:[%s495 + $0x8] sm:$0xe]
  %v1882 = vld [vmem:[%s495 + $0xc] sm:$0x1]
  %v1883 = vld [vmem:[%s495 + $0x10] sm:$0xe]
  %v1884 = vld [vmem:[%s495 + $0x14] sm:$0x1]
  %v1885 = vld [vmem:[%s495 + $0x18] sm:$0xe]
  %v1886 = vld [vmem:[%s495 + $0x1c] sm:$0x1]
  %v1887 = vld [vmem:[%s495 + $0x20] sm:$0xe]
  %v1888 = vld [vmem:[%s495 + $0x24] sm:$0x1]
  %v1889 = vld [vmem:[%s495 + $0x28] sm:$0xe]
  %v1890 = vld [vmem:[%s495 + $0x2c] sm:$0x1]
  %v1891 = vld [vmem:[%s495 + $0x30] sm:$0xe]
  %v1892 = vld [vmem:[%s495 + $0x34] sm:$0x1]
  %v1893 = vld [vmem:[%s495 + $0x38] sm:$0xe]
  %v1894 = vld [vmem:[%s495 + $0x3c] sm:$0x1]
  %v1895 = vld [vmem:[%s495 + $0x50] sm:$0xe]
  %v1896 = vld [vmem:[%s495 + $0x54] sm:$0x1]
  %v1897 = vld [vmem:[%s495 + $0x58] sm:$0xe]
  %v1898 = vld [vmem:[%s495 + $0x5c] sm:$0x1]
  %v1899 = vld [vmem:[%s495 + $0x60] sm:$0xe]
  %v1900 = vld [vmem:[%s495 + $0x64] sm:$0x1]
  %v1901 = vld [vmem:[%s495 + $0x68] sm:$0xe]
  %v1902 = vld [vmem:[%s495 + $0x6c] sm:$0x1]
  %v1903 = vld [vmem:[%s495 + $0x70] sm:$0xe]
  %v1904 = vld [vmem:[%s495 + $0x74] sm:$0x1]
  %v1905 = vld [vmem:[%s495 + $0x78] sm:$0xe]
  %v1906 = vld [vmem:[%s495 + $0x7c] sm:$0x1]
  %v1907 = vld [vmem:[%s495 + $0x80] sm:$0xe]
  %v1908 = vld [vmem:[%s495 + $0x84] sm:$0x1]
  %v1909 = vld [vmem:[%s495 + $0x88] sm:$0xe]
  %v1910 = vld [vmem:[%s495 + $0x8c] sm:$0x1]
  %v1911 = vld [vmem:[%s495] sm:$0xf]
  %v1912 = vld [vmem:[%s495 + $0x8] sm:$0xf]
  %v1913 = vld [vmem:[%s495 + $0x10] sm:$0xf]
  %v1914 = vld [vmem:[%s495 + $0x18] sm:$0xf]
  %v1915 = vld [vmem:[%s495 + $0x20] sm:$0xf]
  %v1916 = vld [vmem:[%s495 + $0x28] sm:$0xf]
  %v1917 = vld [vmem:[%s495 + $0x30] sm:$0xf]
  %v1918 = vld [vmem:[%s495 + $0x38] sm:$0xf]
  %v1919 = vld [vmem:[%s495 + $0x50] sm:$0xf]
  %v1920 = vld [vmem:[%s495 + $0x58] sm:$0xf]
  %v1921 = vld [vmem:[%s495 + $0x60] sm:$0xf]
  %v1922 = vld [vmem:[%s495 + $0x68] sm:$0xf]
  %v1923 = vld [vmem:[%s495 + $0x70] sm:$0xf]
  %v1924 = vld [vmem:[%s495 + $0x78] sm:$0xf]
  %v1925 = vld [vmem:[%s495 + $0x80] sm:$0xf]
  %v1926 = vld [vmem:[%s495 + $0x88] sm:$0xf]
  %v1927 = vld [vmem:[#allocation2] sm:$0xe]
  %v1928 = vld [vmem:[#allocation2 + $0x4] sm:$0x1]
  %v1929 = vld [vmem:[#allocation2 + $0x8] sm:$0xe]
  %v1930 = vld [vmem:[#allocation2 + $0xc] sm:$0x1]
  %v1931 = vld [vmem:[#allocation2 + $0x10] sm:$0xe]
  %v1932 = vld [vmem:[#allocation2 + $0x14] sm:$0x1]
  %v1933 = vld [vmem:[#allocation2 + $0x18] sm:$0xe]
  %v1934 = vld [vmem:[#allocation2 + $0x1c] sm:$0x1]
  %v1935 = vld [vmem:[#allocation2 + $0x20] sm:$0xe]
  %v1936 = vld [vmem:[#allocation2 + $0x24] sm:$0x1]
  %v1937 = vld [vmem:[#allocation2 + $0x28] sm:$0xe]
  %v1938 = vld [vmem:[#allocation2 + $0x2c] sm:$0x1]
  %v1939 = vld [vmem:[#allocation2 + $0x30] sm:$0xe]
  %v1940 = vld [vmem:[#allocation2 + $0x34] sm:$0x1]
  %v1941 = vld [vmem:[#allocation2 + $0x38] sm:$0xe]
  %v1942 = vld [vmem:[#allocation2 + $0x3c] sm:$0x1]
  %v1943 = vld [vmem:[#allocation2 + $0x50] sm:$0xe]
  %v1944 = vld [vmem:[#allocation2 + $0x54] sm:$0x1]
  %v1945 = vld [vmem:[#allocation2 + $0x58] sm:$0xe]
  %v1946 = vld [vmem:[#allocation2 + $0x5c] sm:$0x1]
  %v1947 = vld [vmem:[#allocation2 + $0x60] sm:$0xe]
  %v1948 = vld [vmem:[#allocation2 + $0x64] sm:$0x1]
  %v1949 = vld [vmem:[#allocation2 + $0x68] sm:$0xe]
  %v1950 = vld [vmem:[#allocation2 + $0x6c] sm:$0x1]
  %v1951 = vld [vmem:[#allocation2 + $0x70] sm:$0xe]
  %v1952 = vld [vmem:[#allocation2 + $0x74] sm:$0x1]
  %v1953 = vld [vmem:[#allocation2 + $0x78] sm:$0xe]
  %v1954 = vld [vmem:[#allocation2 + $0x7c] sm:$0x1]
  %v1955 = vld [vmem:[#allocation2 + $0x80] sm:$0xe]
  %v1956 = vld [vmem:[#allocation2 + $0x84] sm:$0x1]
  %v1957 = vld [vmem:[#allocation2 + $0x88] sm:$0xe]
  %v1958 = vld [vmem:[#allocation2 + $0x8c] sm:$0x1]
  %v1959 = vld [vmem:[#allocation2] sm:$0xf]
  %v1960 = vld [vmem:[#allocation2 + $0x8] sm:$0xf]
  %v1961 = vld [vmem:[#allocation2 + $0x10] sm:$0xf]
  %v1962 = vld [vmem:[#allocation2 + $0x18] sm:$0xf]
  %v1963 = vld [vmem:[#allocation2 + $0x20] sm:$0xf]
  %v1964 = vld [vmem:[#allocation2 + $0x28] sm:$0xf]
  %v1965 = vld [vmem:[#allocation2 + $0x30] sm:$0xf]
  %v1966 = vld [vmem:[#allocation2 + $0x38] sm:$0xf]
  %v1967 = vld [vmem:[#allocation2 + $0x50] sm:$0xf]
  %v1968 = vld [vmem:[#allocation2 + $0x58] sm:$0xf]
  %v1969 = vld [vmem:[#allocation2 + $0x60] sm:$0xf]
  %v1970 = vld [vmem:[#allocation2 + $0x68] sm:$0xf]
  %v1971 = vld [vmem:[#allocation2 + $0x70] sm:$0xf]
  %v1972 = vld [vmem:[#allocation2 + $0x78] sm:$0xf]
  %v1973 = vld [vmem:[#allocation2 + $0x80] sm:$0xf]
  %v1974 = vld [vmem:[#allocation2 + $0x88] sm:$0xf]
  %v2007 = vunpack.c.l.b16 %v1879
  %v2008 = vunpack.c.l.b16 %v1880
  %v2009 = vunpack.c.l.b16 %v1881
  %v2010 = vunpack.c.l.b16 %v1882
  %v2011 = vunpack.c.l.b16 %v1883
  %v2012 = vunpack.c.l.b16 %v1884
  %v2013 = vunpack.c.l.b16 %v1885
  %v2014 = vunpack.c.l.b16 %v1886
  %v2015 = vunpack.c.l.b16 %v1887
  %v2016 = vunpack.c.l.b16 %v1888
  %v2017 = vunpack.c.l.b16 %v1889
  %v2018 = vunpack.c.l.b16 %v1890
  %v2019 = vunpack.c.l.b16 %v1891
  %v2020 = vunpack.c.l.b16 %v1892
  %v2021 = vunpack.c.l.b16 %v1893
  %v2022 = vunpack.c.l.b16 %v1894
  %v2023 = vunpack.c.l.b16 %v1895
  %v2024 = vunpack.c.l.b16 %v1896
  %v2025 = vunpack.c.l.b16 %v1897
  %v2026 = vunpack.c.l.b16 %v1898
  %v2027 = vunpack.c.l.b16 %v1899
  %v2028 = vunpack.c.l.b16 %v1900
  %v2029 = vunpack.c.l.b16 %v1901
  %v2030 = vunpack.c.l.b16 %v1902
  %v2031 = vunpack.c.l.b16 %v1903
  %v2032 = vunpack.c.l.b16 %v1904
  %v2033 = vunpack.c.l.b16 %v1905
  %v2034 = vunpack.c.l.b16 %v1906
  %v2035 = vunpack.c.l.b16 %v1907
  %v2036 = vunpack.c.l.b16 %v1908
  %v2037 = vunpack.c.l.b16 %v1909
  %v2038 = vunpack.c.l.b16 %v1910
  %v2039 = vpack.c.b16 %v2008, %v2007
  %v2040 = vpack.c.b16 %v2010, %v2009
  %v2041 = vpack.c.b16 %v2012, %v2011
  %v2042 = vpack.c.b16 %v2014, %v2013
  %v2043 = vpack.c.b16 %v2016, %v2015
  %v2044 = vpack.c.b16 %v2018, %v2017
  %v2045 = vpack.c.b16 %v2020, %v2019
  %v2046 = vpack.c.b16 %v2022, %v2021
  %v2047 = vpack.c.b16 %v2024, %v2023
  %v2048 = vpack.c.b16 %v2026, %v2025
  %v2049 = vpack.c.b16 %v2028, %v2027
  %v2050 = vpack.c.b16 %v2030, %v2029
  %v2051 = vpack.c.b16 %v2032, %v2031
  %v2052 = vpack.c.b16 %v2034, %v2033
  %v2053 = vpack.c.b16 %v2036, %v2035
  %v2054 = vpack.c.b16 %v2038, %v2037
  %v2071 = vunpack.c.l.b16 %v1911
  %v2072 = vunpack.c.l.b16 %v1912
  %v2073 = vunpack.c.l.b16 %v1913
  %v2074 = vunpack.c.l.b16 %v1914
  %v2075 = vunpack.c.l.b16 %v1915
  %v2076 = vunpack.c.l.b16 %v1916
  %v2077 = vunpack.c.l.b16 %v1917
  %v2078 = vunpack.c.l.b16 %v1918
  %v2079 = vunpack.c.l.b16 %v1919
  %v2080 = vunpack.c.l.b16 %v1920
  %v2081 = vunpack.c.l.b16 %v1921
  %v2082 = vunpack.c.l.b16 %v1922
  %v2083 = vunpack.c.l.b16 %v1923
  %v2084 = vunpack.c.l.b16 %v1924
  %v2085 = vunpack.c.l.b16 %v1925
  %v2086 = vunpack.c.l.b16 %v1926
  %v2087 = vpack.c.b16 %v2008, %v2071
  %v2088 = vpack.c.b16 %v2010, %v2072
  %v2089 = vpack.c.b16 %v2012, %v2073
  %v2090 = vpack.c.b16 %v2014, %v2074
  %v2091 = vpack.c.b16 %v2016, %v2075
  %v2092 = vpack.c.b16 %v2018, %v2076
  %v2093 = vpack.c.b16 %v2020, %v2077
  %v2094 = vpack.c.b16 %v2022, %v2078
  %v2095 = vpack.c.b16 %v2024, %v2079
  %v2096 = vpack.c.b16 %v2026, %v2080
  %v2097 = vpack.c.b16 %v2028, %v2081
  %v2098 = vpack.c.b16 %v2030, %v2082
  %v2099 = vpack.c.b16 %v2032, %v2083
  %v2100 = vpack.c.b16 %v2034, %v2084
  %v2101 = vpack.c.b16 %v2036, %v2085
  %v2102 = vpack.c.b16 %v2038, %v2086
  %v2104 = vshrl.u32 %v2087, 16
  %v2106 = vrot.slane %v2104, 7
  %v2107 = vshll.u32 %v2087, 16
  %v2109 = vor.u32 %v2106, %v2107
  %v2111 = vshrl.u32 %v2088, 16
  %v2113 = vrot.slane %v2111, 7
  %v2114 = vshll.u32 %v2088, 16
  %v2116 = vor.u32 %v2113, %v2114
  %v2118 = vshrl.u32 %v2089, 16
  %v2120 = vrot.slane %v2118, 7
  %v2121 = vshll.u32 %v2089, 16
  %v2123 = vor.u32 %v2120, %v2121
  %v2125 = vshrl.u32 %v2090, 16
  %v2127 = vrot.slane %v2125, 7
  %v2128 = vshll.u32 %v2090, 16
  %v2130 = vor.u32 %v2127, %v2128
  %v2132 = vshrl.u32 %v2091, 16
  %v2134 = vrot.slane %v2132, 7
  %v2135 = vshll.u32 %v2091, 16
  %v2137 = vor.u32 %v2134, %v2135
  %v2139 = vshrl.u32 %v2092, 16
  %v2141 = vrot.slane %v2139, 7
  %v2142 = vshll.u32 %v2092, 16
  %v2144 = vor.u32 %v2141, %v2142
  %v2146 = vshrl.u32 %v2093, 16
  %v2148 = vrot.slane %v2146, 7
  %v2149 = vshll.u32 %v2093, 16
  %v2151 = vor.u32 %v2148, %v2149
  %v2153 = vshrl.u32 %v2094, 16
  %v2155 = vrot.slane %v2153, 7
  %v2156 = vshll.u32 %v2094, 16
  %v2158 = vor.u32 %v2155, %v2156
  %v2160 = vshrl.u32 %v2095, 16
  %v2162 = vrot.slane %v2160, 7
  %v2163 = vshll.u32 %v2095, 16
  %v2165 = vor.u32 %v2162, %v2163
  %v2167 = vshrl.u32 %v2096, 16
  %v2169 = vrot.slane %v2167, 7
  %v2170 = vshll.u32 %v2096, 16
  %v2172 = vor.u32 %v2169, %v2170
  %v2174 = vshrl.u32 %v2097, 16
  %v2176 = vrot.slane %v2174, 7
  %v2177 = vshll.u32 %v2097, 16
  %v2179 = vor.u32 %v2176, %v2177
  %v2181 = vshrl.u32 %v2098, 16
  %v2183 = vrot.slane %v2181, 7
  %v2184 = vshll.u32 %v2098, 16
  %v2186 = vor.u32 %v2183, %v2184
  %v2188 = vshrl.u32 %v2099, 16
  %v2190 = vrot.slane %v2188, 7
  %v2191 = vshll.u32 %v2099, 16
  %v2193 = vor.u32 %v2190, %v2191
  %v2195 = vshrl.u32 %v2100, 16
  %v2197 = vrot.slane %v2195, 7
  %v2198 = vshll.u32 %v2100, 16
  %v2200 = vor.u32 %v2197, %v2198
  %v2202 = vshrl.u32 %v2101, 16
  %v2204 = vrot.slane %v2202, 7
  %v2205 = vshll.u32 %v2101, 16
  %v2207 = vor.u32 %v2204, %v2205
  %v2209 = vshrl.u32 %v2102, 16
  %v2211 = vrot.slane %v2209, 7
  %v2212 = vshll.u32 %v2102, 16
  %v2214 = vor.u32 %v2211, %v2212
  %2215 = vrot.lane.b32.xlu0 %v2109, 8
  %v2216 = vpop.permute.xlu0 %2215
  %2217 = vrot.lane.b32.xlu0 %v2116, 8
  %v2218 = vpop.permute.xlu0 %2217
  %2219 = vrot.lane.b32.xlu0 %v2123, 8
  %v2220 = vpop.permute.xlu0 %2219
  %2221 = vrot.lane.b32.xlu0 %v2130, 8
  %v2222 = vpop.permute.xlu0 %2221
  %2223 = vrot.lane.b32.xlu0 %v2137, 8
  %v2224 = vpop.permute.xlu0 %2223
  %2225 = vrot.lane.b32.xlu0 %v2144, 8
  %v2226 = vpop.permute.xlu0 %2225
  %2227 = vrot.lane.b32.xlu0 %v2151, 8
  %v2228 = vpop.permute.xlu0 %2227
  %2229 = vrot.lane.b32.xlu0 %v2158, 8
  %v2230 = vpop.permute.xlu0 %2229
  %2231 = vrot.lane.b32.xlu0 %v2165, 8
  %v2232 = vpop.permute.xlu0 %2231
  %2233 = vrot.lane.b32.xlu0 %v2172, 8
  %v2234 = vpop.permute.xlu0 %2233
  %2235 = vrot.lane.b32.xlu0 %v2179, 8
  %v2236 = vpop.permute.xlu0 %2235
  %2237 = vrot.lane.b32.xlu0 %v2186, 8
  %v2238 = vpop.permute.xlu0 %2237
  %2239 = vrot.lane.b32.xlu0 %v2193, 8
  %v2240 = vpop.permute.xlu0 %2239
  %2241 = vrot.lane.b32.xlu0 %v2200, 8
  %v2242 = vpop.permute.xlu0 %2241
  %2243 = vrot.lane.b32.xlu0 %v2207, 8
  %v2244 = vpop.permute.xlu0 %2243
  %2245 = vrot.lane.b32.xlu0 %v2214, 8
  %v2246 = vpop.permute.xlu0 %2245
  %v2279 = vunpack.c.l.b16 %v1927
  %v2280 = vunpack.c.l.b16 %v1928
  %v2281 = vunpack.c.l.b16 %v1929
  %v2282 = vunpack.c.l.b16 %v1930
  %v2283 = vunpack.c.l.b16 %v1931
  %v2284 = vunpack.c.l.b16 %v1932
  %v2285 = vunpack.c.l.b16 %v1933
  %v2286 = vunpack.c.l.b16 %v1934
  %v2287 = vunpack.c.l.b16 %v1935
  %v2288 = vunpack.c.l.b16 %v1936
  %v2289 = vunpack.c.l.b16 %v1937
  %v2290 = vunpack.c.l.b16 %v1938
  %v2291 = vunpack.c.l.b16 %v1939
  %v2292 = vunpack.c.l.b16 %v1940
  %v2293 = vunpack.c.l.b16 %v1941
  %v2294 = vunpack.c.l.b16 %v1942
  %v2295 = vunpack.c.l.b16 %v1943
  %v2296 = vunpack.c.l.b16 %v1944
  %v2297 = vunpack.c.l.b16 %v1945
  %v2298 = vunpack.c.l.b16 %v1946
  %v2299 = vunpack.c.l.b16 %v1947
  %v2300 = vunpack.c.l.b16 %v1948
  %v2301 = vunpack.c.l.b16 %v1949
  %v2302 = vunpack.c.l.b16 %v1950
  %v2303 = vunpack.c.l.b16 %v1951
  %v2304 = vunpack.c.l.b16 %v1952
  %v2305 = vunpack.c.l.b16 %v1953
  %v2306 = vunpack.c.l.b16 %v1954
  %v2307 = vunpack.c.l.b16 %v1955
  %v2308 = vunpack.c.l.b16 %v1956
  %v2309 = vunpack.c.l.b16 %v1957
  %v2310 = vunpack.c.l.b16 %v1958
  %v2311 = vpack.c.b16 %v2280, %v2279
  %v2312 = vpack.c.b16 %v2282, %v2281
  %v2313 = vpack.c.b16 %v2284, %v2283
  %v2314 = vpack.c.b16 %v2286, %v2285
  %v2315 = vpack.c.b16 %v2288, %v2287
  %v2316 = vpack.c.b16 %v2290, %v2289
  %v2317 = vpack.c.b16 %v2292, %v2291
  %v2318 = vpack.c.b16 %v2294, %v2293
  %v2319 = vpack.c.b16 %v2296, %v2295
  %v2320 = vpack.c.b16 %v2298, %v2297
  %v2321 = vpack.c.b16 %v2300, %v2299
  %v2322 = vpack.c.b16 %v2302, %v2301
  %v2323 = vpack.c.b16 %v2304, %v2303
  %v2324 = vpack.c.b16 %v2306, %v2305
  %v2325 = vpack.c.b16 %v2308, %v2307
  %v2326 = vpack.c.b16 %v2310, %v2309
  %2327 = vrot.lane.b32.xlu0 %v2311, 16
  %v2328 = vpop.permute.xlu0 %2327
  %2329 = vrot.lane.b32.xlu0 %v2312, 16
  %v2330 = vpop.permute.xlu0 %2329
  %2331 = vrot.lane.b32.xlu0 %v2313, 16
  %v2332 = vpop.permute.xlu0 %2331
  %2333 = vrot.lane.b32.xlu0 %v2314, 16
  %v2334 = vpop.permute.xlu0 %2333
  %2335 = vrot.lane.b32.xlu0 %v2315, 16
  %v2336 = vpop.permute.xlu0 %2335
  %2337 = vrot.lane.b32.xlu0 %v2316, 16
  %v2338 = vpop.permute.xlu0 %2337
  %2339 = vrot.lane.b32.xlu0 %v2317, 16
  %v2340 = vpop.permute.xlu0 %2339
  %2341 = vrot.lane.b32.xlu0 %v2318, 16
  %v2342 = vpop.permute.xlu0 %2341
  %2343 = vrot.lane.b32.xlu0 %v2319, 16
  %v2344 = vpop.permute.xlu0 %2343
  %2345 = vrot.lane.b32.xlu0 %v2320, 16
  %v2346 = vpop.permute.xlu0 %2345
  %2347 = vrot.lane.b32.xlu0 %v2321, 16
  %v2348 = vpop.permute.xlu0 %2347
  %2349 = vrot.lane.b32.xlu0 %v2322, 16
  %v2350 = vpop.permute.xlu0 %2349
  %2351 = vrot.lane.b32.xlu0 %v2323, 16
  %v2352 = vpop.permute.xlu0 %2351
  %2353 = vrot.lane.b32.xlu0 %v2324, 16
  %v2354 = vpop.permute.xlu0 %2353
  %2355 = vrot.lane.b32.xlu0 %v2325, 16
  %v2356 = vpop.permute.xlu0 %2355
  %2357 = vrot.lane.b32.xlu0 %v2326, 16
  %v2358 = vpop.permute.xlu0 %2357
  %v2375 = vunpack.c.l.b16 %v1959
  %v2376 = vunpack.c.l.b16 %v1960
  %v2377 = vunpack.c.l.b16 %v1961
  %v2378 = vunpack.c.l.b16 %v1962
  %v2379 = vunpack.c.l.b16 %v1963
  %v2380 = vunpack.c.l.b16 %v1964
  %v2381 = vunpack.c.l.b16 %v1965
  %v2382 = vunpack.c.l.b16 %v1966
  %v2383 = vunpack.c.l.b16 %v1967
  %v2384 = vunpack.c.l.b16 %v1968
  %v2385 = vunpack.c.l.b16 %v1969
  %v2386 = vunpack.c.l.b16 %v1970
  %v2387 = vunpack.c.l.b16 %v1971
  %v2388 = vunpack.c.l.b16 %v1972
  %v2389 = vunpack.c.l.b16 %v1973
  %v2390 = vunpack.c.l.b16 %v1974
  %v2391 = vpack.c.b16 %v2280, %v2375
  %v2392 = vpack.c.b16 %v2282, %v2376
  %v2393 = vpack.c.b16 %v2284, %v2377
  %v2394 = vpack.c.b16 %v2286, %v2378
  %v2395 = vpack.c.b16 %v2288, %v2379
  %v2396 = vpack.c.b16 %v2290, %v2380
  %v2397 = vpack.c.b16 %v2292, %v2381
  %v2398 = vpack.c.b16 %v2294, %v2382
  %v2399 = vpack.c.b16 %v2296, %v2383
  %v2400 = vpack.c.b16 %v2298, %v2384
  %v2401 = vpack.c.b16 %v2300, %v2385
  %v2402 = vpack.c.b16 %v2302, %v2386
  %v2403 = vpack.c.b16 %v2304, %v2387
  %v2404 = vpack.c.b16 %v2306, %v2388
  %v2405 = vpack.c.b16 %v2308, %v2389
  %v2406 = vpack.c.b16 %v2310, %v2390
  %v2408 = vshrl.u32 %v2391, 16
  %v2410 = vrot.slane %v2408, 7
  %v2411 = vshll.u32 %v2391, 16
  %v2413 = vor.u32 %v2410, %v2411
  %v2415 = vshrl.u32 %v2392, 16
  %v2417 = vrot.slane %v2415, 7
  %v2418 = vshll.u32 %v2392, 16
  %v2420 = vor.u32 %v2417, %v2418
  %v2422 = vshrl.u32 %v2393, 16
  %v2424 = vrot.slane %v2422, 7
  %v2425 = vshll.u32 %v2393, 16
  %v2427 = vor.u32 %v2424, %v2425
  %v2429 = vshrl.u32 %v2394, 16
  %v2431 = vrot.slane %v2429, 7
  %v2432 = vshll.u32 %v2394, 16
  %v2434 = vor.u32 %v2431, %v2432
  %v2436 = vshrl.u32 %v2395, 16
  %v2438 = vrot.slane %v2436, 7
  %v2439 = vshll.u32 %v2395, 16
  %v2441 = vor.u32 %v2438, %v2439
  %v2443 = vshrl.u32 %v2396, 16
  %v2445 = vrot.slane %v2443, 7
  %v2446 = vshll.u32 %v2396, 16
  %v2448 = vor.u32 %v2445, %v2446
  %v2450 = vshrl.u32 %v2397, 16
  %v2452 = vrot.slane %v2450, 7
  %v2453 = vshll.u32 %v2397, 16
  %v2455 = vor.u32 %v2452, %v2453
  %v2457 = vshrl.u32 %v2398, 16
  %v2459 = vrot.slane %v2457, 7
  %v2460 = vshll.u32 %v2398, 16
  %v2462 = vor.u32 %v2459, %v2460
  %v2464 = vshrl.u32 %v2399, 16
  %v2466 = vrot.slane %v2464, 7
  %v2467 = vshll.u32 %v2399, 16
  %v2469 = vor.u32 %v2466, %v2467
  %v2471 = vshrl.u32 %v2400, 16
  %v2473 = vrot.slane %v2471, 7
  %v2474 = vshll.u32 %v2400, 16
  %v2476 = vor.u32 %v2473, %v2474
  %v2478 = vshrl.u32 %v2401, 16
  %v2480 = vrot.slane %v2478, 7
  %v2481 = vshll.u32 %v2401, 16
  %v2483 = vor.u32 %v2480, %v2481
  %v2485 = vshrl.u32 %v2402, 16
  %v2487 = vrot.slane %v2485, 7
  %v2488 = vshll.u32 %v2402, 16
  %v2490 = vor.u32 %v2487, %v2488
  %v2492 = vshrl.u32 %v2403, 16
  %v2494 = vrot.slane %v2492, 7
  %v2495 = vshll.u32 %v2403, 16
  %v2497 = vor.u32 %v2494, %v2495
  %v2499 = vshrl.u32 %v2404, 16
  %v2501 = vrot.slane %v2499, 7
  %v2502 = vshll.u32 %v2404, 16
  %v2504 = vor.u32 %v2501, %v2502
  %v2506 = vshrl.u32 %v2405, 16
  %v2508 = vrot.slane %v2506, 7
  %v2509 = vshll.u32 %v2405, 16
  %v2511 = vor.u32 %v2508, %v2509
  %v2513 = vshrl.u32 %v2406, 16
  %v2515 = vrot.slane %v2513, 7
  %v2516 = vshll.u32 %v2406, 16
  %v2518 = vor.u32 %v2515, %v2516
  %2519 = vrot.lane.b32.xlu0 %v2413, 24
  %v2520 = vpop.permute.xlu0 %2519
  %2521 = vrot.lane.b32.xlu0 %v2420, 24
  %v2522 = vpop.permute.xlu0 %2521
  %2523 = vrot.lane.b32.xlu0 %v2427, 24
  %v2524 = vpop.permute.xlu0 %2523
  %2525 = vrot.lane.b32.xlu0 %v2434, 24
  %v2526 = vpop.permute.xlu0 %2525
  %2527 = vrot.lane.b32.xlu0 %v2441, 24
  %v2528 = vpop.permute.xlu0 %2527
  %2529 = vrot.lane.b32.xlu0 %v2448, 24
  %v2530 = vpop.permute.xlu0 %2529
  %2531 = vrot.lane.b32.xlu0 %v2455, 24
  %v2532 = vpop.permute.xlu0 %2531
  %2533 = vrot.lane.b32.xlu0 %v2462, 24
  %v2534 = vpop.permute.xlu0 %2533
  %2535 = vrot.lane.b32.xlu0 %v2469, 24
  %v2536 = vpop.permute.xlu0 %2535
  %2537 = vrot.lane.b32.xlu0 %v2476, 24
  %v2538 = vpop.permute.xlu0 %2537
  %2539 = vrot.lane.b32.xlu0 %v2483, 24
  %v2540 = vpop.permute.xlu0 %2539
  %2541 = vrot.lane.b32.xlu0 %v2490, 24
  %v2542 = vpop.permute.xlu0 %2541
  %2543 = vrot.lane.b32.xlu0 %v2497, 24
  %v2544 = vpop.permute.xlu0 %2543
  %2545 = vrot.lane.b32.xlu0 %v2504, 24
  %v2546 = vpop.permute.xlu0 %2545
  %2547 = vrot.lane.b32.xlu0 %v2511, 24
  %v2548 = vpop.permute.xlu0 %2547
  %2549 = vrot.lane.b32.xlu0 %v2518, 24
  %v2550 = vpop.permute.xlu0 %2549
  %v2553 = vsel %vm1174, %v2039, %v2216
  %v2556 = vsel %vm1174, %v2040, %v2218
  %v2559 = vsel %vm1174, %v2041, %v2220
  %v2562 = vsel %vm1174, %v2042, %v2222
  %v2565 = vsel %vm1174, %v2043, %v2224
  %v2568 = vsel %vm1174, %v2044, %v2226
  %v2571 = vsel %vm1174, %v2045, %v2228
  %v2574 = vsel %vm1174, %v2046, %v2230
  %v2577 = vsel %vm1174, %v2047, %v2232
  %v2580 = vsel %vm1174, %v2048, %v2234
  %v2583 = vsel %vm1174, %v2049, %v2236
  %v2586 = vsel %vm1174, %v2050, %v2238
  %v2589 = vsel %vm1174, %v2051, %v2240
  %v2592 = vsel %vm1174, %v2052, %v2242
  %v2595 = vsel %vm1174, %v2053, %v2244
  %v2598 = vsel %vm1174, %v2054, %v2246
  %v2600 = vsel %vm1223, %v2553, %v2328
  %v2602 = vsel %vm1223, %v2556, %v2330
  %v2604 = vsel %vm1223, %v2559, %v2332
  %v2606 = vsel %vm1223, %v2562, %v2334
  %v2608 = vsel %vm1223, %v2565, %v2336
  %v2610 = vsel %vm1223, %v2568, %v2338
  %v2612 = vsel %vm1223, %v2571, %v2340
  %v2614 = vsel %vm1223, %v2574, %v2342
  %v2616 = vsel %vm1223, %v2577, %v2344
  %v2618 = vsel %vm1223, %v2580, %v2346
  %v2620 = vsel %vm1223, %v2583, %v2348
  %v2622 = vsel %vm1223, %v2586, %v2350
  %v2624 = vsel %vm1223, %v2589, %v2352
  %v2626 = vsel %vm1223, %v2592, %v2354
  %v2628 = vsel %vm1223, %v2595, %v2356
  %v2630 = vsel %vm1223, %v2598, %v2358
  %v2632 = vsel %vm1256, %v2600, %v2520
  %v2634 = vsel %vm1256, %v2602, %v2522
  %v2636 = vsel %vm1256, %v2604, %v2524
  %v2638 = vsel %vm1256, %v2606, %v2526
  %v2640 = vsel %vm1256, %v2608, %v2528
  %v2642 = vsel %vm1256, %v2610, %v2530
  %v2644 = vsel %vm1256, %v2612, %v2532
  %v2646 = vsel %vm1256, %v2614, %v2534
  %v2648 = vsel %vm1256, %v2616, %v2536
  %v2650 = vsel %vm1256, %v2618, %v2538
  %v2652 = vsel %vm1256, %v2620, %v2540
  %v2654 = vsel %vm1256, %v2622, %v2542
  %v2656 = vsel %vm1256, %v2624, %v2544
  %v2658 = vsel %vm1256, %v2626, %v2546
  %v2660 = vsel %vm1256, %v2628, %v2548
  %v2662 = vsel %vm1256, %v2630, %v2550
  %v2679 = vunpack.c.l.b16 %v2632
  %v2680 = vunpack.c.h.b16 %v2632
  %v2681 = vunpack.c.l.b16 %v2634
  %v2682 = vunpack.c.h.b16 %v2634
  %v2683 = vunpack.c.l.b16 %v2636
  %v2684 = vunpack.c.h.b16 %v2636
  %v2685 = vunpack.c.l.b16 %v2638
  %v2686 = vunpack.c.h.b16 %v2638
  %v2687 = vunpack.c.l.b16 %v2640
  %v2688 = vunpack.c.h.b16 %v2640
  %v2689 = vunpack.c.l.b16 %v2642
  %v2690 = vunpack.c.h.b16 %v2642
  %v2691 = vunpack.c.l.b16 %v2644
  %v2692 = vunpack.c.h.b16 %v2644
  %v2693 = vunpack.c.l.b16 %v2646
  %v2694 = vunpack.c.h.b16 %v2646
  %v2695 = vunpack.c.l.b16 %v2648
  %v2696 = vunpack.c.h.b16 %v2648
  %v2697 = vunpack.c.l.b16 %v2650
  %v2698 = vunpack.c.h.b16 %v2650
  %v2699 = vunpack.c.l.b16 %v2652
  %v2700 = vunpack.c.h.b16 %v2652
  %v2701 = vunpack.c.l.b16 %v2654
  %v2702 = vunpack.c.h.b16 %v2654
  %v2703 = vunpack.c.l.b16 %v2656
  %v2704 = vunpack.c.h.b16 %v2656
  %v2705 = vunpack.c.l.b16 %v2658
  %v2706 = vunpack.c.h.b16 %v2658
  %v2707 = vunpack.c.l.b16 %v2660
  %v2708 = vunpack.c.h.b16 %v2660
  %v2709 = vunpack.c.l.b16 %v2662
  %v2710 = vunpack.c.h.b16 %v2662
  %v2711 = vpack.c.b16 %v2679, %v2679
  %v2712 = vpack.c.b16 %v2680, %v2680
  %v2713 = vpack.c.b16 %v2681, %v2681
  %v2714 = vpack.c.b16 %v2682, %v2682
  %v2715 = vpack.c.b16 %v2683, %v2683
  %v2716 = vpack.c.b16 %v2684, %v2684
  %v2717 = vpack.c.b16 %v2685, %v2685
  %v2718 = vpack.c.b16 %v2686, %v2686
  %v2719 = vpack.c.b16 %v2687, %v2687
  %v2720 = vpack.c.b16 %v2688, %v2688
  %v2721 = vpack.c.b16 %v2689, %v2689
  %v2722 = vpack.c.b16 %v2690, %v2690
  %v2723 = vpack.c.b16 %v2691, %v2691
  %v2724 = vpack.c.b16 %v2692, %v2692
  %v2725 = vpack.c.b16 %v2693, %v2693
  %v2726 = vpack.c.b16 %v2694, %v2694
  %v2727 = vpack.c.b16 %v2695, %v2695
  %v2728 = vpack.c.b16 %v2696, %v2696
  %v2729 = vpack.c.b16 %v2697, %v2697
  %v2730 = vpack.c.b16 %v2698, %v2698
  %v2731 = vpack.c.b16 %v2699, %v2699
  %v2732 = vpack.c.b16 %v2700, %v2700
  %v2733 = vpack.c.b16 %v2701, %v2701
  %v2734 = vpack.c.b16 %v2702, %v2702
  %v2735 = vpack.c.b16 %v2703, %v2703
  %v2736 = vpack.c.b16 %v2704, %v2704
  %v2737 = vpack.c.b16 %v2705, %v2705
  %v2738 = vpack.c.b16 %v2706, %v2706
  %v2739 = vpack.c.b16 %v2707, %v2707
  %v2740 = vpack.c.b16 %v2708, %v2708
  %v2741 = vpack.c.b16 %v2709, %v2709
  %v2742 = vpack.c.b16 %v2710, %v2710
  %vm2743 = vcmask 1042432
  %vm2744 = vcmask 1046532
  %vm2745 = vmor %vm2743, %vm2744
  %v2746 = vrot.slane %v2711, 5
  %v2747 = vrot.slane %v2746, 4
  %v2748 = vrot.slane %v2712, 5
  %v2749 = vsel %vm2745, %v2747, %v2748
  %v2750 = vrot.slane %v2713, 5
  %v2751 = vrot.slane %v2750, 4
  %v2752 = vrot.slane %v2714, 5
  %v2753 = vsel %vm2745, %v2751, %v2752
  %v2754 = vrot.slane %v2715, 5
  %v2755 = vrot.slane %v2754, 4
  %v2756 = vrot.slane %v2716, 5
  %v2757 = vsel %vm2745, %v2755, %v2756
  %v2758 = vrot.slane %v2717, 5
  %v2759 = vrot.slane %v2758, 4
  %v2760 = vrot.slane %v2718, 5
  %v2761 = vsel %vm2745, %v2759, %v2760
  %v2762 = vrot.slane %v2719, 5
  %v2763 = vrot.slane %v2762, 4
  %v2764 = vrot.slane %v2720, 5
  %v2765 = vsel %vm2745, %v2763, %v2764
  %v2766 = vrot.slane %v2721, 5
  %v2767 = vrot.slane %v2766, 4
  %v2768 = vrot.slane %v2722, 5
  %v2769 = vsel %vm2745, %v2767, %v2768
  %v2770 = vrot.slane %v2723, 5
  %v2771 = vrot.slane %v2770, 4
  %v2772 = vrot.slane %v2724, 5
  %v2773 = vsel %vm2745, %v2771, %v2772
  %v2774 = vrot.slane %v2725, 5
  %v2775 = vrot.slane %v2774, 4
  %v2776 = vrot.slane %v2726, 5
  %v2777 = vsel %vm2745, %v2775, %v2776
  %v2778 = vrot.slane %v2727, 5
  %v2779 = vrot.slane %v2778, 4
  %v2780 = vrot.slane %v2728, 5
  %v2781 = vsel %vm2745, %v2779, %v2780
  %v2782 = vrot.slane %v2729, 5
  %v2783 = vrot.slane %v2782, 4
  %v2784 = vrot.slane %v2730, 5
  %v2785 = vsel %vm2745, %v2783, %v2784
  %v2786 = vrot.slane %v2731, 5
  %v2787 = vrot.slane %v2786, 4
  %v2788 = vrot.slane %v2732, 5
  %v2789 = vsel %vm2745, %v2787, %v2788
  %v2790 = vrot.slane %v2733, 5
  %v2791 = vrot.slane %v2790, 4
  %v2792 = vrot.slane %v2734, 5
  %v2793 = vsel %vm2745, %v2791, %v2792
  %v2794 = vrot.slane %v2735, 5
  %v2795 = vrot.slane %v2794, 4
  %v2796 = vrot.slane %v2736, 5
  %v2797 = vsel %vm2745, %v2795, %v2796
  %v2798 = vrot.slane %v2737, 5
  %v2799 = vrot.slane %v2798, 4
  %v2800 = vrot.slane %v2738, 5
  %v2801 = vsel %vm2745, %v2799, %v2800
  %v2802 = vrot.slane %v2739, 5
  %v2803 = vrot.slane %v2802, 4
  %v2804 = vrot.slane %v2740, 5
  %v2805 = vsel %vm2745, %v2803, %v2804
  %v2806 = vrot.slane %v2741, 5
  %v2807 = vrot.slane %v2806, 4
  %v2808 = vrot.slane %v2742, 5
  %v2809 = vsel %vm2745, %v2807, %v2808
  %s2810 = scalar_lea.vmem %s2, 16
  %v2811 = vld [vmem:[%s2810] sm:$0xf]
  %v2812 = vld [vmem:[%s2810 + $0x4] sm:$0xf]
  %v2813 = vld [vmem:[%s2810 + $0x8] sm:$0xf]
  %v2814 = vld [vmem:[%s2810 + $0xc] sm:$0xf]
  %v2815 = vunpack.c.l.b16 %v2749
  %v2816 = vunpack.c.l.b16 %v2753
  %v2817 = vunpack.c.l.b16 %v2757
  %v2818 = vunpack.c.l.b16 %v2761
  %v2819 = vunpack.c.l.b16 %v2765
  %v2820 = vunpack.c.l.b16 %v2769
  %v2821 = vunpack.c.l.b16 %v2773
  %v2822 = vunpack.c.l.b16 %v2777
  %v2823 = vunpack.c.l.b16 %v2781
  %v2824 = vunpack.c.l.b16 %v2785
  %v2825 = vunpack.c.l.b16 %v2789
  %v2826 = vunpack.c.l.b16 %v2793
  %v2827 = vunpack.c.l.b16 %v2797
  %v2828 = vunpack.c.l.b16 %v2801
  %v2829 = vunpack.c.l.b16 %v2805
  %v2830 = vunpack.c.l.b16 %v2809
  %v2831 = vpack.c.b16 %v2816, %v2815
  %v2832 = vpack.c.b16 %v2818, %v2817
  %v2833 = vpack.c.b16 %v2820, %v2819
  %v2834 = vpack.c.b16 %v2822, %v2821
  %v2835 = vpack.c.b16 %v2824, %v2823
  %v2836 = vpack.c.b16 %v2826, %v2825
  %v2837 = vpack.c.b16 %v2828, %v2827
  %v2838 = vpack.c.b16 %v2830, %v2829
  %v2843 = vunpack.c.l.b16 %v2811
  %v2844 = vunpack.c.l.b16 %v2812
  %v2845 = vunpack.c.l.b16 %v2813
  %v2846 = vunpack.c.l.b16 %v2814
  %v2847 = vpack.c.b16 %v2844, %v2843
  %v2848 = vpack.c.b16 %v2846, %v2845
  %v2852 = vsel %vm1636, %v2831, 0
  %v2855 = vsel %vm1636, %v2832, 0
  %v2858 = vsel %vm1636, %v2833, 0
  %v2861 = vsel %vm1636, %v2834, 0
  %v2864 = vsel %vm1636, %v2835, 0
  %v2867 = vsel %vm1636, %v2836, 0
  %v2870 = vsel %vm1636, %v2837, 0
  %v2873 = vsel %vm1636, %v2838, 0
  %2875 = vmatprep.subr.bf16.mxu0 0
  %2876 = vmatpush1.bf16.msra.mxu0 %v2847
  %2877 = vmatprep.subr.bf16.mxu0 0
  %2878 = vmatpush1.bf16.msra.mxu0 %v2848
  %2879 = vmatprep.subr.bf16.mxu0 0
  %2880 = vmatpush1.bf16.msra.mxu0 0
  %2881 = vmatprep.subr.bf16.mxu0 0
  %2882 = vmatpush1.bf16.msra.mxu0 0
  %2883 = vmatprep.subr.bf16.mxu0 0
  %2884 = vmatpush1.bf16.msra.mxu0 0
  %2885 = vmatprep.subr.bf16.mxu0 0
  %2886 = vmatpush1.bf16.msra.mxu0 0
  %2887 = vmatprep.subr.bf16.mxu0 0
  %2888 = vmatpush1.bf16.msra.mxu0 0
  %2889 = vmatprep.subr.bf16.mxu0 0
  %2890 = vmatpush1.bf16.msra.mxu0 0
  %2891 = vmatprep.subr.bf16.mxu0 0
  %2892 = vmatpush1.bf16.msra.mxu0 0
  %2893 = vmatprep.subr.bf16.mxu0 0
  %2894 = vmatpush1.bf16.msra.mxu0 0
  %2895 = vmatprep.subr.bf16.mxu0 0
  %2896 = vmatpush1.bf16.msra.mxu0 0
  %2897 = vmatprep.subr.bf16.mxu0 0
  %2898 = vmatpush1.bf16.msra.mxu0 0
  %2899 = vmatprep.subr.bf16.mxu0 0
  %2900 = vmatpush1.bf16.msra.mxu0 0
  %2901 = vmatprep.subr.bf16.mxu0 0
  %2902 = vmatpush1.bf16.msra.mxu0 0
  %2903 = vmatprep.subr.bf16.mxu0 0
  %2904 = vmatpush1.bf16.msra.mxu0 0
  %2905 = vmatprep.subr.bf16.mxu0 0
  %2906 = vmatpush1.bf16.msra.mxu0 0
  %2907 = vmatprep.mubr.bf16.mxu0 0
  %2908 = vmatmul.mubr.bf16.gmra.mrb[0].mxu0 %v2852
  %v2909 = vpop.f32.mrb[0].mxu0
  %v2910 = vadd.f32 0.0, %v2909
  %v2911 = vpop.f32.mrb[0].mxu0
  %v2912 = vpop.f32.mrb[0].mxu0
  %v2913 = vadd.f32 0.0, %v2912
  %v2914 = vpop.f32.mrb[0].mxu0
  %2915 = vmatprep.mubr.bf16.mxu0 0
  %2916 = vmatmul.mubr.bf16.gmra.mrb[0].mxu0 %v2855
  %v2917 = vpop.f32.mrb[0].mxu0
  %v2918 = vadd.f32 0.0, %v2917
  %v2919 = vpop.f32.mrb[0].mxu0
  %v2920 = vpop.f32.mrb[0].mxu0
  %v2921 = vadd.f32 0.0, %v2920
  %v2922 = vpop.f32.mrb[0].mxu0
  %2923 = vmatprep.mubr.bf16.mxu0 0
  %2924 = vmatmul.mubr.bf16.gmra.mrb[0].mxu0 %v2858
  %v2925 = vpop.f32.mrb[0].mxu0
  %v2926 = vadd.f32 0.0, %v2925
  %v2927 = vpop.f32.mrb[0].mxu0
  %v2928 = vpop.f32.mrb[0].mxu0
  %v2929 = vadd.f32 0.0, %v2928
  %v2930 = vpop.f32.mrb[0].mxu0
  %2931 = vmatprep.mubr.bf16.mxu0 0
  %2932 = vmatmul.mubr.bf16.gmra.mrb[0].mxu0 %v2861
  %v2933 = vpop.f32.mrb[0].mxu0
  %v2934 = vadd.f32 0.0, %v2933
  %v2935 = vpop.f32.mrb[0].mxu0
  %v2936 = vpop.f32.mrb[0].mxu0
  %v2937 = vadd.f32 0.0, %v2936
  %v2938 = vpop.f32.mrb[0].mxu0
  %2939 = vmatprep.mubr.bf16.mxu0 0
  %2940 = vmatmul.mubr.bf16.gmra.mrb[0].mxu0 %v2864
  %v2941 = vpop.f32.mrb[0].mxu0
  %v2942 = vadd.f32 0.0, %v2941
  %v2943 = vpop.f32.mrb[0].mxu0
  %v2944 = vpop.f32.mrb[0].mxu0
  %v2945 = vadd.f32 0.0, %v2944
  %v2946 = vpop.f32.mrb[0].mxu0
  %2947 = vmatprep.mubr.bf16.mxu0 0
  %2948 = vmatmul.mubr.bf16.gmra.mrb[0].mxu0 %v2867
  %v2949 = vpop.f32.mrb[0].mxu0
  %v2950 = vadd.f32 0.0, %v2949
  %v2951 = vpop.f32.mrb[0].mxu0
  %v2952 = vpop.f32.mrb[0].mxu0
  %v2953 = vadd.f32 0.0, %v2952
  %v2954 = vpop.f32.mrb[0].mxu0
  %2955 = vmatprep.mubr.bf16.mxu0 0
  %2956 = vmatmul.mubr.bf16.gmra.mrb[0].mxu0 %v2870
  %v2957 = vpop.f32.mrb[0].mxu0
  %v2958 = vadd.f32 0.0, %v2957
  %v2959 = vpop.f32.mrb[0].mxu0
  %v2960 = vpop.f32.mrb[0].mxu0
  %v2961 = vadd.f32 0.0, %v2960
  %v2962 = vpop.f32.mrb[0].mxu0
  %2963 = vmatprep.mubr.bf16.mxu0 0
  %2964 = vmatmul.mubr.bf16.gmra.mrb[0].mxu0 %v2873
  %v2965 = vpop.f32.mrb[0].mxu0
  %v2966 = vadd.f32 0.0, %v2965
  %v2967 = vpop.f32.mrb[0].mxu0
  %v2968 = vpop.f32.mrb[0].mxu0
  %v2969 = vadd.f32 0.0, %v2968
  %v2970 = vpop.f32.mrb[0].mxu0
  %2971 = vdwg.mxu0
  %v2972 = vsel %vm1758, %v2910, 0.0
  %v2973 = vsel %vm1758, %v2913, 0.0
  %v2974 = vadd.f32 %v2972, %v2973
  %v2975 = vsel %vm1758, %v2918, 0.0
  %v2976 = vadd.f32 %v2974, %v2975
  %v2977 = vsel %vm1758, %v2921, 0.0
  %v2978 = vadd.f32 %v2976, %v2977
  %v2979 = vsel %vm1758, %v2926, 0.0
  %v2980 = vadd.f32 %v2978, %v2979
  %v2981 = vsel %vm1758, %v2929, 0.0
  %v2982 = vadd.f32 %v2980, %v2981
  %v2983 = vsel %vm1758, %v2934, 0.0
  %v2984 = vadd.f32 %v2982, %v2983
  %v2985 = vsel %vm1758, %v2937, 0.0
  %v2986 = vadd.f32 %v2984, %v2985
  %v2987 = vrot.slane %v2986, 4
  %v2988 = vadd.f32 %v2986, %v2987
  %v2989 = vrot.slane %v2988, 2
  %v2990 = vadd.f32 %v2988, %v2989
  %v2991 = vrot.slane %v2990, 1
  %v2992 = vadd.f32 %v2990, %v2991
  %v2993 = vsel %vm1758, %v2942, 0.0
  %v2994 = vsel %vm1758, %v2945, 0.0
  %v2995 = vadd.f32 %v2993, %v2994
  %v2996 = vsel %vm1758, %v2950, 0.0
  %v2997 = vadd.f32 %v2995, %v2996
  %v2998 = vsel %vm1758, %v2953, 0.0
  %v2999 = vadd.f32 %v2997, %v2998
  %v3000 = vsel %vm1758, %v2958, 0.0
  %v3001 = vadd.f32 %v2999, %v3000
  %v3002 = vsel %vm1758, %v2961, 0.0
  %v3003 = vadd.f32 %v3001, %v3002
  %v3004 = vsel %vm1758, %v2966, 0.0
  %v3005 = vadd.f32 %v3003, %v3004
  %v3006 = vsel %vm1758, %v2969, 0.0
  %v3007 = vadd.f32 %v3005, %v3006
  %v3008 = vrot.slane %v3007, 4
  %v3009 = vadd.f32 %v3007, %v3008
  %v3010 = vrot.slane %v3009, 2
  %v3011 = vadd.f32 %v3009, %v3010
  %v3012 = vrot.slane %v3011, 1
  %v3013 = vadd.f32 %v3011, %v3012
  %v3014 = vadd.f32 %v1801, %v2992
  %v3015 = vadd.f32 %v1802, %v3013
  %v3016 = vmul.f32 %v2910, %v2910
  %v3017 = vmul.f32 %v2913, %v2913
  %v3018 = vmul.f32 %v2918, %v2918
  %v3019 = vmul.f32 %v2921, %v2921
  %v3020 = vmul.f32 %v2926, %v2926
  %v3021 = vmul.f32 %v2929, %v2929
  %v3022 = vmul.f32 %v2934, %v2934
  %v3023 = vmul.f32 %v2937, %v2937
  %v3024 = vmul.f32 %v2942, %v2942
  %v3025 = vmul.f32 %v2945, %v2945
  %v3026 = vmul.f32 %v2950, %v2950
  %v3027 = vmul.f32 %v2953, %v2953
  %v3028 = vmul.f32 %v2958, %v2958
  %v3029 = vmul.f32 %v2961, %v2961
  %v3030 = vmul.f32 %v2966, %v2966
  %v3031 = vmul.f32 %v2969, %v2969
  %v3032 = vsel %vm1758, %v3016, 0.0
  %v3033 = vsel %vm1758, %v3017, 0.0
  %v3034 = vadd.f32 %v3032, %v3033
  %v3035 = vsel %vm1758, %v3018, 0.0
  %v3036 = vadd.f32 %v3034, %v3035
  %v3037 = vsel %vm1758, %v3019, 0.0
  %v3038 = vadd.f32 %v3036, %v3037
  %v3039 = vsel %vm1758, %v3020, 0.0
  %v3040 = vadd.f32 %v3038, %v3039
  %v3041 = vsel %vm1758, %v3021, 0.0
  %v3042 = vadd.f32 %v3040, %v3041
  %v3043 = vsel %vm1758, %v3022, 0.0
  %v3044 = vadd.f32 %v3042, %v3043
  %v3045 = vsel %vm1758, %v3023, 0.0
  %v3046 = vadd.f32 %v3044, %v3045
  %v3047 = vrot.slane %v3046, 4
  %v3048 = vadd.f32 %v3046, %v3047
  %v3049 = vrot.slane %v3048, 2
  %v3050 = vadd.f32 %v3048, %v3049
  %v3051 = vrot.slane %v3050, 1
  %v3052 = vadd.f32 %v3050, %v3051
  %v3053 = vsel %vm1758, %v3024, 0.0
  %v3054 = vsel %vm1758, %v3025, 0.0
  %v3055 = vadd.f32 %v3053, %v3054
  %v3056 = vsel %vm1758, %v3026, 0.0
  %v3057 = vadd.f32 %v3055, %v3056
  %v3058 = vsel %vm1758, %v3027, 0.0
  %v3059 = vadd.f32 %v3057, %v3058
  %v3060 = vsel %vm1758, %v3028, 0.0
  %v3061 = vadd.f32 %v3059, %v3060
  %v3062 = vsel %vm1758, %v3029, 0.0
  %v3063 = vadd.f32 %v3061, %v3062
  %v3064 = vsel %vm1758, %v3030, 0.0
  %v3065 = vadd.f32 %v3063, %v3064
  %v3066 = vsel %vm1758, %v3031, 0.0
  %v3067 = vadd.f32 %v3065, %v3066
  %v3068 = vrot.slane %v3067, 4
  %v3069 = vadd.f32 %v3067, %v3068
  %v3070 = vrot.slane %v3069, 2
  %v3071 = vadd.f32 %v3069, %v3070
  %v3072 = vrot.slane %v3071, 1
  %v3073 = vadd.f32 %v3071, %v3072
  %v3074 = vadd.f32 %v1861, %v3052
  %v3075 = vadd.f32 %v1862, %v3073
  %3092 = vrot.lane.b32.xlu0 %v2910, 4
  %v3093 = vpop.permute.xlu0 %3092
  %3094 = vrot.lane.b32.xlu0 %v2913, 4
  %v3095 = vpop.permute.xlu0 %3094
  %3096 = vrot.lane.b32.xlu0 %v2918, 4
  %v3097 = vpop.permute.xlu0 %3096
  %3098 = vrot.lane.b32.xlu0 %v2921, 4
  %v3099 = vpop.permute.xlu0 %3098
  %3100 = vrot.lane.b32.xlu0 %v2926, 4
  %v3101 = vpop.permute.xlu0 %3100
  %3102 = vrot.lane.b32.xlu0 %v2929, 4
  %v3103 = vpop.permute.xlu0 %3102
  %3104 = vrot.lane.b32.xlu0 %v2934, 4
  %v3105 = vpop.permute.xlu0 %3104
  %3106 = vrot.lane.b32.xlu0 %v2937, 4
  %v3107 = vpop.permute.xlu0 %3106
  %3108 = vrot.lane.b32.xlu0 %v2942, 4
  %v3109 = vpop.permute.xlu0 %3108
  %3110 = vrot.lane.b32.xlu0 %v2945, 4
  %v3111 = vpop.permute.xlu0 %3110
  %3112 = vrot.lane.b32.xlu0 %v2950, 4
  %v3113 = vpop.permute.xlu0 %3112
  %3114 = vrot.lane.b32.xlu0 %v2953, 4
  %v3115 = vpop.permute.xlu0 %3114
  %3116 = vrot.lane.b32.xlu0 %v2958, 4
  %v3117 = vpop.permute.xlu0 %3116
  %3118 = vrot.lane.b32.xlu0 %v2961, 4
  %v3119 = vpop.permute.xlu0 %3118
  %3120 = vrot.lane.b32.xlu0 %v2966, 4
  %v3121 = vpop.permute.xlu0 %3120
  %3122 = vrot.lane.b32.xlu0 %v2969, 4
  %v3123 = vpop.permute.xlu0 %3122
  %vm3140 = vcmask 64544
  %3141 = vst.msk [vmem:[%s3] sm:$0xff] %vm3140, %v3093
  %3142 = vst.msk [vmem:[%s3 + $0x8] sm:$0xff] %vm3140, %v3095
  %3143 = vst.msk [vmem:[%s3 + $0x10] sm:$0xff] %vm3140, %v3097
  %3144 = vst.msk [vmem:[%s3 + $0x18] sm:$0xff] %vm3140, %v3099
  %3145 = vst.msk [vmem:[%s3 + $0x20] sm:$0xff] %vm3140, %v3101
  %3146 = vst.msk [vmem:[%s3 + $0x28] sm:$0xff] %vm3140, %v3103
  %3147 = vst.msk [vmem:[%s3 + $0x30] sm:$0xff] %vm3140, %v3105
  %3148 = vst.msk [vmem:[%s3 + $0x38] sm:$0xff] %vm3140, %v3107
  %3149 = vst.msk [vmem:[%s3 + $0x40] sm:$0xff] %vm3140, %v3109
  %3150 = vst.msk [vmem:[%s3 + $0x48] sm:$0xff] %vm3140, %v3111
  %3151 = vst.msk [vmem:[%s3 + $0x50] sm:$0xff] %vm3140, %v3113
  %3152 = vst.msk [vmem:[%s3 + $0x58] sm:$0xff] %vm3140, %v3115
  %3153 = vst.msk [vmem:[%s3 + $0x60] sm:$0xff] %vm3140, %v3117
  %3154 = vst.msk [vmem:[%s3 + $0x68] sm:$0xff] %vm3140, %v3119
  %3155 = vst.msk [vmem:[%s3 + $0x70] sm:$0xff] %vm3140, %v3121
  %3156 = vst.msk [vmem:[%s3 + $0x78] sm:$0xff] %vm3140, %v3123
  %s3157 = scalar_lea.vmem [#allocation2], 16
  %v3158 = vld [vmem:[%s3157] sm:$0xf]
  %v3159 = vld [vmem:[%s3157 + $0x4] sm:$0x1]
  %v3160 = vld [vmem:[%s3157 + $0x8] sm:$0xf]
  %v3161 = vld [vmem:[%s3157 + $0xc] sm:$0x1]
  %v3162 = vld [vmem:[%s3157 + $0x10] sm:$0xf]
  %v3163 = vld [vmem:[%s3157 + $0x14] sm:$0x1]
  %v3164 = vld [vmem:[%s3157 + $0x18] sm:$0xf]
  %v3165 = vld [vmem:[%s3157 + $0x1c] sm:$0x1]
  %v3166 = vld [vmem:[%s3157 + $0x20] sm:$0xf]
  %v3167 = vld [vmem:[%s3157 + $0x24] sm:$0x1]
  %v3168 = vld [vmem:[%s3157 + $0x28] sm:$0xf]
  %v3169 = vld [vmem:[%s3157 + $0x2c] sm:$0x1]
  %v3170 = vld [vmem:[%s3157 + $0x30] sm:$0xf]
  %v3171 = vld [vmem:[%s3157 + $0x34] sm:$0x1]
  %v3172 = vld [vmem:[%s3157 + $0x38] sm:$0xf]
  %v3173 = vld [vmem:[%s3157 + $0x3c] sm:$0x1]
  %v3174 = vld [vmem:[%s3157 + $0x50] sm:$0xf]
  %v3175 = vld [vmem:[%s3157 + $0x54] sm:$0x1]
  %v3176 = vld [vmem:[%s3157 + $0x58] sm:$0xf]
  %v3177 = vld [vmem:[%s3157 + $0x5c] sm:$0x1]
  %v3178 = vld [vmem:[%s3157 + $0x60] sm:$0xf]
  %v3179 = vld [vmem:[%s3157 + $0x64] sm:$0x1]
  %v3180 = vld [vmem:[%s3157 + $0x68] sm:$0xf]
  %v3181 = vld [vmem:[%s3157 + $0x6c] sm:$0x1]
  %v3182 = vld [vmem:[%s3157 + $0x70] sm:$0xf]
  %v3183 = vld [vmem:[%s3157 + $0x74] sm:$0x1]
  %v3184 = vld [vmem:[%s3157 + $0x78] sm:$0xf]
  %v3185 = vld [vmem:[%s3157 + $0x7c] sm:$0x1]
  %v3186 = vld [vmem:[%s3157 + $0x80] sm:$0xf]
  %v3187 = vld [vmem:[%s3157 + $0x84] sm:$0x1]
  %v3188 = vld [vmem:[%s3157 + $0x88] sm:$0xf]
  %v3189 = vld [vmem:[%s3157 + $0x8c] sm:$0x1]
  %v3190 = vld [vmem:[%s495] sm:$0xf]
  %v3191 = vld [vmem:[%s495 + $0x4] sm:$0x1]
  %v3192 = vld [vmem:[%s495 + $0x8] sm:$0xf]
  %v3193 = vld [vmem:[%s495 + $0xc] sm:$0x1]
  %v3194 = vld [vmem:[%s495 + $0x10] sm:$0xf]
  %v3195 = vld [vmem:[%s495 + $0x14] sm:$0x1]
  %v3196 = vld [vmem:[%s495 + $0x18] sm:$0xf]
  %v3197 = vld [vmem:[%s495 + $0x1c] sm:$0x1]
  %v3198 = vld [vmem:[%s495 + $0x20] sm:$0xf]
  %v3199 = vld [vmem:[%s495 + $0x24] sm:$0x1]
  %v3200 = vld [vmem:[%s495 + $0x28] sm:$0xf]
  %v3201 = vld [vmem:[%s495 + $0x2c] sm:$0x1]
  %v3202 = vld [vmem:[%s495 + $0x30] sm:$0xf]
  %v3203 = vld [vmem:[%s495 + $0x34] sm:$0x1]
  %v3204 = vld [vmem:[%s495 + $0x38] sm:$0xf]
  %v3205 = vld [vmem:[%s495 + $0x3c] sm:$0x1]
  %v3206 = vld [vmem:[%s495 + $0x50] sm:$0xf]
  %v3207 = vld [vmem:[%s495 + $0x54] sm:$0x1]
  %v3208 = vld [vmem:[%s495 + $0x58] sm:$0xf]
  %v3209 = vld [vmem:[%s495 + $0x5c] sm:$0x1]
  %v3210 = vld [vmem:[%s495 + $0x60] sm:$0xf]
  %v3211 = vld [vmem:[%s495 + $0x64] sm:$0x1]
  %v3212 = vld [vmem:[%s495 + $0x68] sm:$0xf]
  %v3213 = vld [vmem:[%s495 + $0x6c] sm:$0x1]
  %v3214 = vld [vmem:[%s495 + $0x70] sm:$0xf]
  %v3215 = vld [vmem:[%s495 + $0x74] sm:$0x1]
  %v3216 = vld [vmem:[%s495 + $0x78] sm:$0xf]
  %v3217 = vld [vmem:[%s495 + $0x7c] sm:$0x1]
  %v3218 = vld [vmem:[%s495 + $0x80] sm:$0xf]
  %v3219 = vld [vmem:[%s495 + $0x84] sm:$0x1]
  %v3220 = vld [vmem:[%s495 + $0x88] sm:$0xf]
  %v3221 = vld [vmem:[%s495 + $0x8c] sm:$0x1]
  %v3254 = vunpack.c.l.b16 %v3158
  %v3255 = vunpack.c.l.b16 %v3159
  %v3256 = vunpack.c.l.b16 %v3160
  %v3257 = vunpack.c.l.b16 %v3161
  %v3258 = vunpack.c.l.b16 %v3162
  %v3259 = vunpack.c.l.b16 %v3163
  %v3260 = vunpack.c.l.b16 %v3164
  %v3261 = vunpack.c.l.b16 %v3165
  %v3262 = vunpack.c.l.b16 %v3166
  %v3263 = vunpack.c.l.b16 %v3167
  %v3264 = vunpack.c.l.b16 %v3168
  %v3265 = vunpack.c.l.b16 %v3169
  %v3266 = vunpack.c.l.b16 %v3170
  %v3267 = vunpack.c.l.b16 %v3171
  %v3268 = vunpack.c.l.b16 %v3172
  %v3269 = vunpack.c.l.b16 %v3173
  %v3270 = vunpack.c.l.b16 %v3174
  %v3271 = vunpack.c.l.b16 %v3175
  %v3272 = vunpack.c.l.b16 %v3176
  %v3273 = vunpack.c.l.b16 %v3177
  %v3274 = vunpack.c.l.b16 %v3178
  %v3275 = vunpack.c.l.b16 %v3179
  %v3276 = vunpack.c.l.b16 %v3180
  %v3277 = vunpack.c.l.b16 %v3181
  %v3278 = vunpack.c.l.b16 %v3182
  %v3279 = vunpack.c.l.b16 %v3183
  %v3280 = vunpack.c.l.b16 %v3184
  %v3281 = vunpack.c.l.b16 %v3185
  %v3282 = vunpack.c.l.b16 %v3186
  %v3283 = vunpack.c.l.b16 %v3187
  %v3284 = vunpack.c.l.b16 %v3188
  %v3285 = vunpack.c.l.b16 %v3189
  %v3286 = vpack.c.b16 %v3255, %v3254
  %v3287 = vpack.c.b16 %v3257, %v3256
  %v3288 = vpack.c.b16 %v3259, %v3258
  %v3289 = vpack.c.b16 %v3261, %v3260
  %v3290 = vpack.c.b16 %v3263, %v3262
  %v3291 = vpack.c.b16 %v3265, %v3264
  %v3292 = vpack.c.b16 %v3267, %v3266
  %v3293 = vpack.c.b16 %v3269, %v3268
  %v3294 = vpack.c.b16 %v3271, %v3270
  %v3295 = vpack.c.b16 %v3273, %v3272
  %v3296 = vpack.c.b16 %v3275, %v3274
  %v3297 = vpack.c.b16 %v3277, %v3276
  %v3298 = vpack.c.b16 %v3279, %v3278
  %v3299 = vpack.c.b16 %v3281, %v3280
  %v3300 = vpack.c.b16 %v3283, %v3282
  %v3301 = vpack.c.b16 %v3285, %v3284
  %v3302 = vpack.c.b16 %v3254, %v3254
  %v3303 = vpack.c.b16 %v3256, %v3256
  %v3304 = vpack.c.b16 %v3258, %v3258
  %v3305 = vpack.c.b16 %v3260, %v3260
  %v3306 = vpack.c.b16 %v3262, %v3262
  %v3307 = vpack.c.b16 %v3264, %v3264
  %v3308 = vpack.c.b16 %v3266, %v3266
  %v3309 = vpack.c.b16 %v3268, %v3268
  %v3310 = vpack.c.b16 %v3270, %v3270
  %v3311 = vpack.c.b16 %v3272, %v3272
  %v3312 = vpack.c.b16 %v3274, %v3274
  %v3313 = vpack.c.b16 %v3276, %v3276
  %v3314 = vpack.c.b16 %v3278, %v3278
  %v3315 = vpack.c.b16 %v3280, %v3280
  %v3316 = vpack.c.b16 %v3282, %v3282
  %v3317 = vpack.c.b16 %v3284, %v3284
  %v3319 = vshrl.u32 %v3302, 16
  %v3321 = vrot.slane %v3319, 7
  %v3322 = vshll.u32 %v3302, 16
  %v3324 = vor.u32 %v3321, %v3322
  %v3326 = vshrl.u32 %v3303, 16
  %v3328 = vrot.slane %v3326, 7
  %v3329 = vshll.u32 %v3303, 16
  %v3331 = vor.u32 %v3328, %v3329
  %v3333 = vshrl.u32 %v3304, 16
  %v3335 = vrot.slane %v3333, 7
  %v3336 = vshll.u32 %v3304, 16
  %v3338 = vor.u32 %v3335, %v3336
  %v3340 = vshrl.u32 %v3305, 16
  %v3342 = vrot.slane %v3340, 7
  %v3343 = vshll.u32 %v3305, 16
  %v3345 = vor.u32 %v3342, %v3343
  %v3347 = vshrl.u32 %v3306, 16
  %v3349 = vrot.slane %v3347, 7
  %v3350 = vshll.u32 %v3306, 16
  %v3352 = vor.u32 %v3349, %v3350
  %v3354 = vshrl.u32 %v3307, 16
  %v3356 = vrot.slane %v3354, 7
  %v3357 = vshll.u32 %v3307, 16
  %v3359 = vor.u32 %v3356, %v3357
  %v3361 = vshrl.u32 %v3308, 16
  %v3363 = vrot.slane %v3361, 7
  %v3364 = vshll.u32 %v3308, 16
  %v3366 = vor.u32 %v3363, %v3364
  %v3368 = vshrl.u32 %v3309, 16
  %v3370 = vrot.slane %v3368, 7
  %v3371 = vshll.u32 %v3309, 16
  %v3373 = vor.u32 %v3370, %v3371
  %v3375 = vshrl.u32 %v3310, 16
  %v3377 = vrot.slane %v3375, 7
  %v3378 = vshll.u32 %v3310, 16
  %v3380 = vor.u32 %v3377, %v3378
  %v3382 = vshrl.u32 %v3311, 16
  %v3384 = vrot.slane %v3382, 7
  %v3385 = vshll.u32 %v3311, 16
  %v3387 = vor.u32 %v3384, %v3385
  %v3389 = vshrl.u32 %v3312, 16
  %v3391 = vrot.slane %v3389, 7
  %v3392 = vshll.u32 %v3312, 16
  %v3394 = vor.u32 %v3391, %v3392
  %v3396 = vshrl.u32 %v3313, 16
  %v3398 = vrot.slane %v3396, 7
  %v3399 = vshll.u32 %v3313, 16
  %v3401 = vor.u32 %v3398, %v3399
  %v3403 = vshrl.u32 %v3314, 16
  %v3405 = vrot.slane %v3403, 7
  %v3406 = vshll.u32 %v3314, 16
  %v3408 = vor.u32 %v3405, %v3406
  %v3410 = vshrl.u32 %v3315, 16
  %v3412 = vrot.slane %v3410, 7
  %v3413 = vshll.u32 %v3315, 16
  %v3415 = vor.u32 %v3412, %v3413
  %v3417 = vshrl.u32 %v3316, 16
  %v3419 = vrot.slane %v3417, 7
  %v3420 = vshll.u32 %v3316, 16
  %v3422 = vor.u32 %v3419, %v3420
  %v3424 = vshrl.u32 %v3317, 16
  %v3426 = vrot.slane %v3424, 7
  %v3427 = vshll.u32 %v3317, 16
  %v3429 = vor.u32 %v3426, %v3427
  %3430 = vrot.lane.b32.xlu0 %v3324, 8
  %v3431 = vpop.permute.xlu0 %3430
  %3432 = vrot.lane.b32.xlu0 %v3331, 8
  %v3433 = vpop.permute.xlu0 %3432
  %3434 = vrot.lane.b32.xlu0 %v3338, 8
  %v3435 = vpop.permute.xlu0 %3434
  %3436 = vrot.lane.b32.xlu0 %v3345, 8
  %v3437 = vpop.permute.xlu0 %3436
  %3438 = vrot.lane.b32.xlu0 %v3352, 8
  %v3439 = vpop.permute.xlu0 %3438
  %3440 = vrot.lane.b32.xlu0 %v3359, 8
  %v3441 = vpop.permute.xlu0 %3440
  %3442 = vrot.lane.b32.xlu0 %v3366, 8
  %v3443 = vpop.permute.xlu0 %3442
  %3444 = vrot.lane.b32.xlu0 %v3373, 8
  %v3445 = vpop.permute.xlu0 %3444
  %3446 = vrot.lane.b32.xlu0 %v3380, 8
  %v3447 = vpop.permute.xlu0 %3446
  %3448 = vrot.lane.b32.xlu0 %v3387, 8
  %v3449 = vpop.permute.xlu0 %3448
  %3450 = vrot.lane.b32.xlu0 %v3394, 8
  %v3451 = vpop.permute.xlu0 %3450
  %3452 = vrot.lane.b32.xlu0 %v3401, 8
  %v3453 = vpop.permute.xlu0 %3452
  %3454 = vrot.lane.b32.xlu0 %v3408, 8
  %v3455 = vpop.permute.xlu0 %3454
  %3456 = vrot.lane.b32.xlu0 %v3415, 8
  %v3457 = vpop.permute.xlu0 %3456
  %3458 = vrot.lane.b32.xlu0 %v3422, 8
  %v3459 = vpop.permute.xlu0 %3458
  %3460 = vrot.lane.b32.xlu0 %v3429, 8
  %v3461 = vpop.permute.xlu0 %3460
  %v3494 = vunpack.c.l.b16 %v3190
  %v3495 = vunpack.c.l.b16 %v3191
  %v3496 = vunpack.c.l.b16 %v3192
  %v3497 = vunpack.c.l.b16 %v3193
  %v3498 = vunpack.c.l.b16 %v3194
  %v3499 = vunpack.c.l.b16 %v3195
  %v3500 = vunpack.c.l.b16 %v3196
  %v3501 = vunpack.c.l.b16 %v3197
  %v3502 = vunpack.c.l.b16 %v3198
  %v3503 = vunpack.c.l.b16 %v3199
  %v3504 = vunpack.c.l.b16 %v3200
  %v3505 = vunpack.c.l.b16 %v3201
  %v3506 = vunpack.c.l.b16 %v3202
  %v3507 = vunpack.c.l.b16 %v3203
  %v3508 = vunpack.c.l.b16 %v3204
  %v3509 = vunpack.c.l.b16 %v3205
  %v3510 = vunpack.c.l.b16 %v3206
  %v3511 = vunpack.c.l.b16 %v3207
  %v3512 = vunpack.c.l.b16 %v3208
  %v3513 = vunpack.c.l.b16 %v3209
  %v3514 = vunpack.c.l.b16 %v3210
  %v3515 = vunpack.c.l.b16 %v3211
  %v3516 = vunpack.c.l.b16 %v3212
  %v3517 = vunpack.c.l.b16 %v3213
  %v3518 = vunpack.c.l.b16 %v3214
  %v3519 = vunpack.c.l.b16 %v3215
  %v3520 = vunpack.c.l.b16 %v3216
  %v3521 = vunpack.c.l.b16 %v3217
  %v3522 = vunpack.c.l.b16 %v3218
  %v3523 = vunpack.c.l.b16 %v3219
  %v3524 = vunpack.c.l.b16 %v3220
  %v3525 = vunpack.c.l.b16 %v3221
  %v3526 = vpack.c.b16 %v3495, %v3494
  %v3527 = vpack.c.b16 %v3497, %v3496
  %v3528 = vpack.c.b16 %v3499, %v3498
  %v3529 = vpack.c.b16 %v3501, %v3500
  %v3530 = vpack.c.b16 %v3503, %v3502
  %v3531 = vpack.c.b16 %v3505, %v3504
  %v3532 = vpack.c.b16 %v3507, %v3506
  %v3533 = vpack.c.b16 %v3509, %v3508
  %v3534 = vpack.c.b16 %v3511, %v3510
  %v3535 = vpack.c.b16 %v3513, %v3512
  %v3536 = vpack.c.b16 %v3515, %v3514
  %v3537 = vpack.c.b16 %v3517, %v3516
  %v3538 = vpack.c.b16 %v3519, %v3518
  %v3539 = vpack.c.b16 %v3521, %v3520
  %v3540 = vpack.c.b16 %v3523, %v3522
  %v3541 = vpack.c.b16 %v3525, %v3524
  %3542 = vrot.lane.b32.xlu0 %v3526, 16
  %v3543 = vpop.permute.xlu0 %3542
  %3544 = vrot.lane.b32.xlu0 %v3527, 16
  %v3545 = vpop.permute.xlu0 %3544
  %3546 = vrot.lane.b32.xlu0 %v3528, 16
  %v3547 = vpop.permute.xlu0 %3546
  %3548 = vrot.lane.b32.xlu0 %v3529, 16
  %v3549 = vpop.permute.xlu0 %3548
  %3550 = vrot.lane.b32.xlu0 %v3530, 16
  %v3551 = vpop.permute.xlu0 %3550
  %3552 = vrot.lane.b32.xlu0 %v3531, 16
  %v3553 = vpop.permute.xlu0 %3552
  %3554 = vrot.lane.b32.xlu0 %v3532, 16
  %v3555 = vpop.permute.xlu0 %3554
  %3556 = vrot.lane.b32.xlu0 %v3533, 16
  %v3557 = vpop.permute.xlu0 %3556
  %3558 = vrot.lane.b32.xlu0 %v3534, 16
  %v3559 = vpop.permute.xlu0 %3558
  %3560 = vrot.lane.b32.xlu0 %v3535, 16
  %v3561 = vpop.permute.xlu0 %3560
  %3562 = vrot.lane.b32.xlu0 %v3536, 16
  %v3563 = vpop.permute.xlu0 %3562
  %3564 = vrot.lane.b32.xlu0 %v3537, 16
  %v3565 = vpop.permute.xlu0 %3564
  %3566 = vrot.lane.b32.xlu0 %v3538, 16
  %v3567 = vpop.permute.xlu0 %3566
  %3568 = vrot.lane.b32.xlu0 %v3539, 16
  %v3569 = vpop.permute.xlu0 %3568
  %3570 = vrot.lane.b32.xlu0 %v3540, 16
  %v3571 = vpop.permute.xlu0 %3570
  %3572 = vrot.lane.b32.xlu0 %v3541, 16
  %v3573 = vpop.permute.xlu0 %3572
  %v3574 = vpack.c.b16 %v3494, %v3494
  %v3575 = vpack.c.b16 %v3496, %v3496
  %v3576 = vpack.c.b16 %v3498, %v3498
  %v3577 = vpack.c.b16 %v3500, %v3500
  %v3578 = vpack.c.b16 %v3502, %v3502
  %v3579 = vpack.c.b16 %v3504, %v3504
  %v3580 = vpack.c.b16 %v3506, %v3506
  %v3581 = vpack.c.b16 %v3508, %v3508
  %v3582 = vpack.c.b16 %v3510, %v3510
  %v3583 = vpack.c.b16 %v3512, %v3512
  %v3584 = vpack.c.b16 %v3514, %v3514
  %v3585 = vpack.c.b16 %v3516, %v3516
  %v3586 = vpack.c.b16 %v3518, %v3518
  %v3587 = vpack.c.b16 %v3520, %v3520
  %v3588 = vpack.c.b16 %v3522, %v3522
  %v3589 = vpack.c.b16 %v3524, %v3524
  %v3591 = vshrl.u32 %v3574, 16
  %v3593 = vrot.slane %v3591, 7
  %v3594 = vshll.u32 %v3574, 16
  %v3596 = vor.u32 %v3593, %v3594
  %v3598 = vshrl.u32 %v3575, 16
  %v3600 = vrot.slane %v3598, 7
  %v3601 = vshll.u32 %v3575, 16
  %v3603 = vor.u32 %v3600, %v3601
  %v3605 = vshrl.u32 %v3576, 16
  %v3607 = vrot.slane %v3605, 7
  %v3608 = vshll.u32 %v3576, 16
  %v3610 = vor.u32 %v3607, %v3608
  %v3612 = vshrl.u32 %v3577, 16
  %v3614 = vrot.slane %v3612, 7
  %v3615 = vshll.u32 %v3577, 16
  %v3617 = vor.u32 %v3614, %v3615
  %v3619 = vshrl.u32 %v3578, 16
  %v3621 = vrot.slane %v3619, 7
  %v3622 = vshll.u32 %v3578, 16
  %v3624 = vor.u32 %v3621, %v3622
  %v3626 = vshrl.u32 %v3579, 16
  %v3628 = vrot.slane %v3626, 7
  %v3629 = vshll.u32 %v3579, 16
  %v3631 = vor.u32 %v3628, %v3629
  %v3633 = vshrl.u32 %v3580, 16
  %v3635 = vrot.slane %v3633, 7
  %v3636 = vshll.u32 %v3580, 16
  %v3638 = vor.u32 %v3635, %v3636
  %v3640 = vshrl.u32 %v3581, 16
  %v3642 = vrot.slane %v3640, 7
  %v3643 = vshll.u32 %v3581, 16
  %v3645 = vor.u32 %v3642, %v3643
  %v3647 = vshrl.u32 %v3582, 16
  %v3649 = vrot.slane %v3647, 7
  %v3650 = vshll.u32 %v3582, 16
  %v3652 = vor.u32 %v3649, %v3650
  %v3654 = vshrl.u32 %v3583, 16
  %v3656 = vrot.slane %v3654, 7
  %v3657 = vshll.u32 %v3583, 16
  %v3659 = vor.u32 %v3656, %v3657
  %v3661 = vshrl.u32 %v3584, 16
  %v3663 = vrot.slane %v3661, 7
  %v3664 = vshll.u32 %v3584, 16
  %v3666 = vor.u32 %v3663, %v3664
  %v3668 = vshrl.u32 %v3585, 16
  %v3670 = vrot.slane %v3668, 7
  %v3671 = vshll.u32 %v3585, 16
  %v3673 = vor.u32 %v3670, %v3671
  %v3675 = vshrl.u32 %v3586, 16
  %v3677 = vrot.slane %v3675, 7
  %v3678 = vshll.u32 %v3586, 16
  %v3680 = vor.u32 %v3677, %v3678
  %v3682 = vshrl.u32 %v3587, 16
  %v3684 = vrot.slane %v3682, 7
  %v3685 = vshll.u32 %v3587, 16
  %v3687 = vor.u32 %v3684, %v3685
  %v3689 = vshrl.u32 %v3588, 16
  %v3691 = vrot.slane %v3689, 7
  %v3692 = vshll.u32 %v3588, 16
  %v3694 = vor.u32 %v3691, %v3692
  %v3696 = vshrl.u32 %v3589, 16
  %v3698 = vrot.slane %v3696, 7
  %v3699 = vshll.u32 %v3589, 16
  %v3701 = vor.u32 %v3698, %v3699
  %3702 = vrot.lane.b32.xlu0 %v3596, 24
  %v3703 = vpop.permute.xlu0 %3702
  %3704 = vrot.lane.b32.xlu0 %v3603, 24
  %v3705 = vpop.permute.xlu0 %3704
  %3706 = vrot.lane.b32.xlu0 %v3610, 24
  %v3707 = vpop.permute.xlu0 %3706
  %3708 = vrot.lane.b32.xlu0 %v3617, 24
  %v3709 = vpop.permute.xlu0 %3708
  %3710 = vrot.lane.b32.xlu0 %v3624, 24
  %v3711 = vpop.permute.xlu0 %3710
  %3712 = vrot.lane.b32.xlu0 %v3631, 24
  %v3713 = vpop.permute.xlu0 %3712
  %3714 = vrot.lane.b32.xlu0 %v3638, 24
  %v3715 = vpop.permute.xlu0 %3714
  %3716 = vrot.lane.b32.xlu0 %v3645, 24
  %v3717 = vpop.permute.xlu0 %3716
  %3718 = vrot.lane.b32.xlu0 %v3652, 24
  %v3719 = vpop.permute.xlu0 %3718
  %3720 = vrot.lane.b32.xlu0 %v3659, 24
  %v3721 = vpop.permute.xlu0 %3720
  %3722 = vrot.lane.b32.xlu0 %v3666, 24
  %v3723 = vpop.permute.xlu0 %3722
  %3724 = vrot.lane.b32.xlu0 %v3673, 24
  %v3725 = vpop.permute.xlu0 %3724
  %3726 = vrot.lane.b32.xlu0 %v3680, 24
  %v3727 = vpop.permute.xlu0 %3726
  %3728 = vrot.lane.b32.xlu0 %v3687, 24
  %v3729 = vpop.permute.xlu0 %3728
  %3730 = vrot.lane.b32.xlu0 %v3694, 24
  %v3731 = vpop.permute.xlu0 %3730
  %3732 = vrot.lane.b32.xlu0 %v3701, 24
  %v3733 = vpop.permute.xlu0 %3732
  %v3736 = vsel %vm1174, %v3286, %v3431
  %v3739 = vsel %vm1174, %v3287, %v3433
  %v3742 = vsel %vm1174, %v3288, %v3435
  %v3745 = vsel %vm1174, %v3289, %v3437
  %v3748 = vsel %vm1174, %v3290, %v3439
  %v3751 = vsel %vm1174, %v3291, %v3441
  %v3754 = vsel %vm1174, %v3292, %v3443
  %v3757 = vsel %vm1174, %v3293, %v3445
  %v3760 = vsel %vm1174, %v3294, %v3447
  %v3763 = vsel %vm1174, %v3295, %v3449
  %v3766 = vsel %vm1174, %v3296, %v3451
  %v3769 = vsel %vm1174, %v3297, %v3453
  %v3772 = vsel %vm1174, %v3298, %v3455
  %v3775 = vsel %vm1174, %v3299, %v3457
  %v3778 = vsel %vm1174, %v3300, %v3459
  %v3781 = vsel %vm1174, %v3301, %v3461
  %v3783 = vsel %vm1223, %v3736, %v3543
  %v3785 = vsel %vm1223, %v3739, %v3545
  %v3787 = vsel %vm1223, %v3742, %v3547
  %v3789 = vsel %vm1223, %v3745, %v3549
  %v3791 = vsel %vm1223, %v3748, %v3551
  %v3793 = vsel %vm1223, %v3751, %v3553
  %v3795 = vsel %vm1223, %v3754, %v3555
  %v3797 = vsel %vm1223, %v3757, %v3557
  %v3799 = vsel %vm1223, %v3760, %v3559
  %v3801 = vsel %vm1223, %v3763, %v3561
  %v3803 = vsel %vm1223, %v3766, %v3563
  %v3805 = vsel %vm1223, %v3769, %v3565
  %v3807 = vsel %vm1223, %v3772, %v3567
  %v3809 = vsel %vm1223, %v3775, %v3569
  %v3811 = vsel %vm1223, %v3778, %v3571
  %v3813 = vsel %vm1223, %v3781, %v3573
  %v3815 = vsel %vm1256, %v3783, %v3703
  %v3817 = vsel %vm1256, %v3785, %v3705
  %v3819 = vsel %vm1256, %v3787, %v3707
  %v3821 = vsel %vm1256, %v3789, %v3709
  %v3823 = vsel %vm1256, %v3791, %v3711
  %v3825 = vsel %vm1256, %v3793, %v3713
  %v3827 = vsel %vm1256, %v3795, %v3715
  %v3829 = vsel %vm1256, %v3797, %v3717
  %v3831 = vsel %vm1256, %v3799, %v3719
  %v3833 = vsel %vm1256, %v3801, %v3721
  %v3835 = vsel %vm1256, %v3803, %v3723
  %v3837 = vsel %vm1256, %v3805, %v3725
  %v3839 = vsel %vm1256, %v3807, %v3727
  %v3841 = vsel %vm1256, %v3809, %v3729
  %v3843 = vsel %vm1256, %v3811, %v3731
  %v3845 = vsel %vm1256, %v3813, %v3733
  %v3862 = vunpack.c.l.b16 %v3815
  %v3863 = vunpack.c.h.b16 %v3815
  %v3864 = vunpack.c.l.b16 %v3817
  %v3865 = vunpack.c.h.b16 %v3817
  %v3866 = vunpack.c.l.b16 %v3819
  %v3867 = vunpack.c.h.b16 %v3819
  %v3868 = vunpack.c.l.b16 %v3821
  %v3869 = vunpack.c.h.b16 %v3821
  %v3870 = vunpack.c.l.b16 %v3823
  %v3871 = vunpack.c.h.b16 %v3823
  %v3872 = vunpack.c.l.b16 %v3825
  %v3873 = vunpack.c.h.b16 %v3825
  %v3874 = vunpack.c.l.b16 %v3827
  %v3875 = vunpack.c.h.b16 %v3827
  %v3876 = vunpack.c.l.b16 %v3829
  %v3877 = vunpack.c.h.b16 %v3829
  %v3878 = vunpack.c.l.b16 %v3831
  %v3879 = vunpack.c.h.b16 %v3831
  %v3880 = vunpack.c.l.b16 %v3833
  %v3881 = vunpack.c.h.b16 %v3833
  %v3882 = vunpack.c.l.b16 %v3835
  %v3883 = vunpack.c.h.b16 %v3835
  %v3884 = vunpack.c.l.b16 %v3837
  %v3885 = vunpack.c.h.b16 %v3837
  %v3886 = vunpack.c.l.b16 %v3839
  %v3887 = vunpack.c.h.b16 %v3839
  %v3888 = vunpack.c.l.b16 %v3841
  %v3889 = vunpack.c.h.b16 %v3841
  %v3890 = vunpack.c.l.b16 %v3843
  %v3891 = vunpack.c.h.b16 %v3843
  %v3892 = vunpack.c.l.b16 %v3845
  %v3893 = vunpack.c.h.b16 %v3845
  %v3894 = vpack.c.b16 %v3862, %v3862
  %v3895 = vpack.c.b16 %v3863, %v3863
  %v3896 = vpack.c.b16 %v3864, %v3864
  %v3897 = vpack.c.b16 %v3865, %v3865
  %v3898 = vpack.c.b16 %v3866, %v3866
  %v3899 = vpack.c.b16 %v3867, %v3867
  %v3900 = vpack.c.b16 %v3868, %v3868
  %v3901 = vpack.c.b16 %v3869, %v3869
  %v3902 = vpack.c.b16 %v3870, %v3870
  %v3903 = vpack.c.b16 %v3871, %v3871
  %v3904 = vpack.c.b16 %v3872, %v3872
  %v3905 = vpack.c.b16 %v3873, %v3873
  %v3906 = vpack.c.b16 %v3874, %v3874
  %v3907 = vpack.c.b16 %v3875, %v3875
  %v3908 = vpack.c.b16 %v3876, %v3876
  %v3909 = vpack.c.b16 %v3877, %v3877
  %v3910 = vpack.c.b16 %v3878, %v3878
  %v3911 = vpack.c.b16 %v3879, %v3879
  %v3912 = vpack.c.b16 %v3880, %v3880
  %v3913 = vpack.c.b16 %v3881, %v3881
  %v3914 = vpack.c.b16 %v3882, %v3882
  %v3915 = vpack.c.b16 %v3883, %v3883
  %v3916 = vpack.c.b16 %v3884, %v3884
  %v3917 = vpack.c.b16 %v3885, %v3885
  %v3918 = vpack.c.b16 %v3886, %v3886
  %v3919 = vpack.c.b16 %v3887, %v3887
  %v3920 = vpack.c.b16 %v3888, %v3888
  %v3921 = vpack.c.b16 %v3889, %v3889
  %v3922 = vpack.c.b16 %v3890, %v3890
  %v3923 = vpack.c.b16 %v3891, %v3891
  %v3924 = vpack.c.b16 %v3892, %v3892
  %v3925 = vpack.c.b16 %v3893, %v3893
  %v3927 = vshrl.u32 %v3894, 16
  %v3929 = vrot.slane %v3927, 4
  %v3930 = vshll.u32 %v3894, 16
  %v3932 = vrot.slane %v3930, 5
  %v3933 = vor.u32 %v3929, %v3932
  %v3934 = vrot.slane %v3933, 4
  %v3936 = vshll.u32 %v3895, 16
  %v3938 = vrot.slane %v3936, 5
  %v3939 = vsel %vm1371, %v3934, %v3938
  %v3941 = vshrl.u32 %v3896, 16
  %v3943 = vrot.slane %v3941, 4
  %v3944 = vshll.u32 %v3896, 16
  %v3946 = vrot.slane %v3944, 5
  %v3947 = vor.u32 %v3943, %v3946
  %v3948 = vrot.slane %v3947, 4
  %v3950 = vshll.u32 %v3897, 16
  %v3952 = vrot.slane %v3950, 5
  %v3953 = vsel %vm1371, %v3948, %v3952
  %v3955 = vshrl.u32 %v3898, 16
  %v3957 = vrot.slane %v3955, 4
  %v3958 = vshll.u32 %v3898, 16
  %v3960 = vrot.slane %v3958, 5
  %v3961 = vor.u32 %v3957, %v3960
  %v3962 = vrot.slane %v3961, 4
  %v3964 = vshll.u32 %v3899, 16
  %v3966 = vrot.slane %v3964, 5
  %v3967 = vsel %vm1371, %v3962, %v3966
  %v3969 = vshrl.u32 %v3900, 16
  %v3971 = vrot.slane %v3969, 4
  %v3972 = vshll.u32 %v3900, 16
  %v3974 = vrot.slane %v3972, 5
  %v3975 = vor.u32 %v3971, %v3974
  %v3976 = vrot.slane %v3975, 4
  %v3978 = vshll.u32 %v3901, 16
  %v3980 = vrot.slane %v3978, 5
  %v3981 = vsel %vm1371, %v3976, %v3980
  %v3983 = vshrl.u32 %v3902, 16
  %v3985 = vrot.slane %v3983, 4
  %v3986 = vshll.u32 %v3902, 16
  %v3988 = vrot.slane %v3986, 5
  %v3989 = vor.u32 %v3985, %v3988
  %v3990 = vrot.slane %v3989, 4
  %v3992 = vshll.u32 %v3903, 16
  %v3994 = vrot.slane %v3992, 5
  %v3995 = vsel %vm1371, %v3990, %v3994
  %v3997 = vshrl.u32 %v3904, 16
  %v3999 = vrot.slane %v3997, 4
  %v4000 = vshll.u32 %v3904, 16
  %v4002 = vrot.slane %v4000, 5
  %v4003 = vor.u32 %v3999, %v4002
  %v4004 = vrot.slane %v4003, 4
  %v4006 = vshll.u32 %v3905, 16
  %v4008 = vrot.slane %v4006, 5
  %v4009 = vsel %vm1371, %v4004, %v4008
  %v4011 = vshrl.u32 %v3906, 16
  %v4013 = vrot.slane %v4011, 4
  %v4014 = vshll.u32 %v3906, 16
  %v4016 = vrot.slane %v4014, 5
  %v4017 = vor.u32 %v4013, %v4016
  %v4018 = vrot.slane %v4017, 4
  %v4020 = vshll.u32 %v3907, 16
  %v4022 = vrot.slane %v4020, 5
  %v4023 = vsel %vm1371, %v4018, %v4022
  %v4025 = vshrl.u32 %v3908, 16
  %v4027 = vrot.slane %v4025, 4
  %v4028 = vshll.u32 %v3908, 16
  %v4030 = vrot.slane %v4028, 5
  %v4031 = vor.u32 %v4027, %v4030
  %v4032 = vrot.slane %v4031, 4
  %v4034 = vshll.u32 %v3909, 16
  %v4036 = vrot.slane %v4034, 5
  %v4037 = vsel %vm1371, %v4032, %v4036
  %v4039 = vshrl.u32 %v3910, 16
  %v4041 = vrot.slane %v4039, 4
  %v4042 = vshll.u32 %v3910, 16
  %v4044 = vrot.slane %v4042, 5
  %v4045 = vor.u32 %v4041, %v4044
  %v4046 = vrot.slane %v4045, 4
  %v4048 = vshll.u32 %v3911, 16
  %v4050 = vrot.slane %v4048, 5
  %v4051 = vsel %vm1371, %v4046, %v4050
  %v4053 = vshrl.u32 %v3912, 16
  %v4055 = vrot.slane %v4053, 4
  %v4056 = vshll.u32 %v3912, 16
  %v4058 = vrot.slane %v4056, 5
  %v4059 = vor.u32 %v4055, %v4058
  %v4060 = vrot.slane %v4059, 4
  %v4062 = vshll.u32 %v3913, 16
  %v4064 = vrot.slane %v4062, 5
  %v4065 = vsel %vm1371, %v4060, %v4064
  %v4067 = vshrl.u32 %v3914, 16
  %v4069 = vrot.slane %v4067, 4
  %v4070 = vshll.u32 %v3914, 16
  %v4072 = vrot.slane %v4070, 5
  %v4073 = vor.u32 %v4069, %v4072
  %v4074 = vrot.slane %v4073, 4
  %v4076 = vshll.u32 %v3915, 16
  %v4078 = vrot.slane %v4076, 5
  %v4079 = vsel %vm1371, %v4074, %v4078
  %v4081 = vshrl.u32 %v3916, 16
  %v4083 = vrot.slane %v4081, 4
  %v4084 = vshll.u32 %v3916, 16
  %v4086 = vrot.slane %v4084, 5
  %v4087 = vor.u32 %v4083, %v4086
  %v4088 = vrot.slane %v4087, 4
  %v4090 = vshll.u32 %v3917, 16
  %v4092 = vrot.slane %v4090, 5
  %v4093 = vsel %vm1371, %v4088, %v4092
  %v4095 = vshrl.u32 %v3918, 16
  %v4097 = vrot.slane %v4095, 4
  %v4098 = vshll.u32 %v3918, 16
  %v4100 = vrot.slane %v4098, 5
  %v4101 = vor.u32 %v4097, %v4100
  %v4102 = vrot.slane %v4101, 4
  %v4104 = vshll.u32 %v3919, 16
  %v4106 = vrot.slane %v4104, 5
  %v4107 = vsel %vm1371, %v4102, %v4106
  %v4109 = vshrl.u32 %v3920, 16
  %v4111 = vrot.slane %v4109, 4
  %v4112 = vshll.u32 %v3920, 16
  %v4114 = vrot.slane %v4112, 5
  %v4115 = vor.u32 %v4111, %v4114
  %v4116 = vrot.slane %v4115, 4
  %v4118 = vshll.u32 %v3921, 16
  %v4120 = vrot.slane %v4118, 5
  %v4121 = vsel %vm1371, %v4116, %v4120
  %v4123 = vshrl.u32 %v3922, 16
  %v4125 = vrot.slane %v4123, 4
  %v4126 = vshll.u32 %v3922, 16
  %v4128 = vrot.slane %v4126, 5
  %v4129 = vor.u32 %v4125, %v4128
  %v4130 = vrot.slane %v4129, 4
  %v4132 = vshll.u32 %v3923, 16
  %v4134 = vrot.slane %v4132, 5
  %v4135 = vsel %vm1371, %v4130, %v4134
  %v4137 = vshrl.u32 %v3924, 16
  %v4139 = vrot.slane %v4137, 4
  %v4140 = vshll.u32 %v3924, 16
  %v4142 = vrot.slane %v4140, 5
  %v4143 = vor.u32 %v4139, %v4142
  %v4144 = vrot.slane %v4143, 4
  %v4146 = vshll.u32 %v3925, 16
  %v4148 = vrot.slane %v4146, 5
  %v4149 = vsel %vm1371, %v4144, %v4148
  %s4150 = scalar_lea.vmem %s2, 32
  %v4151 = vld [vmem:[%s4150] sm:$0xf]
  %v4152 = vld [vmem:[%s4150 + $0x4] sm:$0xf]
  %v4153 = vld [vmem:[%s4150 + $0x8] sm:$0xf]
  %v4154 = vld [vmem:[%s4150 + $0xc] sm:$0xf]
  %v4155 = vunpack.c.l.b16 %v3939
  %v4156 = vunpack.c.l.b16 %v3953
  %v4157 = vunpack.c.l.b16 %v3967
  %v4158 = vunpack.c.l.b16 %v3981
  %v4159 = vunpack.c.l.b16 %v3995
  %v4160 = vunpack.c.l.b16 %v4009
  %v4161 = vunpack.c.l.b16 %v4023
  %v4162 = vunpack.c.l.b16 %v4037
  %v4163 = vunpack.c.l.b16 %v4051
  %v4164 = vunpack.c.l.b16 %v4065
  %v4165 = vunpack.c.l.b16 %v4079
  %v4166 = vunpack.c.l.b16 %v4093
  %v4167 = vunpack.c.l.b16 %v4107
  %v4168 = vunpack.c.l.b16 %v4121
  %v4169 = vunpack.c.l.b16 %v4135
  %v4170 = vunpack.c.l.b16 %v4149
  %v4171 = vpack.c.b16 %v4156, %v4155
  %v4172 = vpack.c.b16 %v4158, %v4157
  %v4173 = vpack.c.b16 %v4160, %v4159
  %v4174 = vpack.c.b16 %v4162, %v4161
  %v4175 = vpack.c.b16 %v4164, %v4163
  %v4176 = vpack.c.b16 %v4166, %v4165
  %v4177 = vpack.c.b16 %v4168, %v4167
  %v4178 = vpack.c.b16 %v4170, %v4169
  %v4183 = vunpack.c.l.b16 %v4151
  %v4184 = vunpack.c.l.b16 %v4152
  %v4185 = vunpack.c.l.b16 %v4153
  %v4186 = vunpack.c.l.b16 %v4154
  %v4187 = vpack.c.b16 %v4184, %v4183
  %v4188 = vpack.c.b16 %v4186, %v4185
  %v4192 = vsel %vm1636, %v4171, 0
  %v4195 = vsel %vm1636, %v4172, 0
  %v4198 = vsel %vm1636, %v4173, 0
  %v4201 = vsel %vm1636, %v4174, 0
  %v4204 = vsel %vm1636, %v4175, 0
  %v4207 = vsel %vm1636, %v4176, 0
  %v4210 = vsel %vm1636, %v4177, 0
  %v4213 = vsel %vm1636, %v4178, 0
  %4215 = vmatprep.subr.bf16.mxu0 0
  %4216 = vmatpush1.bf16.msra.mxu0 %v4187
  %4217 = vmatprep.subr.bf16.mxu0 0
  %4218 = vmatpush1.bf16.msra.mxu0 %v4188
  %4219 = vmatprep.subr.bf16.mxu0 0
  %4220 = vmatpush1.bf16.msra.mxu0 0
  %4221 = vmatprep.subr.bf16.mxu0 0
  %4222 = vmatpush1.bf16.msra.mxu0 0
  %4223 = vmatprep.subr.bf16.mxu0 0
  %4224 = vmatpush1.bf16.msra.mxu0 0
  %4225 = vmatprep.subr.bf16.mxu0 0
  %4226 = vmatpush1.bf16.msra.mxu0 0
  %4227 = vmatprep.subr.bf16.mxu0 0
  %4228 = vmatpush1.bf16.msra.mxu0 0
  %4229 = vmatprep.subr.bf16.mxu0 0
  %4230 = vmatpush1.bf16.msra.mxu0 0
  %4231 = vmatprep.subr.bf16.mxu0 0
  %4232 = vmatpush1.bf16.msra.mxu0 0
  %4233 = vmatprep.subr.bf16.mxu0 0
  %4234 = vmatpush1.bf16.msra.mxu0 0
  %4235 = vmatprep.subr.bf16.mxu0 0
  %4236 = vmatpush1.bf16.msra.mxu0 0
  %4237 = vmatprep.subr.bf16.mxu0 0
  %4238 = vmatpush1.bf16.msra.mxu0 0
  %4239 = vmatprep.subr.bf16.mxu0 0
  %4240 = vmatpush1.bf16.msra.mxu0 0
  %4241 = vmatprep.subr.bf16.mxu0 0
  %4242 = vmatpush1.bf16.msra.mxu0 0
  %4243 = vmatprep.subr.bf16.mxu0 0
  %4244 = vmatpush1.bf16.msra.mxu0 0
  %4245 = vmatprep.subr.bf16.mxu0 0
  %4246 = vmatpush1.bf16.msra.mxu0 0
  %4247 = vmatprep.mubr.bf16.mxu0 0
  %4248 = vmatmul.mubr.bf16.gmra.mrb[0].mxu0 %v4192
  %v4249 = vpop.f32.mrb[0].mxu0
  %v4250 = vadd.f32 0.0, %v4249
  %v4251 = vpop.f32.mrb[0].mxu0
  %v4252 = vpop.f32.mrb[0].mxu0
  %v4253 = vadd.f32 0.0, %v4252
  %v4254 = vpop.f32.mrb[0].mxu0
  %4255 = vmatprep.mubr.bf16.mxu0 0
  %4256 = vmatmul.mubr.bf16.gmra.mrb[0].mxu0 %v4195
  %v4257 = vpop.f32.mrb[0].mxu0
  %v4258 = vadd.f32 0.0, %v4257
  %v4259 = vpop.f32.mrb[0].mxu0
  %v4260 = vpop.f32.mrb[0].mxu0
  %v4261 = vadd.f32 0.0, %v4260
  %v4262 = vpop.f32.mrb[0].mxu0
  %4263 = vmatprep.mubr.bf16.mxu0 0
  %4264 = vmatmul.mubr.bf16.gmra.mrb[0].mxu0 %v4198
  %v4265 = vpop.f32.mrb[0].mxu0
  %v4266 = vadd.f32 0.0, %v4265
  %v4267 = vpop.f32.mrb[0].mxu0
  %v4268 = vpop.f32.mrb[0].mxu0
  %v4269 = vadd.f32 0.0, %v4268
  %v4270 = vpop.f32.mrb[0].mxu0
  %4271 = vmatprep.mubr.bf16.mxu0 0
  %4272 = vmatmul.mubr.bf16.gmra.mrb[0].mxu0 %v4201
  %v4273 = vpop.f32.mrb[0].mxu0
  %v4274 = vadd.f32 0.0, %v4273
  %v4275 = vpop.f32.mrb[0].mxu0
  %v4276 = vpop.f32.mrb[0].mxu0
  %v4277 = vadd.f32 0.0, %v4276
  %v4278 = vpop.f32.mrb[0].mxu0
  %4279 = vmatprep.mubr.bf16.mxu0 0
  %4280 = vmatmul.mubr.bf16.gmra.mrb[0].mxu0 %v4204
  %v4281 = vpop.f32.mrb[0].mxu0
  %v4282 = vadd.f32 0.0, %v4281
  %v4283 = vpop.f32.mrb[0].mxu0
  %v4284 = vpop.f32.mrb[0].mxu0
  %v4285 = vadd.f32 0.0, %v4284
  %v4286 = vpop.f32.mrb[0].mxu0
  %4287 = vmatprep.mubr.bf16.mxu0 0
  %4288 = vmatmul.mubr.bf16.gmra.mrb[0].mxu0 %v4207
  %v4289 = vpop.f32.mrb[0].mxu0
  %v4290 = vadd.f32 0.0, %v4289
  %v4291 = vpop.f32.mrb[0].mxu0
  %v4292 = vpop.f32.mrb[0].mxu0
  %v4293 = vadd.f32 0.0, %v4292
  %v4294 = vpop.f32.mrb[0].mxu0
  %4295 = vmatprep.mubr.bf16.mxu0 0
  %4296 = vmatmul.mubr.bf16.gmra.mrb[0].mxu0 %v4210
  %v4297 = vpop.f32.mrb[0].mxu0
  %v4298 = vadd.f32 0.0, %v4297
  %v4299 = vpop.f32.mrb[0].mxu0
  %v4300 = vpop.f32.mrb[0].mxu0
  %v4301 = vadd.f32 0.0, %v4300
  %v4302 = vpop.f32.mrb[0].mxu0
  %4303 = vmatprep.mubr.bf16.mxu0 0
  %4304 = vmatmul.mubr.bf16.gmra.mrb[0].mxu0 %v4213
  %v4305 = vpop.f32.mrb[0].mxu0
  %v4306 = vadd.f32 0.0, %v4305
  %v4307 = vpop.f32.mrb[0].mxu0
  %v4308 = vpop.f32.mrb[0].mxu0
  %v4309 = vadd.f32 0.0, %v4308
  %v4310 = vpop.f32.mrb[0].mxu0
  %4311 = vdwg.mxu0
  %v4312 = vsel %vm1758, %v4250, 0.0
  %v4313 = vsel %vm1758, %v4253, 0.0
  %v4314 = vadd.f32 %v4312, %v4313
  %v4315 = vsel %vm1758, %v4258, 0.0
  %v4316 = vadd.f32 %v4314, %v4315
  %v4317 = vsel %vm1758, %v4261, 0.0
  %v4318 = vadd.f32 %v4316, %v4317
  %v4319 = vsel %vm1758, %v4266, 0.0
  %v4320 = vadd.f32 %v4318, %v4319
  %v4321 = vsel %vm1758, %v4269, 0.0
  %v4322 = vadd.f32 %v4320, %v4321
  %v4323 = vsel %vm1758, %v4274, 0.0
  %v4324 = vadd.f32 %v4322, %v4323
  %v4325 = vsel %vm1758, %v4277, 0.0
  %v4326 = vadd.f32 %v4324, %v4325
  %v4327 = vrot.slane %v4326, 4
  %v4328 = vadd.f32 %v4326, %v4327
  %v4329 = vrot.slane %v4328, 2
  %v4330 = vadd.f32 %v4328, %v4329
  %v4331 = vrot.slane %v4330, 1
  %v4332 = vadd.f32 %v4330, %v4331
  %v4333 = vsel %vm1758, %v4282, 0.0
  %v4334 = vsel %vm1758, %v4285, 0.0
  %v4335 = vadd.f32 %v4333, %v4334
  %v4336 = vsel %vm1758, %v4290, 0.0
  %v4337 = vadd.f32 %v4335, %v4336
  %v4338 = vsel %vm1758, %v4293, 0.0
  %v4339 = vadd.f32 %v4337, %v4338
  %v4340 = vsel %vm1758, %v4298, 0.0
  %v4341 = vadd.f32 %v4339, %v4340
  %v4342 = vsel %vm1758, %v4301, 0.0
  %v4343 = vadd.f32 %v4341, %v4342
  %v4344 = vsel %vm1758, %v4306, 0.0
  %v4345 = vadd.f32 %v4343, %v4344
  %v4346 = vsel %vm1758, %v4309, 0.0
  %v4347 = vadd.f32 %v4345, %v4346
  %v4348 = vrot.slane %v4347, 4
  %v4349 = vadd.f32 %v4347, %v4348
  %v4350 = vrot.slane %v4349, 2
  %v4351 = vadd.f32 %v4349, %v4350
  %v4352 = vrot.slane %v4351, 1
  %v4353 = vadd.f32 %v4351, %v4352
  %v4354 = vadd.f32 %v3014, %v4332
  %v4355 = vadd.f32 %v3015, %v4353
  %v4356 = vmul.f32 %v4250, %v4250
  %v4357 = vmul.f32 %v4253, %v4253
  %v4358 = vmul.f32 %v4258, %v4258
  %v4359 = vmul.f32 %v4261, %v4261
  %v4360 = vmul.f32 %v4266, %v4266
  %v4361 = vmul.f32 %v4269, %v4269
  %v4362 = vmul.f32 %v4274, %v4274
  %v4363 = vmul.f32 %v4277, %v4277
  %v4364 = vmul.f32 %v4282, %v4282
  %v4365 = vmul.f32 %v4285, %v4285
  %v4366 = vmul.f32 %v4290, %v4290
  %v4367 = vmul.f32 %v4293, %v4293
  %v4368 = vmul.f32 %v4298, %v4298
  %v4369 = vmul.f32 %v4301, %v4301
  %v4370 = vmul.f32 %v4306, %v4306
  %v4371 = vmul.f32 %v4309, %v4309
  %v4372 = vsel %vm1758, %v4356, 0.0
  %v4373 = vsel %vm1758, %v4357, 0.0
  %v4374 = vadd.f32 %v4372, %v4373
  %v4375 = vsel %vm1758, %v4358, 0.0
  %v4376 = vadd.f32 %v4374, %v4375
  %v4377 = vsel %vm1758, %v4359, 0.0
  %v4378 = vadd.f32 %v4376, %v4377
  %v4379 = vsel %vm1758, %v4360, 0.0
  %v4380 = vadd.f32 %v4378, %v4379
  %v4381 = vsel %vm1758, %v4361, 0.0
  %v4382 = vadd.f32 %v4380, %v4381
  %v4383 = vsel %vm1758, %v4362, 0.0
  %v4384 = vadd.f32 %v4382, %v4383
  %v4385 = vsel %vm1758, %v4363, 0.0
  %v4386 = vadd.f32 %v4384, %v4385
  %v4387 = vrot.slane %v4386, 4
  %v4388 = vadd.f32 %v4386, %v4387
  %v4389 = vrot.slane %v4388, 2
  %v4390 = vadd.f32 %v4388, %v4389
  %v4391 = vrot.slane %v4390, 1
  %v4392 = vadd.f32 %v4390, %v4391
  %v4393 = vsel %vm1758, %v4364, 0.0
  %v4394 = vsel %vm1758, %v4365, 0.0
  %v4395 = vadd.f32 %v4393, %v4394
  %v4396 = vsel %vm1758, %v4366, 0.0
  %v4397 = vadd.f32 %v4395, %v4396
  %v4398 = vsel %vm1758, %v4367, 0.0
  %v4399 = vadd.f32 %v4397, %v4398
  %v4400 = vsel %vm1758, %v4368, 0.0
  %v4401 = vadd.f32 %v4399, %v4400
  %v4402 = vsel %vm1758, %v4369, 0.0
  %v4403 = vadd.f32 %v4401, %v4402
  %v4404 = vsel %vm1758, %v4370, 0.0
  %v4405 = vadd.f32 %v4403, %v4404
  %v4406 = vsel %vm1758, %v4371, 0.0
  %v4407 = vadd.f32 %v4405, %v4406
  %v4408 = vrot.slane %v4407, 4
  %v4409 = vadd.f32 %v4407, %v4408
  %v4410 = vrot.slane %v4409, 2
  %v4411 = vadd.f32 %v4409, %v4410
  %v4412 = vrot.slane %v4411, 1
  %v4413 = vadd.f32 %v4411, %v4412
  %v4414 = vadd.f32 %v3074, %v4392
  %v4415 = vadd.f32 %v3075, %v4413
  %4432 = vrot.lane.b32.xlu0 %v4250, 8
  %v4433 = vpop.permute.xlu0 %4432
  %4434 = vrot.lane.b32.xlu0 %v4253, 8
  %v4435 = vpop.permute.xlu0 %4434
  %4436 = vrot.lane.b32.xlu0 %v4258, 8
  %v4437 = vpop.permute.xlu0 %4436
  %4438 = vrot.lane.b32.xlu0 %v4261, 8
  %v4439 = vpop.permute.xlu0 %4438
  %4440 = vrot.lane.b32.xlu0 %v4266, 8
  %v4441 = vpop.permute.xlu0 %4440
  %4442 = vrot.lane.b32.xlu0 %v4269, 8
  %v4443 = vpop.permute.xlu0 %4442
  %4444 = vrot.lane.b32.xlu0 %v4274, 8
  %v4445 = vpop.permute.xlu0 %4444
  %4446 = vrot.lane.b32.xlu0 %v4277, 8
  %v4447 = vpop.permute.xlu0 %4446
  %4448 = vrot.lane.b32.xlu0 %v4282, 8
  %v4449 = vpop.permute.xlu0 %4448
  %4450 = vrot.lane.b32.xlu0 %v4285, 8
  %v4451 = vpop.permute.xlu0 %4450
  %4452 = vrot.lane.b32.xlu0 %v4290, 8
  %v4453 = vpop.permute.xlu0 %4452
  %4454 = vrot.lane.b32.xlu0 %v4293, 8
  %v4455 = vpop.permute.xlu0 %4454
  %4456 = vrot.lane.b32.xlu0 %v4298, 8
  %v4457 = vpop.permute.xlu0 %4456
  %4458 = vrot.lane.b32.xlu0 %v4301, 8
  %v4459 = vpop.permute.xlu0 %4458
  %4460 = vrot.lane.b32.xlu0 %v4306, 8
  %v4461 = vpop.permute.xlu0 %4460
  %4462 = vrot.lane.b32.xlu0 %v4309, 8
  %v4463 = vpop.permute.xlu0 %4462
  %vm4480 = vcmask 97344
  %4481 = vst.msk [vmem:[%s3] sm:$0xff] %vm4480, %v4433
  %4482 = vst.msk [vmem:[%s3 + $0x8] sm:$0xff] %vm4480, %v4435
  %4483 = vst.msk [vmem:[%s3 + $0x10] sm:$0xff] %vm4480, %v4437
  %4484 = vst.msk [vmem:[%s3 + $0x18] sm:$0xff] %vm4480, %v4439
  %4485 = vst.msk [vmem:[%s3 + $0x20] sm:$0xff] %vm4480, %v4441
  %4486 = vst.msk [vmem:[%s3 + $0x28] sm:$0xff] %vm4480, %v4443
  %4487 = vst.msk [vmem:[%s3 + $0x30] sm:$0xff] %vm4480, %v4445
  %4488 = vst.msk [vmem:[%s3 + $0x38] sm:$0xff] %vm4480, %v4447
  %4489 = vst.msk [vmem:[%s3 + $0x40] sm:$0xff] %vm4480, %v4449
  %4490 = vst.msk [vmem:[%s3 + $0x48] sm:$0xff] %vm4480, %v4451
  %4491 = vst.msk [vmem:[%s3 + $0x50] sm:$0xff] %vm4480, %v4453
  %4492 = vst.msk [vmem:[%s3 + $0x58] sm:$0xff] %vm4480, %v4455
  %4493 = vst.msk [vmem:[%s3 + $0x60] sm:$0xff] %vm4480, %v4457
  %4494 = vst.msk [vmem:[%s3 + $0x68] sm:$0xff] %vm4480, %v4459
  %4495 = vst.msk [vmem:[%s3 + $0x70] sm:$0xff] %vm4480, %v4461
  %4496 = vst.msk [vmem:[%s3 + $0x78] sm:$0xff] %vm4480, %v4463
  %v4497 = vld [vmem:[%s3157] sm:$0xe]
  %v4498 = vld [vmem:[%s3157 + $0x4] sm:$0x1]
  %v4499 = vld [vmem:[%s3157 + $0x8] sm:$0xe]
  %v4500 = vld [vmem:[%s3157 + $0xc] sm:$0x1]
  %v4501 = vld [vmem:[%s3157 + $0x10] sm:$0xe]
  %v4502 = vld [vmem:[%s3157 + $0x14] sm:$0x1]
  %v4503 = vld [vmem:[%s3157 + $0x18] sm:$0xe]
  %v4504 = vld [vmem:[%s3157 + $0x1c] sm:$0x1]
  %v4505 = vld [vmem:[%s3157 + $0x20] sm:$0xe]
  %v4506 = vld [vmem:[%s3157 + $0x24] sm:$0x1]
  %v4507 = vld [vmem:[%s3157 + $0x28] sm:$0xe]
  %v4508 = vld [vmem:[%s3157 + $0x2c] sm:$0x1]
  %v4509 = vld [vmem:[%s3157 + $0x30] sm:$0xe]
  %v4510 = vld [vmem:[%s3157 + $0x34] sm:$0x1]
  %v4511 = vld [vmem:[%s3157 + $0x38] sm:$0xe]
  %v4512 = vld [vmem:[%s3157 + $0x3c] sm:$0x1]
  %v4513 = vld [vmem:[%s3157 + $0x50] sm:$0xe]
  %v4514 = vld [vmem:[%s3157 + $0x54] sm:$0x1]
  %v4515 = vld [vmem:[%s3157 + $0x58] sm:$0xe]
  %v4516 = vld [vmem:[%s3157 + $0x5c] sm:$0x1]
  %v4517 = vld [vmem:[%s3157 + $0x60] sm:$0xe]
  %v4518 = vld [vmem:[%s3157 + $0x64] sm:$0x1]
  %v4519 = vld [vmem:[%s3157 + $0x68] sm:$0xe]
  %v4520 = vld [vmem:[%s3157 + $0x6c] sm:$0x1]
  %v4521 = vld [vmem:[%s3157 + $0x70] sm:$0xe]
  %v4522 = vld [vmem:[%s3157 + $0x74] sm:$0x1]
  %v4523 = vld [vmem:[%s3157 + $0x78] sm:$0xe]
  %v4524 = vld [vmem:[%s3157 + $0x7c] sm:$0x1]
  %v4525 = vld [vmem:[%s3157 + $0x80] sm:$0xe]
  %v4526 = vld [vmem:[%s3157 + $0x84] sm:$0x1]
  %v4527 = vld [vmem:[%s3157 + $0x88] sm:$0xe]
  %v4528 = vld [vmem:[%s3157 + $0x8c] sm:$0x1]
  %v4529 = vld [vmem:[%s3157] sm:$0xf]
  %v4530 = vld [vmem:[%s3157 + $0x8] sm:$0xf]
  %v4531 = vld [vmem:[%s3157 + $0x10] sm:$0xf]
  %v4532 = vld [vmem:[%s3157 + $0x18] sm:$0xf]
  %v4533 = vld [vmem:[%s3157 + $0x20] sm:$0xf]
  %v4534 = vld [vmem:[%s3157 + $0x28] sm:$0xf]
  %v4535 = vld [vmem:[%s3157 + $0x30] sm:$0xf]
  %v4536 = vld [vmem:[%s3157 + $0x38] sm:$0xf]
  %v4537 = vld [vmem:[%s3157 + $0x50] sm:$0xf]
  %v4538 = vld [vmem:[%s3157 + $0x58] sm:$0xf]
  %v4539 = vld [vmem:[%s3157 + $0x60] sm:$0xf]
  %v4540 = vld [vmem:[%s3157 + $0x68] sm:$0xf]
  %v4541 = vld [vmem:[%s3157 + $0x70] sm:$0xf]
  %v4542 = vld [vmem:[%s3157 + $0x78] sm:$0xf]
  %v4543 = vld [vmem:[%s3157 + $0x80] sm:$0xf]
  %v4544 = vld [vmem:[%s3157 + $0x88] sm:$0xf]
  %v4545 = vld [vmem:[%s495] sm:$0xe]
  %v4546 = vld [vmem:[%s495 + $0x4] sm:$0x1]
  %v4547 = vld [vmem:[%s495 + $0x8] sm:$0xe]
  %v4548 = vld [vmem:[%s495 + $0xc] sm:$0x1]
  %v4549 = vld [vmem:[%s495 + $0x10] sm:$0xe]
  %v4550 = vld [vmem:[%s495 + $0x14] sm:$0x1]
  %v4551 = vld [vmem:[%s495 + $0x18] sm:$0xe]
  %v4552 = vld [vmem:[%s495 + $0x1c] sm:$0x1]
  %v4553 = vld [vmem:[%s495 + $0x20] sm:$0xe]
  %v4554 = vld [vmem:[%s495 + $0x24] sm:$0x1]
  %v4555 = vld [vmem:[%s495 + $0x28] sm:$0xe]
  %v4556 = vld [vmem:[%s495 + $0x2c] sm:$0x1]
  %v4557 = vld [vmem:[%s495 + $0x30] sm:$0xe]
  %v4558 = vld [vmem:[%s495 + $0x34] sm:$0x1]
  %v4559 = vld [vmem:[%s495 + $0x38] sm:$0xe]
  %v4560 = vld [vmem:[%s495 + $0x3c] sm:$0x1]
  %v4561 = vld [vmem:[%s495 + $0x50] sm:$0xe]
  %v4562 = vld [vmem:[%s495 + $0x54] sm:$0x1]
  %v4563 = vld [vmem:[%s495 + $0x58] sm:$0xe]
  %v4564 = vld [vmem:[%s495 + $0x5c] sm:$0x1]
  %v4565 = vld [vmem:[%s495 + $0x60] sm:$0xe]
  %v4566 = vld [vmem:[%s495 + $0x64] sm:$0x1]
  %v4567 = vld [vmem:[%s495 + $0x68] sm:$0xe]
  %v4568 = vld [vmem:[%s495 + $0x6c] sm:$0x1]
  %v4569 = vld [vmem:[%s495 + $0x70] sm:$0xe]
  %v4570 = vld [vmem:[%s495 + $0x74] sm:$0x1]
  %v4571 = vld [vmem:[%s495 + $0x78] sm:$0xe]
  %v4572 = vld [vmem:[%s495 + $0x7c] sm:$0x1]
  %v4573 = vld [vmem:[%s495 + $0x80] sm:$0xe]
  %v4574 = vld [vmem:[%s495 + $0x84] sm:$0x1]
  %v4575 = vld [vmem:[%s495 + $0x88] sm:$0xe]
  %v4576 = vld [vmem:[%s495 + $0x8c] sm:$0x1]
  %v4577 = vld [vmem:[%s495] sm:$0xf]
  %v4578 = vld [vmem:[%s495 + $0x8] sm:$0xf]
  %v4579 = vld [vmem:[%s495 + $0x10] sm:$0xf]
  %v4580 = vld [vmem:[%s495 + $0x18] sm:$0xf]
  %v4581 = vld [vmem:[%s495 + $0x20] sm:$0xf]
  %v4582 = vld [vmem:[%s495 + $0x28] sm:$0xf]
  %v4583 = vld [vmem:[%s495 + $0x30] sm:$0xf]
  %v4584 = vld [vmem:[%s495 + $0x38] sm:$0xf]
  %v4585 = vld [vmem:[%s495 + $0x50] sm:$0xf]
  %v4586 = vld [vmem:[%s495 + $0x58] sm:$0xf]
  %v4587 = vld [vmem:[%s495 + $0x60] sm:$0xf]
  %v4588 = vld [vmem:[%s495 + $0x68] sm:$0xf]
  %v4589 = vld [vmem:[%s495 + $0x70] sm:$0xf]
  %v4590 = vld [vmem:[%s495 + $0x78] sm:$0xf]
  %v4591 = vld [vmem:[%s495 + $0x80] sm:$0xf]
  %v4592 = vld [vmem:[%s495 + $0x88] sm:$0xf]
  %v4625 = vunpack.c.l.b16 %v4497
  %v4626 = vunpack.c.l.b16 %v4498
  %v4627 = vunpack.c.l.b16 %v4499
  %v4628 = vunpack.c.l.b16 %v4500
  %v4629 = vunpack.c.l.b16 %v4501
  %v4630 = vunpack.c.l.b16 %v4502
  %v4631 = vunpack.c.l.b16 %v4503
  %v4632 = vunpack.c.l.b16 %v4504
  %v4633 = vunpack.c.l.b16 %v4505
  %v4634 = vunpack.c.l.b16 %v4506
  %v4635 = vunpack.c.l.b16 %v4507
  %v4636 = vunpack.c.l.b16 %v4508
  %v4637 = vunpack.c.l.b16 %v4509
  %v4638 = vunpack.c.l.b16 %v4510
  %v4639 = vunpack.c.l.b16 %v4511
  %v4640 = vunpack.c.l.b16 %v4512
  %v4641 = vunpack.c.l.b16 %v4513
  %v4642 = vunpack.c.l.b16 %v4514
  %v4643 = vunpack.c.l.b16 %v4515
  %v4644 = vunpack.c.l.b16 %v4516
  %v4645 = vunpack.c.l.b16 %v4517
  %v4646 = vunpack.c.l.b16 %v4518
  %v4647 = vunpack.c.l.b16 %v4519
  %v4648 = vunpack.c.l.b16 %v4520
  %v4649 = vunpack.c.l.b16 %v4521
  %v4650 = vunpack.c.l.b16 %v4522
  %v4651 = vunpack.c.l.b16 %v4523
  %v4652 = vunpack.c.l.b16 %v4524
  %v4653 = vunpack.c.l.b16 %v4525
  %v4654 = vunpack.c.l.b16 %v4526
  %v4655 = vunpack.c.l.b16 %v4527
  %v4656 = vunpack.c.l.b16 %v4528
  %v4657 = vpack.c.b16 %v4626, %v4625
  %v4658 = vpack.c.b16 %v4628, %v4627
  %v4659 = vpack.c.b16 %v4630, %v4629
  %v4660 = vpack.c.b16 %v4632, %v4631
  %v4661 = vpack.c.b16 %v4634, %v4633
  %v4662 = vpack.c.b16 %v4636, %v4635
  %v4663 = vpack.c.b16 %v4638, %v4637
  %v4664 = vpack.c.b16 %v4640, %v4639
  %v4665 = vpack.c.b16 %v4642, %v4641
  %v4666 = vpack.c.b16 %v4644, %v4643
  %v4667 = vpack.c.b16 %v4646, %v4645
  %v4668 = vpack.c.b16 %v4648, %v4647
  %v4669 = vpack.c.b16 %v4650, %v4649
  %v4670 = vpack.c.b16 %v4652, %v4651
  %v4671 = vpack.c.b16 %v4654, %v4653
  %v4672 = vpack.c.b16 %v4656, %v4655
  %v4689 = vunpack.c.l.b16 %v4529
  %v4690 = vunpack.c.l.b16 %v4530
  %v4691 = vunpack.c.l.b16 %v4531
  %v4692 = vunpack.c.l.b16 %v4532
  %v4693 = vunpack.c.l.b16 %v4533
  %v4694 = vunpack.c.l.b16 %v4534
  %v4695 = vunpack.c.l.b16 %v4535
  %v4696 = vunpack.c.l.b16 %v4536
  %v4697 = vunpack.c.l.b16 %v4537
  %v4698 = vunpack.c.l.b16 %v4538
  %v4699 = vunpack.c.l.b16 %v4539
  %v4700 = vunpack.c.l.b16 %v4540
  %v4701 = vunpack.c.l.b16 %v4541
  %v4702 = vunpack.c.l.b16 %v4542
  %v4703 = vunpack.c.l.b16 %v4543
  %v4704 = vunpack.c.l.b16 %v4544
  %v4705 = vpack.c.b16 %v4626, %v4689
  %v4706 = vpack.c.b16 %v4628, %v4690
  %v4707 = vpack.c.b16 %v4630, %v4691
  %v4708 = vpack.c.b16 %v4632, %v4692
  %v4709 = vpack.c.b16 %v4634, %v4693
  %v4710 = vpack.c.b16 %v4636, %v4694
  %v4711 = vpack.c.b16 %v4638, %v4695
  %v4712 = vpack.c.b16 %v4640, %v4696
  %v4713 = vpack.c.b16 %v4642, %v4697
  %v4714 = vpack.c.b16 %v4644, %v4698
  %v4715 = vpack.c.b16 %v4646, %v4699
  %v4716 = vpack.c.b16 %v4648, %v4700
  %v4717 = vpack.c.b16 %v4650, %v4701
  %v4718 = vpack.c.b16 %v4652, %v4702
  %v4719 = vpack.c.b16 %v4654, %v4703
  %v4720 = vpack.c.b16 %v4656, %v4704
  %v4722 = vshrl.u32 %v4705, 16
  %v4724 = vrot.slane %v4722, 7
  %v4725 = vshll.u32 %v4705, 16
  %v4727 = vor.u32 %v4724, %v4725
  %v4729 = vshrl.u32 %v4706, 16
  %v4731 = vrot.slane %v4729, 7
  %v4732 = vshll.u32 %v4706, 16
  %v4734 = vor.u32 %v4731, %v4732
  %v4736 = vshrl.u32 %v4707, 16
  %v4738 = vrot.slane %v4736, 7
  %v4739 = vshll.u32 %v4707, 16
  %v4741 = vor.u32 %v4738, %v4739
  %v4743 = vshrl.u32 %v4708, 16
  %v4745 = vrot.slane %v4743, 7
  %v4746 = vshll.u32 %v4708, 16
  %v4748 = vor.u32 %v4745, %v4746
  %v4750 = vshrl.u32 %v4709, 16
  %v4752 = vrot.slane %v4750, 7
  %v4753 = vshll.u32 %v4709, 16
  %v4755 = vor.u32 %v4752, %v4753
  %v4757 = vshrl.u32 %v4710, 16
  %v4759 = vrot.slane %v4757, 7
  %v4760 = vshll.u32 %v4710, 16
  %v4762 = vor.u32 %v4759, %v4760
  %v4764 = vshrl.u32 %v4711, 16
  %v4766 = vrot.slane %v4764, 7
  %v4767 = vshll.u32 %v4711, 16
  %v4769 = vor.u32 %v4766, %v4767
  %v4771 = vshrl.u32 %v4712, 16
  %v4773 = vrot.slane %v4771, 7
  %v4774 = vshll.u32 %v4712, 16
  %v4776 = vor.u32 %v4773, %v4774
  %v4778 = vshrl.u32 %v4713, 16
  %v4780 = vrot.slane %v4778, 7
  %v4781 = vshll.u32 %v4713, 16
  %v4783 = vor.u32 %v4780, %v4781
  %v4785 = vshrl.u32 %v4714, 16
  %v4787 = vrot.slane %v4785, 7
  %v4788 = vshll.u32 %v4714, 16
  %v4790 = vor.u32 %v4787, %v4788
  %v4792 = vshrl.u32 %v4715, 16
  %v4794 = vrot.slane %v4792, 7
  %v4795 = vshll.u32 %v4715, 16
  %v4797 = vor.u32 %v4794, %v4795
  %v4799 = vshrl.u32 %v4716, 16
  %v4801 = vrot.slane %v4799, 7
  %v4802 = vshll.u32 %v4716, 16
  %v4804 = vor.u32 %v4801, %v4802
  %v4806 = vshrl.u32 %v4717, 16
  %v4808 = vrot.slane %v4806, 7
  %v4809 = vshll.u32 %v4717, 16
  %v4811 = vor.u32 %v4808, %v4809
  %v4813 = vshrl.u32 %v4718, 16
  %v4815 = vrot.slane %v4813, 7
  %v4816 = vshll.u32 %v4718, 16
  %v4818 = vor.u32 %v4815, %v4816
  %v4820 = vshrl.u32 %v4719, 16
  %v4822 = vrot.slane %v4820, 7
  %v4823 = vshll.u32 %v4719, 16
  %v4825 = vor.u32 %v4822, %v4823
  %v4827 = vshrl.u32 %v4720, 16
  %v4829 = vrot.slane %v4827, 7
  %v4830 = vshll.u32 %v4720, 16
  %v4832 = vor.u32 %v4829, %v4830
  %4833 = vrot.lane.b32.xlu0 %v4727, 8
  %v4834 = vpop.permute.xlu0 %4833
  %4835 = vrot.lane.b32.xlu0 %v4734, 8
  %v4836 = vpop.permute.xlu0 %4835
  %4837 = vrot.lane.b32.xlu0 %v4741, 8
  %v4838 = vpop.permute.xlu0 %4837
  %4839 = vrot.lane.b32.xlu0 %v4748, 8
  %v4840 = vpop.permute.xlu0 %4839
  %4841 = vrot.lane.b32.xlu0 %v4755, 8
  %v4842 = vpop.permute.xlu0 %4841
  %4843 = vrot.lane.b32.xlu0 %v4762, 8
  %v4844 = vpop.permute.xlu0 %4843
  %4845 = vrot.lane.b32.xlu0 %v4769, 8
  %v4846 = vpop.permute.xlu0 %4845
  %4847 = vrot.lane.b32.xlu0 %v4776, 8
  %v4848 = vpop.permute.xlu0 %4847
  %4849 = vrot.lane.b32.xlu0 %v4783, 8
  %v4850 = vpop.permute.xlu0 %4849
  %4851 = vrot.lane.b32.xlu0 %v4790, 8
  %v4852 = vpop.permute.xlu0 %4851
  %4853 = vrot.lane.b32.xlu0 %v4797, 8
  %v4854 = vpop.permute.xlu0 %4853
  %4855 = vrot.lane.b32.xlu0 %v4804, 8
  %v4856 = vpop.permute.xlu0 %4855
  %4857 = vrot.lane.b32.xlu0 %v4811, 8
  %v4858 = vpop.permute.xlu0 %4857
  %4859 = vrot.lane.b32.xlu0 %v4818, 8
  %v4860 = vpop.permute.xlu0 %4859
  %4861 = vrot.lane.b32.xlu0 %v4825, 8
  %v4862 = vpop.permute.xlu0 %4861
  %4863 = vrot.lane.b32.xlu0 %v4832, 8
  %v4864 = vpop.permute.xlu0 %4863
  %v4897 = vunpack.c.l.b16 %v4545
  %v4898 = vunpack.c.l.b16 %v4546
  %v4899 = vunpack.c.l.b16 %v4547
  %v4900 = vunpack.c.l.b16 %v4548
  %v4901 = vunpack.c.l.b16 %v4549
  %v4902 = vunpack.c.l.b16 %v4550
  %v4903 = vunpack.c.l.b16 %v4551
  %v4904 = vunpack.c.l.b16 %v4552
  %v4905 = vunpack.c.l.b16 %v4553
  %v4906 = vunpack.c.l.b16 %v4554
  %v4907 = vunpack.c.l.b16 %v4555
  %v4908 = vunpack.c.l.b16 %v4556
  %v4909 = vunpack.c.l.b16 %v4557
  %v4910 = vunpack.c.l.b16 %v4558
  %v4911 = vunpack.c.l.b16 %v4559
  %v4912 = vunpack.c.l.b16 %v4560
  %v4913 = vunpack.c.l.b16 %v4561
  %v4914 = vunpack.c.l.b16 %v4562
  %v4915 = vunpack.c.l.b16 %v4563
  %v4916 = vunpack.c.l.b16 %v4564
  %v4917 = vunpack.c.l.b16 %v4565
  %v4918 = vunpack.c.l.b16 %v4566
  %v4919 = vunpack.c.l.b16 %v4567
  %v4920 = vunpack.c.l.b16 %v4568
  %v4921 = vunpack.c.l.b16 %v4569
  %v4922 = vunpack.c.l.b16 %v4570
  %v4923 = vunpack.c.l.b16 %v4571
  %v4924 = vunpack.c.l.b16 %v4572
  %v4925 = vunpack.c.l.b16 %v4573
  %v4926 = vunpack.c.l.b16 %v4574
  %v4927 = vunpack.c.l.b16 %v4575
  %v4928 = vunpack.c.l.b16 %v4576
  %v4929 = vpack.c.b16 %v4898, %v4897
  %v4930 = vpack.c.b16 %v4900, %v4899
  %v4931 = vpack.c.b16 %v4902, %v4901
  %v4932 = vpack.c.b16 %v4904, %v4903
  %v4933 = vpack.c.b16 %v4906, %v4905
  %v4934 = vpack.c.b16 %v4908, %v4907
  %v4935 = vpack.c.b16 %v4910, %v4909
  %v4936 = vpack.c.b16 %v4912, %v4911
  %v4937 = vpack.c.b16 %v4914, %v4913
  %v4938 = vpack.c.b16 %v4916, %v4915
  %v4939 = vpack.c.b16 %v4918, %v4917
  %v4940 = vpack.c.b16 %v4920, %v4919
  %v4941 = vpack.c.b16 %v4922, %v4921
  %v4942 = vpack.c.b16 %v4924, %v4923
  %v4943 = vpack.c.b16 %v4926, %v4925
  %v4944 = vpack.c.b16 %v4928, %v4927
  %4945 = vrot.lane.b32.xlu0 %v4929, 16
  %v4946 = vpop.permute.xlu0 %4945
  %4947 = vrot.lane.b32.xlu0 %v4930, 16
  %v4948 = vpop.permute.xlu0 %4947
  %4949 = vrot.lane.b32.xlu0 %v4931, 16
  %v4950 = vpop.permute.xlu0 %4949
  %4951 = vrot.lane.b32.xlu0 %v4932, 16
  %v4952 = vpop.permute.xlu0 %4951
  %4953 = vrot.lane.b32.xlu0 %v4933, 16
  %v4954 = vpop.permute.xlu0 %4953
  %4955 = vrot.lane.b32.xlu0 %v4934, 16
  %v4956 = vpop.permute.xlu0 %4955
  %4957 = vrot.lane.b32.xlu0 %v4935, 16
  %v4958 = vpop.permute.xlu0 %4957
  %4959 = vrot.lane.b32.xlu0 %v4936, 16
  %v4960 = vpop.permute.xlu0 %4959
  %4961 = vrot.lane.b32.xlu0 %v4937, 16
  %v4962 = vpop.permute.xlu0 %4961
  %4963 = vrot.lane.b32.xlu0 %v4938, 16
  %v4964 = vpop.permute.xlu0 %4963
  %4965 = vrot.lane.b32.xlu0 %v4939, 16
  %v4966 = vpop.permute.xlu0 %4965
  %4967 = vrot.lane.b32.xlu0 %v4940, 16
  %v4968 = vpop.permute.xlu0 %4967
  %4969 = vrot.lane.b32.xlu0 %v4941, 16
  %v4970 = vpop.permute.xlu0 %4969
  %4971 = vrot.lane.b32.xlu0 %v4942, 16
  %v4972 = vpop.permute.xlu0 %4971
  %4973 = vrot.lane.b32.xlu0 %v4943, 16
  %v4974 = vpop.permute.xlu0 %4973
  %4975 = vrot.lane.b32.xlu0 %v4944, 16
  %v4976 = vpop.permute.xlu0 %4975
  %v4993 = vunpack.c.l.b16 %v4577
  %v4994 = vunpack.c.l.b16 %v4578
  %v4995 = vunpack.c.l.b16 %v4579
  %v4996 = vunpack.c.l.b16 %v4580
  %v4997 = vunpack.c.l.b16 %v4581
  %v4998 = vunpack.c.l.b16 %v4582
  %v4999 = vunpack.c.l.b16 %v4583
  %v5000 = vunpack.c.l.b16 %v4584
  %v5001 = vunpack.c.l.b16 %v4585
  %v5002 = vunpack.c.l.b16 %v4586
  %v5003 = vunpack.c.l.b16 %v4587
  %v5004 = vunpack.c.l.b16 %v4588
  %v5005 = vunpack.c.l.b16 %v4589
  %v5006 = vunpack.c.l.b16 %v4590
  %v5007 = vunpack.c.l.b16 %v4591
  %v5008 = vunpack.c.l.b16 %v4592
  %v5009 = vpack.c.b16 %v4898, %v4993
  %v5010 = vpack.c.b16 %v4900, %v4994
  %v5011 = vpack.c.b16 %v4902, %v4995
  %v5012 = vpack.c.b16 %v4904, %v4996
  %v5013 = vpack.c.b16 %v4906, %v4997
  %v5014 = vpack.c.b16 %v4908, %v4998
  %v5015 = vpack.c.b16 %v4910, %v4999
  %v5016 = vpack.c.b16 %v4912, %v5000
  %v5017 = vpack.c.b16 %v4914, %v5001
  %v5018 = vpack.c.b16 %v4916, %v5002
  %v5019 = vpack.c.b16 %v4918, %v5003
  %v5020 = vpack.c.b16 %v4920, %v5004
  %v5021 = vpack.c.b16 %v4922, %v5005
  %v5022 = vpack.c.b16 %v4924, %v5006
  %v5023 = vpack.c.b16 %v4926, %v5007
  %v5024 = vpack.c.b16 %v4928, %v5008
  %v5026 = vshrl.u32 %v5009, 16
  %v5028 = vrot.slane %v5026, 7
  %v5029 = vshll.u32 %v5009, 16
  %v5031 = vor.u32 %v5028, %v5029
  %v5033 = vshrl.u32 %v5010, 16
  %v5035 = vrot.slane %v5033, 7
  %v5036 = vshll.u32 %v5010, 16
  %v5038 = vor.u32 %v5035, %v5036
  %v5040 = vshrl.u32 %v5011, 16
  %v5042 = vrot.slane %v5040, 7
  %v5043 = vshll.u32 %v5011, 16
  %v5045 = vor.u32 %v5042, %v5043
  %v5047 = vshrl.u32 %v5012, 16
  %v5049 = vrot.slane %v5047, 7
  %v5050 = vshll.u32 %v5012, 16
  %v5052 = vor.u32 %v5049, %v5050
  %v5054 = vshrl.u32 %v5013, 16
  %v5056 = vrot.slane %v5054, 7
  %v5057 = vshll.u32 %v5013, 16
  %v5059 = vor.u32 %v5056, %v5057
  %v5061 = vshrl.u32 %v5014, 16
  %v5063 = vrot.slane %v5061, 7
  %v5064 = vshll.u32 %v5014, 16
  %v5066 = vor.u32 %v5063, %v5064
  %v5068 = vshrl.u32 %v5015, 16
  %v5070 = vrot.slane %v5068, 7
  %v5071 = vshll.u32 %v5015, 16
  %v5073 = vor.u32 %v5070, %v5071
  %v5075 = vshrl.u32 %v5016, 16
  %v5077 = vrot.slane %v5075, 7
  %v5078 = vshll.u32 %v5016, 16
  %v5080 = vor.u32 %v5077, %v5078
  %v5082 = vshrl.u32 %v5017, 16
  %v5084 = vrot.slane %v5082, 7
  %v5085 = vshll.u32 %v5017, 16
  %v5087 = vor.u32 %v5084, %v5085
  %v5089 = vshrl.u32 %v5018, 16
  %v5091 = vrot.slane %v5089, 7
  %v5092 = vshll.u32 %v5018, 16
  %v5094 = vor.u32 %v5091, %v5092
  %v5096 = vshrl.u32 %v5019, 16
  %v5098 = vrot.slane %v5096, 7
  %v5099 = vshll.u32 %v5019, 16
  %v5101 = vor.u32 %v5098, %v5099
  %v5103 = vshrl.u32 %v5020, 16
  %v5105 = vrot.slane %v5103, 7
  %v5106 = vshll.u32 %v5020, 16
  %v5108 = vor.u32 %v5105, %v5106
  %v5110 = vshrl.u32 %v5021, 16
  %v5112 = vrot.slane %v5110, 7
  %v5113 = vshll.u32 %v5021, 16
  %v5115 = vor.u32 %v5112, %v5113
  %v5117 = vshrl.u32 %v5022, 16
  %v5119 = vrot.slane %v5117, 7
  %v5120 = vshll.u32 %v5022, 16
  %v5122 = vor.u32 %v5119, %v5120
  %v5124 = vshrl.u32 %v5023, 16
  %v5126 = vrot.slane %v5124, 7
  %v5127 = vshll.u32 %v5023, 16
  %v5129 = vor.u32 %v5126, %v5127
  %v5131 = vshrl.u32 %v5024, 16
  %v5133 = vrot.slane %v5131, 7
  %v5134 = vshll.u32 %v5024, 16
  %v5136 = vor.u32 %v5133, %v5134
  %5137 = vrot.lane.b32.xlu0 %v5031, 24
  %v5138 = vpop.permute.xlu0 %5137
  %5139 = vrot.lane.b32.xlu0 %v5038, 24
  %v5140 = vpop.permute.xlu0 %5139
  %5141 = vrot.lane.b32.xlu0 %v5045, 24
  %v5142 = vpop.permute.xlu0 %5141
  %5143 = vrot.lane.b32.xlu0 %v5052, 24
  %v5144 = vpop.permute.xlu0 %5143
  %5145 = vrot.lane.b32.xlu0 %v5059, 24
  %v5146 = vpop.permute.xlu0 %5145
  %5147 = vrot.lane.b32.xlu0 %v5066, 24
  %v5148 = vpop.permute.xlu0 %5147
  %5149 = vrot.lane.b32.xlu0 %v5073, 24
  %v5150 = vpop.permute.xlu0 %5149
  %5151 = vrot.lane.b32.xlu0 %v5080, 24
  %v5152 = vpop.permute.xlu0 %5151
  %5153 = vrot.lane.b32.xlu0 %v5087, 24
  %v5154 = vpop.permute.xlu0 %5153
  %5155 = vrot.lane.b32.xlu0 %v5094, 24
  %v5156 = vpop.permute.xlu0 %5155
  %5157 = vrot.lane.b32.xlu0 %v5101, 24
  %v5158 = vpop.permute.xlu0 %5157
  %5159 = vrot.lane.b32.xlu0 %v5108, 24
  %v5160 = vpop.permute.xlu0 %5159
  %5161 = vrot.lane.b32.xlu0 %v5115, 24
  %v5162 = vpop.permute.xlu0 %5161
  %5163 = vrot.lane.b32.xlu0 %v5122, 24
  %v5164 = vpop.permute.xlu0 %5163
  %5165 = vrot.lane.b32.xlu0 %v5129, 24
  %v5166 = vpop.permute.xlu0 %5165
  %5167 = vrot.lane.b32.xlu0 %v5136, 24
  %v5168 = vpop.permute.xlu0 %5167
  %v5171 = vsel %vm1174, %v4657, %v4834
  %v5174 = vsel %vm1174, %v4658, %v4836
  %v5177 = vsel %vm1174, %v4659, %v4838
  %v5180 = vsel %vm1174, %v4660, %v4840
  %v5183 = vsel %vm1174, %v4661, %v4842
  %v5186 = vsel %vm1174, %v4662, %v4844
  %v5189 = vsel %vm1174, %v4663, %v4846
  %v5192 = vsel %vm1174, %v4664, %v4848
  %v5195 = vsel %vm1174, %v4665, %v4850
  %v5198 = vsel %vm1174, %v4666, %v4852
  %v5201 = vsel %vm1174, %v4667, %v4854
  %v5204 = vsel %vm1174, %v4668, %v4856
  %v5207 = vsel %vm1174, %v4669, %v4858
  %v5210 = vsel %vm1174, %v4670, %v4860
  %v5213 = vsel %vm1174, %v4671, %v4862
  %v5216 = vsel %vm1174, %v4672, %v4864
  %v5218 = vsel %vm1223, %v5171, %v4946
  %v5220 = vsel %vm1223, %v5174, %v4948
  %v5222 = vsel %vm1223, %v5177, %v4950
  %v5224 = vsel %vm1223, %v5180, %v4952
  %v5226 = vsel %vm1223, %v5183, %v4954
  %v5228 = vsel %vm1223, %v5186, %v4956
  %v5230 = vsel %vm1223, %v5189, %v4958
  %v5232 = vsel %vm1223, %v5192, %v4960
  %v5234 = vsel %vm1223, %v5195, %v4962
  %v5236 = vsel %vm1223, %v5198, %v4964
  %v5238 = vsel %vm1223, %v5201, %v4966
  %v5240 = vsel %vm1223, %v5204, %v4968
  %v5242 = vsel %vm1223, %v5207, %v4970
  %v5244 = vsel %vm1223, %v5210, %v4972
  %v5246 = vsel %vm1223, %v5213, %v4974
  %v5248 = vsel %vm1223, %v5216, %v4976
  %v5250 = vsel %vm1256, %v5218, %v5138
  %v5252 = vsel %vm1256, %v5220, %v5140
  %v5254 = vsel %vm1256, %v5222, %v5142
  %v5256 = vsel %vm1256, %v5224, %v5144
  %v5258 = vsel %vm1256, %v5226, %v5146
  %v5260 = vsel %vm1256, %v5228, %v5148
  %v5262 = vsel %vm1256, %v5230, %v5150
  %v5264 = vsel %vm1256, %v5232, %v5152
  %v5266 = vsel %vm1256, %v5234, %v5154
  %v5268 = vsel %vm1256, %v5236, %v5156
  %v5270 = vsel %vm1256, %v5238, %v5158
  %v5272 = vsel %vm1256, %v5240, %v5160
  %v5274 = vsel %vm1256, %v5242, %v5162
  %v5276 = vsel %vm1256, %v5244, %v5164
  %v5278 = vsel %vm1256, %v5246, %v5166
  %v5280 = vsel %vm1256, %v5248, %v5168
  %v5297 = vunpack.c.l.b16 %v5250
  %v5298 = vunpack.c.h.b16 %v5250
  %v5299 = vunpack.c.l.b16 %v5252
  %v5300 = vunpack.c.h.b16 %v5252
  %v5301 = vunpack.c.l.b16 %v5254
  %v5302 = vunpack.c.h.b16 %v5254
  %v5303 = vunpack.c.l.b16 %v5256
  %v5304 = vunpack.c.h.b16 %v5256
  %v5305 = vunpack.c.l.b16 %v5258
  %v5306 = vunpack.c.h.b16 %v5258
  %v5307 = vunpack.c.l.b16 %v5260
  %v5308 = vunpack.c.h.b16 %v5260
  %v5309 = vunpack.c.l.b16 %v5262
  %v5310 = vunpack.c.h.b16 %v5262
  %v5311 = vunpack.c.l.b16 %v5264
  %v5312 = vunpack.c.h.b16 %v5264
  %v5313 = vunpack.c.l.b16 %v5266
  %v5314 = vunpack.c.h.b16 %v5266
  %v5315 = vunpack.c.l.b16 %v5268
  %v5316 = vunpack.c.h.b16 %v5268
  %v5317 = vunpack.c.l.b16 %v5270
  %v5318 = vunpack.c.h.b16 %v5270
  %v5319 = vunpack.c.l.b16 %v5272
  %v5320 = vunpack.c.h.b16 %v5272
  %v5321 = vunpack.c.l.b16 %v5274
  %v5322 = vunpack.c.h.b16 %v5274
  %v5323 = vunpack.c.l.b16 %v5276
  %v5324 = vunpack.c.h.b16 %v5276
  %v5325 = vunpack.c.l.b16 %v5278
  %v5326 = vunpack.c.h.b16 %v5278
  %v5327 = vunpack.c.l.b16 %v5280
  %v5328 = vunpack.c.h.b16 %v5280
  %v5329 = vpack.c.b16 %v5297, %v5297
  %v5330 = vpack.c.b16 %v5298, %v5298
  %v5331 = vpack.c.b16 %v5299, %v5299
  %v5332 = vpack.c.b16 %v5300, %v5300
  %v5333 = vpack.c.b16 %v5301, %v5301
  %v5334 = vpack.c.b16 %v5302, %v5302
  %v5335 = vpack.c.b16 %v5303, %v5303
  %v5336 = vpack.c.b16 %v5304, %v5304
  %v5337 = vpack.c.b16 %v5305, %v5305
  %v5338 = vpack.c.b16 %v5306, %v5306
  %v5339 = vpack.c.b16 %v5307, %v5307
  %v5340 = vpack.c.b16 %v5308, %v5308
  %v5341 = vpack.c.b16 %v5309, %v5309
  %v5342 = vpack.c.b16 %v5310, %v5310
  %v5343 = vpack.c.b16 %v5311, %v5311
  %v5344 = vpack.c.b16 %v5312, %v5312
  %v5345 = vpack.c.b16 %v5313, %v5313
  %v5346 = vpack.c.b16 %v5314, %v5314
  %v5347 = vpack.c.b16 %v5315, %v5315
  %v5348 = vpack.c.b16 %v5316, %v5316
  %v5349 = vpack.c.b16 %v5317, %v5317
  %v5350 = vpack.c.b16 %v5318, %v5318
  %v5351 = vpack.c.b16 %v5319, %v5319
  %v5352 = vpack.c.b16 %v5320, %v5320
  %v5353 = vpack.c.b16 %v5321, %v5321
  %v5354 = vpack.c.b16 %v5322, %v5322
  %v5355 = vpack.c.b16 %v5323, %v5323
  %v5356 = vpack.c.b16 %v5324, %v5324
  %v5357 = vpack.c.b16 %v5325, %v5325
  %v5358 = vpack.c.b16 %v5326, %v5326
  %v5359 = vpack.c.b16 %v5327, %v5327
  %v5360 = vpack.c.b16 %v5328, %v5328
  %v5361 = vrot.slane %v5329, 5
  %v5362 = vrot.slane %v5361, 4
  %v5363 = vrot.slane %v5330, 5
  %v5364 = vsel %vm2745, %v5362, %v5363
  %v5365 = vrot.slane %v5331, 5
  %v5366 = vrot.slane %v5365, 4
  %v5367 = vrot.slane %v5332, 5
  %v5368 = vsel %vm2745, %v5366, %v5367
  %v5369 = vrot.slane %v5333, 5
  %v5370 = vrot.slane %v5369, 4
  %v5371 = vrot.slane %v5334, 5
  %v5372 = vsel %vm2745, %v5370, %v5371
  %v5373 = vrot.slane %v5335, 5
  %v5374 = vrot.slane %v5373, 4
  %v5375 = vrot.slane %v5336, 5
  %v5376 = vsel %vm2745, %v5374, %v5375
  %v5377 = vrot.slane %v5337, 5
  %v5378 = vrot.slane %v5377, 4
  %v5379 = vrot.slane %v5338, 5
  %v5380 = vsel %vm2745, %v5378, %v5379
  %v5381 = vrot.slane %v5339, 5
  %v5382 = vrot.slane %v5381, 4
  %v5383 = vrot.slane %v5340, 5
  %v5384 = vsel %vm2745, %v5382, %v5383
  %v5385 = vrot.slane %v5341, 5
  %v5386 = vrot.slane %v5385, 4
  %v5387 = vrot.slane %v5342, 5
  %v5388 = vsel %vm2745, %v5386, %v5387
  %v5389 = vrot.slane %v5343, 5
  %v5390 = vrot.slane %v5389, 4
  %v5391 = vrot.slane %v5344, 5
  %v5392 = vsel %vm2745, %v5390, %v5391
  %v5393 = vrot.slane %v5345, 5
  %v5394 = vrot.slane %v5393, 4
  %v5395 = vrot.slane %v5346, 5
  %v5396 = vsel %vm2745, %v5394, %v5395
  %v5397 = vrot.slane %v5347, 5
  %v5398 = vrot.slane %v5397, 4
  %v5399 = vrot.slane %v5348, 5
  %v5400 = vsel %vm2745, %v5398, %v5399
  %v5401 = vrot.slane %v5349, 5
  %v5402 = vrot.slane %v5401, 4
  %v5403 = vrot.slane %v5350, 5
  %v5404 = vsel %vm2745, %v5402, %v5403
  %v5405 = vrot.slane %v5351, 5
  %v5406 = vrot.slane %v5405, 4
  %v5407 = vrot.slane %v5352, 5
  %v5408 = vsel %vm2745, %v5406, %v5407
  %v5409 = vrot.slane %v5353, 5
  %v5410 = vrot.slane %v5409, 4
  %v5411 = vrot.slane %v5354, 5
  %v5412 = vsel %vm2745, %v5410, %v5411
  %v5413 = vrot.slane %v5355, 5
  %v5414 = vrot.slane %v5413, 4
  %v5415 = vrot.slane %v5356, 5
  %v5416 = vsel %vm2745, %v5414, %v5415
  %v5417 = vrot.slane %v5357, 5
  %v5418 = vrot.slane %v5417, 4
  %v5419 = vrot.slane %v5358, 5
  %v5420 = vsel %vm2745, %v5418, %v5419
  %v5421 = vrot.slane %v5359, 5
  %v5422 = vrot.slane %v5421, 4
  %v5423 = vrot.slane %v5360, 5
  %v5424 = vsel %vm2745, %v5422, %v5423
  %s5425 = scalar_lea.vmem %s2, 48
  %v5426 = vld [vmem:[%s5425] sm:$0xf]
  %v5427 = vld [vmem:[%s5425 + $0x4] sm:$0xf]
  %v5428 = vld [vmem:[%s5425 + $0x8] sm:$0xf]
  %v5429 = vld [vmem:[%s5425 + $0xc] sm:$0xf]
  %v5430 = vunpack.c.l.b16 %v5364
  %v5431 = vunpack.c.l.b16 %v5368
  %v5432 = vunpack.c.l.b16 %v5372
  %v5433 = vunpack.c.l.b16 %v5376
  %v5434 = vunpack.c.l.b16 %v5380
  %v5435 = vunpack.c.l.b16 %v5384
  %v5436 = vunpack.c.l.b16 %v5388
  %v5437 = vunpack.c.l.b16 %v5392
  %v5438 = vunpack.c.l.b16 %v5396
  %v5439 = vunpack.c.l.b16 %v5400
  %v5440 = vunpack.c.l.b16 %v5404
  %v5441 = vunpack.c.l.b16 %v5408
  %v5442 = vunpack.c.l.b16 %v5412
  %v5443 = vunpack.c.l.b16 %v5416
  %v5444 = vunpack.c.l.b16 %v5420
  %v5445 = vunpack.c.l.b16 %v5424
  %v5446 = vpack.c.b16 %v5431, %v5430
  %v5447 = vpack.c.b16 %v5433, %v5432
  %v5448 = vpack.c.b16 %v5435, %v5434
  %v5449 = vpack.c.b16 %v5437, %v5436
  %v5450 = vpack.c.b16 %v5439, %v5438
  %v5451 = vpack.c.b16 %v5441, %v5440
  %v5452 = vpack.c.b16 %v5443, %v5442
  %v5453 = vpack.c.b16 %v5445, %v5444
  %v5458 = vunpack.c.l.b16 %v5426
  %v5459 = vunpack.c.l.b16 %v5427
  %v5460 = vunpack.c.l.b16 %v5428
  %v5461 = vunpack.c.l.b16 %v5429
  %v5462 = vpack.c.b16 %v5459, %v5458
  %v5463 = vpack.c.b16 %v5461, %v5460
  %v5467 = vsel %vm1636, %v5446, 0
  %v5470 = vsel %vm1636, %v5447, 0
  %v5473 = vsel %vm1636, %v5448, 0
  %v5476 = vsel %vm1636, %v5449, 0
  %v5479 = vsel %vm1636, %v5450, 0
  %v5482 = vsel %vm1636, %v5451, 0
  %v5485 = vsel %vm1636, %v5452, 0
  %v5488 = vsel %vm1636, %v5453, 0
  %5490 = vmatprep.subr.bf16.mxu0 0
  %5491 = vmatpush1.bf16.msra.mxu0 %v5462
  %5492 = vmatprep.subr.bf16.mxu0 0
  %5493 = vmatpush1.bf16.msra.mxu0 %v5463
  %5494 = vmatprep.subr.bf16.mxu0 0
  %5495 = vmatpush1.bf16.msra.mxu0 0
  %5496 = vmatprep.subr.bf16.mxu0 0
  %5497 = vmatpush1.bf16.msra.mxu0 0
  %5498 = vmatprep.subr.bf16.mxu0 0
  %5499 = vmatpush1.bf16.msra.mxu0 0
  %5500 = vmatprep.subr.bf16.mxu0 0
  %5501 = vmatpush1.bf16.msra.mxu0 0
  %5502 = vmatprep.subr.bf16.mxu0 0
  %5503 = vmatpush1.bf16.msra.mxu0 0
  %5504 = vmatprep.subr.bf16.mxu0 0
  %5505 = vmatpush1.bf16.msra.mxu0 0
  %5506 = vmatprep.subr.bf16.mxu0 0
  %5507 = vmatpush1.bf16.msra.mxu0 0
  %5508 = vmatprep.subr.bf16.mxu0 0
  %5509 = vmatpush1.bf16.msra.mxu0 0
  %5510 = vmatprep.subr.bf16.mxu0 0
  %5511 = vmatpush1.bf16.msra.mxu0 0
  %5512 = vmatprep.subr.bf16.mxu0 0
  %5513 = vmatpush1.bf16.msra.mxu0 0
  %5514 = vmatprep.subr.bf16.mxu0 0
  %5515 = vmatpush1.bf16.msra.mxu0 0
  %5516 = vmatprep.subr.bf16.mxu0 0
  %5517 = vmatpush1.bf16.msra.mxu0 0
  %5518 = vmatprep.subr.bf16.mxu0 0
  %5519 = vmatpush1.bf16.msra.mxu0 0
  %5520 = vmatprep.subr.bf16.mxu0 0
  %5521 = vmatpush1.bf16.msra.mxu0 0
  %5522 = vmatprep.mubr.bf16.mxu0 0
  %5523 = vmatmul.mubr.bf16.gmra.mrb[0].mxu0 %v5467
  %v5524 = vpop.f32.mrb[0].mxu0
  %v5525 = vadd.f32 0.0, %v5524
  %v5526 = vpop.f32.mrb[0].mxu0
  %v5527 = vpop.f32.mrb[0].mxu0
  %v5528 = vadd.f32 0.0, %v5527
  %v5529 = vpop.f32.mrb[0].mxu0
  %5530 = vmatprep.mubr.bf16.mxu0 0
  %5531 = vmatmul.mubr.bf16.gmra.mrb[0].mxu0 %v5470
  %v5532 = vpop.f32.mrb[0].mxu0
  %v5533 = vadd.f32 0.0, %v5532
  %v5534 = vpop.f32.mrb[0].mxu0
  %v5535 = vpop.f32.mrb[0].mxu0
  %v5536 = vadd.f32 0.0, %v5535
  %v5537 = vpop.f32.mrb[0].mxu0
  %5538 = vmatprep.mubr.bf16.mxu0 0
  %5539 = vmatmul.mubr.bf16.gmra.mrb[0].mxu0 %v5473
  %v5540 = vpop.f32.mrb[0].mxu0
  %v5541 = vadd.f32 0.0, %v5540
  %v5542 = vpop.f32.mrb[0].mxu0
  %v5543 = vpop.f32.mrb[0].mxu0
  %v5544 = vadd.f32 0.0, %v5543
  %v5545 = vpop.f32.mrb[0].mxu0
  %5546 = vmatprep.mubr.bf16.mxu0 0
  %5547 = vmatmul.mubr.bf16.gmra.mrb[0].mxu0 %v5476
  %v5548 = vpop.f32.mrb[0].mxu0
  %v5549 = vadd.f32 0.0, %v5548
  %v5550 = vpop.f32.mrb[0].mxu0
  %v5551 = vpop.f32.mrb[0].mxu0
  %v5552 = vadd.f32 0.0, %v5551
  %v5553 = vpop.f32.mrb[0].mxu0
  %5554 = vmatprep.mubr.bf16.mxu0 0
  %5555 = vmatmul.mubr.bf16.gmra.mrb[0].mxu0 %v5479
  %v5556 = vpop.f32.mrb[0].mxu0
  %v5557 = vadd.f32 0.0, %v5556
  %v5558 = vpop.f32.mrb[0].mxu0
  %v5559 = vpop.f32.mrb[0].mxu0
  %v5560 = vadd.f32 0.0, %v5559
  %v5561 = vpop.f32.mrb[0].mxu0
  %5562 = vmatprep.mubr.bf16.mxu0 0
  %5563 = vmatmul.mubr.bf16.gmra.mrb[0].mxu0 %v5482
  %v5564 = vpop.f32.mrb[0].mxu0
  %v5565 = vadd.f32 0.0, %v5564
  %v5566 = vpop.f32.mrb[0].mxu0
  %v5567 = vpop.f32.mrb[0].mxu0
  %v5568 = vadd.f32 0.0, %v5567
  %v5569 = vpop.f32.mrb[0].mxu0
  %5570 = vmatprep.mubr.bf16.mxu0 0
  %5571 = vmatmul.mubr.bf16.gmra.mrb[0].mxu0 %v5485
  %v5572 = vpop.f32.mrb[0].mxu0
  %v5573 = vadd.f32 0.0, %v5572
  %v5574 = vpop.f32.mrb[0].mxu0
  %v5575 = vpop.f32.mrb[0].mxu0
  %v5576 = vadd.f32 0.0, %v5575
  %v5577 = vpop.f32.mrb[0].mxu0
  %5578 = vmatprep.mubr.bf16.mxu0 0
  %5579 = vmatmul.mubr.bf16.gmra.mrb[0].mxu0 %v5488
  %v5580 = vpop.f32.mrb[0].mxu0
  %v5581 = vadd.f32 0.0, %v5580
  %v5582 = vpop.f32.mrb[0].mxu0
  %v5583 = vpop.f32.mrb[0].mxu0
  %v5584 = vadd.f32 0.0, %v5583
  %v5585 = vpop.f32.mrb[0].mxu0
  %5586 = vdwg.mxu0
  %v5587 = vsel %vm1758, %v5525, 0.0
  %v5588 = vsel %vm1758, %v5528, 0.0
  %v5589 = vadd.f32 %v5587, %v5588
  %v5590 = vsel %vm1758, %v5533, 0.0
  %v5591 = vadd.f32 %v5589, %v5590
  %v5592 = vsel %vm1758, %v5536, 0.0
  %v5593 = vadd.f32 %v5591, %v5592
  %v5594 = vsel %vm1758, %v5541, 0.0
  %v5595 = vadd.f32 %v5593, %v5594
  %v5596 = vsel %vm1758, %v5544, 0.0
  %v5597 = vadd.f32 %v5595, %v5596
  %v5598 = vsel %vm1758, %v5549, 0.0
  %v5599 = vadd.f32 %v5597, %v5598
  %v5600 = vsel %vm1758, %v5552, 0.0
  %v5601 = vadd.f32 %v5599, %v5600
  %v5602 = vrot.slane %v5601, 4
  %v5603 = vadd.f32 %v5601, %v5602
  %v5604 = vrot.slane %v5603, 2
  %v5605 = vadd.f32 %v5603, %v5604
  %v5606 = vrot.slane %v5605, 1
  %v5607 = vadd.f32 %v5605, %v5606
  %v5608 = vsel %vm1758, %v5557, 0.0
  %v5609 = vsel %vm1758, %v5560, 0.0
  %v5610 = vadd.f32 %v5608, %v5609
  %v5611 = vsel %vm1758, %v5565, 0.0
  %v5612 = vadd.f32 %v5610, %v5611
  %v5613 = vsel %vm1758, %v5568, 0.0
  %v5614 = vadd.f32 %v5612, %v5613
  %v5615 = vsel %vm1758, %v5573, 0.0
  %v5616 = vadd.f32 %v5614, %v5615
  %v5617 = vsel %vm1758, %v5576, 0.0
  %v5618 = vadd.f32 %v5616, %v5617
  %v5619 = vsel %vm1758, %v5581, 0.0
  %v5620 = vadd.f32 %v5618, %v5619
  %v5621 = vsel %vm1758, %v5584, 0.0
  %v5622 = vadd.f32 %v5620, %v5621
  %v5623 = vrot.slane %v5622, 4
  %v5624 = vadd.f32 %v5622, %v5623
  %v5625 = vrot.slane %v5624, 2
  %v5626 = vadd.f32 %v5624, %v5625
  %v5627 = vrot.slane %v5626, 1
  %v5628 = vadd.f32 %v5626, %v5627
  %v5629 = vadd.f32 %v4354, %v5607
  %v5630 = vadd.f32 %v4355, %v5628
  %v5631 = vmul.f32 %v5525, %v5525
  %v5632 = vmul.f32 %v5528, %v5528
  %v5633 = vmul.f32 %v5533, %v5533
  %v5634 = vmul.f32 %v5536, %v5536
  %v5635 = vmul.f32 %v5541, %v5541
  %v5636 = vmul.f32 %v5544, %v5544
  %v5637 = vmul.f32 %v5549, %v5549
  %v5638 = vmul.f32 %v5552, %v5552
  %v5639 = vmul.f32 %v5557, %v5557
  %v5640 = vmul.f32 %v5560, %v5560
  %v5641 = vmul.f32 %v5565, %v5565
  %v5642 = vmul.f32 %v5568, %v5568
  %v5643 = vmul.f32 %v5573, %v5573
  %v5644 = vmul.f32 %v5576, %v5576
  %v5645 = vmul.f32 %v5581, %v5581
  %v5646 = vmul.f32 %v5584, %v5584
  %v5647 = vsel %vm1758, %v5631, 0.0
  %v5648 = vsel %vm1758, %v5632, 0.0
  %v5649 = vadd.f32 %v5647, %v5648
  %v5650 = vsel %vm1758, %v5633, 0.0
  %v5651 = vadd.f32 %v5649, %v5650
  %v5652 = vsel %vm1758, %v5634, 0.0
  %v5653 = vadd.f32 %v5651, %v5652
  %v5654 = vsel %vm1758, %v5635, 0.0
  %v5655 = vadd.f32 %v5653, %v5654
  %v5656 = vsel %vm1758, %v5636, 0.0
  %v5657 = vadd.f32 %v5655, %v5656
  %v5658 = vsel %vm1758, %v5637, 0.0
  %v5659 = vadd.f32 %v5657, %v5658
  %v5660 = vsel %vm1758, %v5638, 0.0
  %v5661 = vadd.f32 %v5659, %v5660
  %v5662 = vrot.slane %v5661, 4
  %v5663 = vadd.f32 %v5661, %v5662
  %v5664 = vrot.slane %v5663, 2
  %v5665 = vadd.f32 %v5663, %v5664
  %v5666 = vrot.slane %v5665, 1
  %v5667 = vadd.f32 %v5665, %v5666
  %v5668 = vsel %vm1758, %v5639, 0.0
  %v5669 = vsel %vm1758, %v5640, 0.0
  %v5670 = vadd.f32 %v5668, %v5669
  %v5671 = vsel %vm1758, %v5641, 0.0
  %v5672 = vadd.f32 %v5670, %v5671
  %v5673 = vsel %vm1758, %v5642, 0.0
  %v5674 = vadd.f32 %v5672, %v5673
  %v5675 = vsel %vm1758, %v5643, 0.0
  %v5676 = vadd.f32 %v5674, %v5675
  %v5677 = vsel %vm1758, %v5644, 0.0
  %v5678 = vadd.f32 %v5676, %v5677
  %v5679 = vsel %vm1758, %v5645, 0.0
  %v5680 = vadd.f32 %v5678, %v5679
  %v5681 = vsel %vm1758, %v5646, 0.0
  %v5682 = vadd.f32 %v5680, %v5681
  %v5683 = vrot.slane %v5682, 4
  %v5684 = vadd.f32 %v5682, %v5683
  %v5685 = vrot.slane %v5684, 2
  %v5686 = vadd.f32 %v5684, %v5685
  %v5687 = vrot.slane %v5686, 1
  %v5688 = vadd.f32 %v5686, %v5687
  %v5689 = vadd.f32 %v4414, %v5667
  %v5690 = vadd.f32 %v4415, %v5688
  %5707 = vrot.lane.b32.xlu0 %v5525, 12
  %v5708 = vpop.permute.xlu0 %5707
  %5709 = vrot.lane.b32.xlu0 %v5528, 12
  %v5710 = vpop.permute.xlu0 %5709
  %5711 = vrot.lane.b32.xlu0 %v5533, 12
  %v5712 = vpop.permute.xlu0 %5711
  %5713 = vrot.lane.b32.xlu0 %v5536, 12
  %v5714 = vpop.permute.xlu0 %5713
  %5715 = vrot.lane.b32.xlu0 %v5541, 12
  %v5716 = vpop.permute.xlu0 %5715
  %5717 = vrot.lane.b32.xlu0 %v5544, 12
  %v5718 = vpop.permute.xlu0 %5717
  %5719 = vrot.lane.b32.xlu0 %v5549, 12
  %v5720 = vpop.permute.xlu0 %5719
  %5721 = vrot.lane.b32.xlu0 %v5552, 12
  %v5722 = vpop.permute.xlu0 %5721
  %5723 = vrot.lane.b32.xlu0 %v5557, 12
  %v5724 = vpop.permute.xlu0 %5723
  %5725 = vrot.lane.b32.xlu0 %v5560, 12
  %v5726 = vpop.permute.xlu0 %5725
  %5727 = vrot.lane.b32.xlu0 %v5565, 12
  %v5728 = vpop.permute.xlu0 %5727
  %5729 = vrot.lane.b32.xlu0 %v5568, 12
  %v5730 = vpop.permute.xlu0 %5729
  %5731 = vrot.lane.b32.xlu0 %v5573, 12
  %v5732 = vpop.permute.xlu0 %5731
  %5733 = vrot.lane.b32.xlu0 %v5576, 12
  %v5734 = vpop.permute.xlu0 %5733
  %5735 = vrot.lane.b32.xlu0 %v5581, 12
  %v5736 = vpop.permute.xlu0 %5735
  %5737 = vrot.lane.b32.xlu0 %v5584, 12
  %v5738 = vpop.permute.xlu0 %5737
  %vm5755 = vcmask 130144
  %5756 = vst.msk [vmem:[%s3] sm:$0xff] %vm5755, %v5708
  %5757 = vst.msk [vmem:[%s3 + $0x8] sm:$0xff] %vm5755, %v5710
  %5758 = vst.msk [vmem:[%s3 + $0x10] sm:$0xff] %vm5755, %v5712
  %5759 = vst.msk [vmem:[%s3 + $0x18] sm:$0xff] %vm5755, %v5714
  %5760 = vst.msk [vmem:[%s3 + $0x20] sm:$0xff] %vm5755, %v5716
  %5761 = vst.msk [vmem:[%s3 + $0x28] sm:$0xff] %vm5755, %v5718
  %5762 = vst.msk [vmem:[%s3 + $0x30] sm:$0xff] %vm5755, %v5720
  %5763 = vst.msk [vmem:[%s3 + $0x38] sm:$0xff] %vm5755, %v5722
  %5764 = vst.msk [vmem:[%s3 + $0x40] sm:$0xff] %vm5755, %v5724
  %5765 = vst.msk [vmem:[%s3 + $0x48] sm:$0xff] %vm5755, %v5726
  %5766 = vst.msk [vmem:[%s3 + $0x50] sm:$0xff] %vm5755, %v5728
  %5767 = vst.msk [vmem:[%s3 + $0x58] sm:$0xff] %vm5755, %v5730
  %5768 = vst.msk [vmem:[%s3 + $0x60] sm:$0xff] %vm5755, %v5732
  %5769 = vst.msk [vmem:[%s3 + $0x68] sm:$0xff] %vm5755, %v5734
  %5770 = vst.msk [vmem:[%s3 + $0x70] sm:$0xff] %vm5755, %v5736
  %5771 = vst.msk [vmem:[%s3 + $0x78] sm:$0xff] %vm5755, %v5738
  %v5772 = vrcp.pop 256.0
  %v5773 = vmul.f32 %v5629, %v5772
  %v5774 = vmul.f32 %v5630, %v5772
  %v5775 = vmul.f32 %v5689, %v5772
  %v5776 = vmul.f32 %v5690, %v5772
  %v5777 = vmul.f32 %v5773, %v5773
  %v5778 = vmul.f32 %v5774, %v5774
  %v5779 = vsub.f32 %v5775, %v5777
  %v5780 = vsub.f32 %v5776, %v5778
  %v5781 = vadd.f32 %v5779, 1e-05
  %v5782 = vadd.f32 %v5780, 1e-05
  %v5783 = vrsqrt.pop %v5781
  %v5784 = vrsqrt.pop %v5782
  %vm5787 = vcmask 1041409
  %v5788 = vsel %vm5787, %v5774, %v5773
  %5790 = vrot.lane.b32.xlu0 %v5788, 4
  %v5791 = vpop.permute.xlu0 %5790
  %5793 = vrot.lane.b32.xlu0 %v5788, 8
  %v5794 = vpop.permute.xlu0 %5793
  %5796 = vrot.lane.b32.xlu0 %v5788, 12
  %v5797 = vpop.permute.xlu0 %5796
  %v5799 = vsel %vm1758, %v5788, %v5791
  %v5800 = vsel %vm1174, %v5799, %v5794
  %vm5801 = vcmask 97280
  %v5802 = vsel %vm5801, %v5800, %v5797
  %v5805 = vunpack.c.l.s4 1966171168
  %v5806 = vunpack.c.0.s8 %v5805
  %v5807 = vlaneseq
  %v5808 = vshrl.u32 %v5807, 7
  %v5809 = vsub.s32 %v5806, %v5808
  %v5810 = vrot.slane %v5802, %v5809
  %v5811 = vcombine.high %v5810, %v5810
  %v5813 = vunpack.c.l.s4 1966171168
  %v5814 = vunpack.c.0.s8 %v5813
  %v5815 = vlaneseq
  %v5816 = vshrl.u32 %v5815, 7
  %v5817 = vsub.s32 %v5814, %v5816
  %v5818 = vrot.slane %v5810, %v5817
  %v5820 = vunpack.c.l.s4 1966171168
  %v5821 = vunpack.c.0.s8 %v5820
  %v5822 = vlaneseq
  %v5823 = vshrl.u32 %v5822, 7
  %v5824 = vsub.s32 %v5821, %v5823
  %v5825 = vrot.slane %v5811, %v5824
  %v5828 = vsel %vm5787, %v5784, %v5783
  %5830 = vrot.lane.b32.xlu0 %v5828, 4
  %v5831 = vpop.permute.xlu0 %5830
  %5833 = vrot.lane.b32.xlu0 %v5828, 8
  %v5834 = vpop.permute.xlu0 %5833
  %5836 = vrot.lane.b32.xlu0 %v5828, 12
  %v5837 = vpop.permute.xlu0 %5836
  %v5839 = vsel %vm1758, %v5828, %v5831
  %v5840 = vsel %vm1174, %v5839, %v5834
  %v5841 = vsel %vm5801, %v5840, %v5837
  %v5844 = vunpack.c.l.s4 1966171168
  %v5845 = vunpack.c.0.s8 %v5844
  %v5846 = vlaneseq
  %v5847 = vshrl.u32 %v5846, 7
  %v5848 = vsub.s32 %v5845, %v5847
  %v5849 = vrot.slane %v5841, %v5848
  %v5850 = vcombine.high %v5849, %v5849
  %v5852 = vunpack.c.l.s4 1966171168
  %v5853 = vunpack.c.0.s8 %v5852
  %v5854 = vlaneseq
  %v5855 = vshrl.u32 %v5854, 7
  %v5856 = vsub.s32 %v5853, %v5855
  %v5857 = vrot.slane %v5849, %v5856
  %v5859 = vunpack.c.l.s4 1966171168
  %v5860 = vunpack.c.0.s8 %v5859
  %v5861 = vlaneseq
  %v5862 = vshrl.u32 %v5861, 7
  %v5863 = vsub.s32 %v5860, %v5862
  %v5864 = vrot.slane %v5850, %v5863
  %v5865 = vld [vmem:[%s3] sm:$0xff]
  %v5866 = vld [vmem:[%s3 + $0x8] sm:$0xff]
  %v5867 = vld [vmem:[%s3 + $0x10] sm:$0xff]
  %v5868 = vld [vmem:[%s3 + $0x18] sm:$0xff]
  %v5869 = vld [vmem:[%s3 + $0x20] sm:$0xff]
  %v5870 = vld [vmem:[%s3 + $0x28] sm:$0xff]
  %v5871 = vld [vmem:[%s3 + $0x30] sm:$0xff]
  %v5872 = vld [vmem:[%s3 + $0x38] sm:$0xff]
  %v5873 = vld [vmem:[%s3 + $0x40] sm:$0xff]
  %v5874 = vld [vmem:[%s3 + $0x48] sm:$0xff]
  %v5875 = vld [vmem:[%s3 + $0x50] sm:$0xff]
  %v5876 = vld [vmem:[%s3 + $0x58] sm:$0xff]
  %v5877 = vld [vmem:[%s3 + $0x60] sm:$0xff]
  %v5878 = vld [vmem:[%s3 + $0x68] sm:$0xff]
  %v5879 = vld [vmem:[%s3 + $0x70] sm:$0xff]
  %v5880 = vld [vmem:[%s3 + $0x78] sm:$0xff]
  %v5881 = vlaneseq
  %v5882 = vshrl.u32 %v5881, 7
  %v5883 = vsub.s32 0, %v5882
  %v5884 = vrot.slane %v5818, %v5883
  %v5885 = vlaneseq
  %v5886 = vshrl.u32 %v5885, 7
  %v5887 = vsub.s32 0, %v5886
  %v5888 = vrot.slane %v5825, %v5887
  %v5891 = vsub.f32 %v5865, %v5884
  %v5892 = vsub.f32 %v5866, %v5884
  %v5893 = vsub.f32 %v5867, %v5884
  %v5894 = vsub.f32 %v5868, %v5884
  %v5895 = vsub.f32 %v5869, %v5884
  %v5896 = vsub.f32 %v5870, %v5884
  %v5897 = vsub.f32 %v5871, %v5884
  %v5898 = vsub.f32 %v5872, %v5884
  %v5899 = vsub.f32 %v5873, %v5888
  %v5900 = vsub.f32 %v5874, %v5888
  %v5901 = vsub.f32 %v5875, %v5888
  %v5902 = vsub.f32 %v5876, %v5888
  %v5903 = vsub.f32 %v5877, %v5888
  %v5904 = vsub.f32 %v5878, %v5888
  %v5905 = vsub.f32 %v5879, %v5888
  %v5906 = vsub.f32 %v5880, %v5888
  %v5907 = vlaneseq
  %v5908 = vshrl.u32 %v5907, 7
  %v5909 = vsub.s32 0, %v5908
  %v5910 = vrot.slane %v5857, %v5909
  %v5911 = vlaneseq
  %v5912 = vshrl.u32 %v5911, 7
  %v5913 = vsub.s32 0, %v5912
  %v5914 = vrot.slane %v5864, %v5913
  %v5917 = vmul.f32 %v5891, %v5910
  %v5918 = vmul.f32 %v5892, %v5910
  %v5919 = vmul.f32 %v5893, %v5910
  %v5920 = vmul.f32 %v5894, %v5910
  %v5921 = vmul.f32 %v5895, %v5910
  %v5922 = vmul.f32 %v5896, %v5910
  %v5923 = vmul.f32 %v5897, %v5910
  %v5924 = vmul.f32 %v5898, %v5910
  %v5925 = vmul.f32 %v5899, %v5914
  %v5926 = vmul.f32 %v5900, %v5914
  %v5927 = vmul.f32 %v5901, %v5914
  %v5928 = vmul.f32 %v5902, %v5914
  %v5929 = vmul.f32 %v5903, %v5914
  %v5930 = vmul.f32 %v5904, %v5914
  %v5931 = vmul.f32 %v5905, %v5914
  %v5932 = vmul.f32 %v5906, %v5914
  %5933 = vst.msk [vmem:[%s3] sm:$0xff] %vm1223, %v5917
  %5934 = vst.msk [vmem:[%s3 + $0x8] sm:$0xff] %vm1223, %v5918
  %5935 = vst.msk [vmem:[%s3 + $0x10] sm:$0xff] %vm1223, %v5919
  %5936 = vst.msk [vmem:[%s3 + $0x18] sm:$0xff] %vm1223, %v5920
  %5937 = vst.msk [vmem:[%s3 + $0x20] sm:$0xff] %vm1223, %v5921
  %5938 = vst.msk [vmem:[%s3 + $0x28] sm:$0xff] %vm1223, %v5922
  %5939 = vst.msk [vmem:[%s3 + $0x30] sm:$0xff] %vm1223, %v5923
  %5940 = vst.msk [vmem:[%s3 + $0x38] sm:$0xff] %vm1223, %v5924
  %5941 = vst.msk [vmem:[%s3 + $0x40] sm:$0xff] %vm1223, %v5925
  %5942 = vst.msk [vmem:[%s3 + $0x48] sm:$0xff] %vm1223, %v5926
  %5943 = vst.msk [vmem:[%s3 + $0x50] sm:$0xff] %vm1223, %v5927
  %5944 = vst.msk [vmem:[%s3 + $0x58] sm:$0xff] %vm1223, %v5928
  %5945 = vst.msk [vmem:[%s3 + $0x60] sm:$0xff] %vm1223, %v5929
  %5946 = vst.msk [vmem:[%s3 + $0x68] sm:$0xff] %vm1223, %v5930
  %5947 = vst.msk [vmem:[%s3 + $0x70] sm:$0xff] %vm1223, %v5931
  %5948 = vst.msk [vmem:[%s3 + $0x78] sm:$0xff] %vm1223, %v5932
  // Predicated region
  $region18: #{unet_block_codec_innermost.1} parent=0 // pred_check
    _
  $region19: #{unet_block_codec_innermost.1} parent=0 // pred_check_branch
    %5950 = sbr.rel (0) target = $region21
  $region20: #{unet_block_codec_innermost.1} parent=0 // pred_region
    _
  $region21: #{unet_block_codec_innermost.1} parent=0 // pred_fallthru
    _
  // Predicated region
  $region22: #{unet_block_codec_innermost.1} parent=0 // pred_check
    _
  $region23: #{unet_block_codec_innermost.1} parent=0 // pred_check_branch
    %5952 = sbr.rel (0) target = $region25
  $region24: #{unet_block_codec_innermost.1} parent=0 // pred_region
    _
  $region25: #{unet_block_codec_innermost.1} parent=0 // pred_fallthru
    _

</llo_original>
